<compile_context>
chip_gen: v7x
topology: tpu7x:2x2x1
jax: 0.10.0
libtpu: 0.0.40
codegen_flags: <defaults>
</compile_context>

<pallas_src>
import functools

import jax
import jax.numpy as jnp
import numpy as np
from jax.experimental import pallas as pl
from jax.experimental.pallas import tpu as pltpu


# ---------------------------------------------------------------------------
# Generation-aware configuration & tiling helpers
# ---------------------------------------------------------------------------
@functools.lru_cache(maxsize=1)
def _tpu_config():
    """Returns (two_tensorcores, vmem_limit_bytes, weight_tile_byte_target)."""
    kind = ""
    try:
        kind = jax.devices()[0].device_kind.lower()
    except Exception:  # pragma: no cover
        pass
    is_v7 = "v7" in kind
    if is_v7:
        # v7x: 64 MiB physical VMEM per TC, 2 TCs per chip -> smaller tiles,
        # keep >= 2 blocks on the parallel axis when possible.
        return True, 32 * 1024 * 1024, 4 * 1024 * 1024
    # v5e / v6e: 128 MiB physical VMEM, single TensorCore.
    return False, 64 * 1024 * 1024, 8 * 1024 * 1024


def _round_up(x, m):
    return (x + m - 1) // m * m


def _pick_tile(total, cap):
    """Largest multiple of 128 that divides `total` and is <= cap (min 128)."""
    assert total % 128 == 0
    cap = max(128, min(int(cap), total))
    t = (cap // 128) * 128
    while total % t:
        t -= 128
    return t


def _apply_act(y, activation, negative_slope):
    if activation == "leaky_relu":
        return jnp.where(y > 0, y, negative_slope * y)
    if activation == "tanh":
        return jnp.tanh(y)
    return y


# ---------------------------------------------------------------------------
# Streaming linear kernels (int8 weights streamed from HBM, f32 epilogue)
# ---------------------------------------------------------------------------
def _stream_kernel_single_k(x_ref, w_ref, s_ref, b_ref, o_ref, *,
                            activation, negative_slope):
    """K fits in one tile: no accumulator scratch, epilogue writes directly."""
    # int8 -> f32 -> bf16 dequant cast (exact for int8 values); MXU runs bf16.
    w = w_ref[...].astype(jnp.float32).astype(jnp.bfloat16)
    acc = jnp.dot(x_ref[...], w, preferred_element_type=jnp.float32)
    y = acc * s_ref[...] + b_ref[...]
    o_ref[...] = _apply_act(y, activation, negative_slope).astype(o_ref.dtype)


def _stream_kernel_multi_k(x_ref, w_ref, s_ref, b_ref, o_ref, acc_ref, *,
                           activation, negative_slope):
    """K split over the last ('arbitrary') grid axis with an f32 accumulator."""
    k = pl.program_id(1)

    @pl.when(k == 0)
    def _():
        acc_ref[...] = jnp.zeros_like(acc_ref)

    w = w_ref[...].astype(jnp.float32).astype(jnp.bfloat16)
    acc_ref[...] += jnp.dot(x_ref[...], w, preferred_element_type=jnp.float32)

    @pl.when(k == pl.num_programs(1) - 1)
    def _():
        y = acc_ref[...] * s_ref[...] + b_ref[...]
        o_ref[...] = _apply_act(y, activation, negative_slope).astype(o_ref.dtype)


def streaming_linear(x, w_q, scale, b, *, activation, out_dtype,
                     negative_slope=0.2):
    """y = act((x @ dequant(w_q)) * scale + b).

    x: (B, K) bf16;  w_q: (K, N) int8;  scale/b: (1, N) f32;  -> (B, N) out_dtype.
    """
    two_tc, vmem_limit, wt_bytes = _tpu_config()
    B, K = x.shape
    K2, N = w_q.shape
    assert K == K2 and K % 128 == 0 and N % 128 == 0
    wbytes = jnp.dtype(w_q.dtype).itemsize

    # Byte-based tile sizing: target ~wt_bytes of weights per tile.
    tn = _pick_tile(N, 4096)
    tk = _pick_tile(K, wt_bytes // (tn * wbytes))
    tn = _pick_tile(N, max(tn, wt_bytes // (tk * wbytes)))
    # Only split the parallel N axis on a 2-TensorCore chip (v7x megacore).
    if two_tc and N // tn < 2 and N >= 256:
        tn = _pick_tile(N, N // 2)

    grid = (N // tn, K // tk)
    nk = grid[1]

    in_specs = [
        pl.BlockSpec((B, tk), lambda n, k: (0, k)),    # bf16 activations
        pl.BlockSpec((tk, tn), lambda n, k: (k, n)),   # int8 weight streaming
        pl.BlockSpec((1, tn), lambda n, k: (0, n)),    # dequant scale
        pl.BlockSpec((1, tn), lambda n, k: (0, n)),    # bias
    ]

    if nk == 1:
        kernel = functools.partial(_stream_kernel_single_k,
                                   activation=activation,
                                   negative_slope=negative_slope)
        scratch = []
    else:
        kernel = functools.partial(_stream_kernel_multi_k,
                                   activation=activation,
                                   negative_slope=negative_slope)
        scratch = [pltpu.VMEM((B, tn), jnp.float32)]

    return pl.pallas_call(
        kernel,
        out_shape=jax.ShapeDtypeStruct((B, N), out_dtype),
        grid_spec=pltpu.PrefetchScalarGridSpec(
            num_scalar_prefetch=0,
            grid=grid,                                  # K reduction last
            in_specs=in_specs,
            out_specs=pl.BlockSpec((B, tn), lambda n, k: (0, n)),
            scratch_shapes=scratch,
        ),
        compiler_params=pltpu.CompilerParams(
            dimension_semantics=("parallel", "arbitrary"),
            vmem_limit_bytes=vmem_limit),
    )(x, w_q, scale, b)


# ---------------------------------------------------------------------------
# Fused small-layer MLP kernel (weights resident in VMEM, BN + LeakyReLU)
# ---------------------------------------------------------------------------
def _fused_mlp_kernel(*refs, layer_has_bn, eps, negative_slope):
    x_ref, o_ref = refs[0], refs[-1]
    layer_refs = refs[1:-1]
    h = x_ref[...]                      # bf16
    idx = 0
    for has_bn in layer_has_bn:
        w_ref, b_ref = layer_refs[idx], layer_refs[idx + 1]
        idx += 2
        y = jnp.dot(h, w_ref[...], preferred_element_type=jnp.float32)
        y = y + b_ref[...]
        if has_bn:
            g_ref, bt_ref = layer_refs[idx], layer_refs[idx + 1]
            idx += 2
            # Training-mode BatchNorm1d: biased batch variance, eps=0.8.
            mean = jnp.mean(y, axis=0, keepdims=True)
            var = jnp.mean((y - mean) ** 2, axis=0, keepdims=True)
            y = (y - mean) * jax.lax.rsqrt(var + eps)
            y = y * g_ref[...] + bt_ref[...]
        y = jnp.where(y > 0, y, negative_slope * y)
        h = y.astype(jnp.bfloat16)
    o_ref[...] = h.astype(o_ref.dtype)


def fused_mlp(x, layers, *, eps=0.8, negative_slope=0.2):
    """Chain of Linear(+BN)+LeakyReLU layers in a single pallas_call.

    x: (B, K0) bf16. layers: list of (w_bf16 (K,N), b (1,N), gamma|None, beta|None).
    Returns (B, N_last) bf16. All weights stay resident in VMEM.
    """
    _, vmem_limit, _ = _tpu_config()
    B = x.shape[0]
    inputs = [x]
    in_specs = [pl.BlockSpec(x.shape, lambda i: (0, 0))]
    layer_has_bn = []
    for w, b, g, bt in layers:
        has_bn = g is not None
        layer_has_bn.append(has_bn)
        arrs = (w, b, g, bt) if has_bn else (w, b)
        for arr in arrs:
            inputs.append(arr)
            in_specs.append(pl.BlockSpec(arr.shape, lambda i: (0, 0)))
    n_out = layers[-1][0].shape[1]

    kernel = functools.partial(_fused_mlp_kernel,
                               layer_has_bn=tuple(layer_has_bn),
                               eps=eps, negative_slope=negative_slope)
    return pl.pallas_call(
        kernel,
        out_shape=jax.ShapeDtypeStruct((B, n_out), jnp.bfloat16),
        grid_spec=pltpu.PrefetchScalarGridSpec(
            num_scalar_prefetch=0,
            grid=(1,),
            in_specs=in_specs,
            out_specs=pl.BlockSpec((B, n_out), lambda i: (0, 0)),
        ),
        compiler_params=pltpu.CompilerParams(
            dimension_semantics=("arbitrary",),
            vmem_limit_bytes=vmem_limit),
    )(*inputs)


# ---------------------------------------------------------------------------
# Parameter init (PyTorch defaults) + quantization
# ---------------------------------------------------------------------------
def _init_linear(key, in_f, out_f, in_pad=None, out_pad=None):
    """nn.Linear default init U(-1/sqrt(in_f), 1/sqrt(in_f)), zero-padded."""
    in_pad = in_pad or in_f
    out_pad = out_pad or out_f
    kw, kb = jax.random.split(key)
    bound = 1.0 / np.sqrt(in_f)
    w = jax.random.uniform(kw, (in_f, out_f), jnp.float32, -bound, bound)
    b = jax.random.uniform(kb, (out_f,), jnp.float32, -bound, bound)
    w = jnp.pad(w, ((0, in_pad - in_f), (0, out_pad - out_f)))
    b = jnp.pad(b, (0, out_pad - out_f))
    return w, b.reshape(1, out_pad)


def _quantize_int8(w):
    """Per-output-channel symmetric int8 quantization of a (K, N) weight."""
    amax = jnp.max(jnp.abs(w), axis=0, keepdims=True)
    scale = jnp.maximum(amax / 127.0, 1e-8)
    w_q = jnp.clip(jnp.round(w / scale), -127, 127).astype(jnp.int8)
    return w_q, scale.astype(jnp.float32)


# Layer-0 weights smaller than this (bf16 bytes) are fused into the VMEM
# resident kernel instead of being streamed from HBM.
_FUSE_LAYER0_BYTES = 4 * 1024 * 1024


def init_generator_params(key, img_shape):
    in_dim = int(np.prod(img_shape))
    in_pad = _round_up(in_dim, 128)
    keys = jax.random.split(key, 5)

    params = {}

    # Layer 0: prod(img_shape) -> 128, no BN.
    w0, b0 = _init_linear(keys[0], in_dim, 128, in_pad=in_pad)
    if in_pad * 128 * 2 <= _FUSE_LAYER0_BYTES:
        params["layer0"] = {"w": w0.astype(jnp.bfloat16), "b": b0}
    else:
        w_q, scale = _quantize_int8(w0)
        params["layer0"] = {"w_q": w_q, "scale": scale, "b": b0}

    # Middle layers 128->256->512->1024 with BatchNorm1d (weight=1, bias=0).
    dims = [128, 256, 512, 1024]
    middle = []
    for i in range(3):
        w, b = _init_linear(keys[1 + i], dims[i], dims[i + 1])
        gamma = jnp.ones((1, dims[i + 1]), jnp.float32)
        beta = jnp.zeros((1, dims[i + 1]), jnp.float32)
        middle.append((w.astype(jnp.bfloat16), b, gamma, beta))
    params["middle"] = middle

    # Final layer: 1024 -> prod(img_shape), int8-quantized (weight-streaming).
    w4, b4 = _init_linear(keys[4], 1024, in_dim, out_pad=in_pad)
    w_q, scale = _quantize_int8(w4)
    params["last"] = {"w_q": w_q, "scale": scale, "b": b4}
    return params


# ---------------------------------------------------------------------------
# Forward pass + pure-JAX reference
# ---------------------------------------------------------------------------
def generator_forward(params, labels, img_shape):
    in_dim = int(np.prod(img_shape))
    B = labels.shape[0]
    in_pad = params["last"]["b"].shape[1]

    x = labels.reshape(B, -1).astype(jnp.bfloat16)
    if in_pad != in_dim:
        x = jnp.pad(x, ((0, 0), (0, in_pad - in_dim)))

    layer0 = params["layer0"]
    fused_layers = []
    if "w_q" in layer0:
        # Large first layer: stream int8 weights from HBM.
        # TODO(synk): on v7x the single 128-wide N block leaves one TensorCore
        # idle here; a cross-core K-split would recover it.
        x = streaming_linear(x, layer0["w_q"], layer0["scale"], layer0["b"],
                             activation="leaky_relu", out_dtype=jnp.bfloat16)
    else:
        fused_layers.append((layer0["w"], layer0["b"], None, None))
    fused_layers += list(params["middle"])

    # All small layers in one VMEM-resident fused kernel -> (B, 1024) bf16.
    x = fused_mlp(x, fused_layers, eps=0.8, negative_slope=0.2)

    # Final Linear(1024 -> prod(img_shape)) + Tanh, int8 weight streaming.
    last = params["last"]
    y = streaming_linear(x, last["w_q"], last["scale"], last["b"],
                         activation="tanh", out_dtype=jnp.float32)
    return y[:, :in_dim].reshape(B, *img_shape)


def generator_reference(params, labels, img_shape):
    """Pure-JAX reference with identical numerics (bf16 matmuls, f32 epilogue,
    same int8 dequant, same bf16 inter-layer casts)."""
    in_dim = int(np.prod(img_shape))
    B = labels.shape[0]
    in_pad = params["last"]["b"].shape[1]

    x = labels.reshape(B, -1).astype(jnp.bfloat16)
    if in_pad != in_dim:
        x = jnp.pad(x, ((0, 0), (0, in_pad - in_dim)))

    def dense(h, w_bf16):
        return jnp.dot(h, w_bf16, preferred_element_type=jnp.float32)

    def lrelu(v):
        return jnp.where(v > 0, v, 0.2 * v)

    layer0 = params["layer0"]
    if "w_q" in layer0:
        y = dense(x, layer0["w_q"].astype(jnp.bfloat16)) * layer0["scale"] + layer0["b"]
    else:
        y = dense(x, layer0["w"]) + layer0["b"]
    x = lrelu(y).astype(jnp.bfloat16)

    for w, b, g, bt in params["middle"]:
        y = dense(x, w) + b
        mean = jnp.mean(y, axis=0, keepdims=True)
        var = jnp.mean((y - mean) ** 2, axis=0, keepdims=True)
        y = (y - mean) * jax.lax.rsqrt(var + 0.8)
        y = y * g + bt
        x = lrelu(y).astype(jnp.bfloat16)

    last = params["last"]
    y = dense(x, last["w_q"].astype(jnp.bfloat16)) * last["scale"] + last["b"]
    y = jnp.tanh(y)
    return y[:, :in_dim].reshape(B, *img_shape)


# ---------------------------------------------------------------------------
if __name__ == "__main__":
    # Identical network structure to the original module (which uses
    # img_shape=(1, 256, 256)); reduced spatial size keeps the demo small.
    img_shape = (1, 32, 32)
    batch = 2

    key = jax.random.PRNGKey(0)
    k_params, k_labels = jax.random.split(key)
    params = init_generator_params(k_params, img_shape)
    labels = jax.random.normal(k_labels, (batch, *img_shape), jnp.float32)

    fwd = jax.jit(functools.partial(generator_forward, img_shape=img_shape))
    img = jax.block_until_ready(fwd(params, labels))
    assert img.shape == (batch, *img_shape), img.shape

    ref = jax.block_until_ready(generator_reference(params, labels, img_shape))
    np.testing.assert_allclose(np.asarray(img), np.asarray(ref),
                               rtol=1e-2, atol=1e-2)

    print("KERNEL_OK")
</pallas_src>

<mosaic_0001>
module attributes {stable_mosaic.version = 11 : i64} {
  func.func @_fused_mlp_kernel(%arg0: i32, %arg1: memref<2x1024xbf16, #tpu.memory_space<vmem>>, %arg2: memref<1024x128xbf16, #tpu.memory_space<vmem>>, %arg3: memref<1x128xf32, #tpu.memory_space<vmem>>, %arg4: memref<128x256xbf16, #tpu.memory_space<vmem>>, %arg5: memref<1x256xf32, #tpu.memory_space<vmem>>, %arg6: memref<1x256xf32, #tpu.memory_space<vmem>>, %arg7: memref<1x256xf32, #tpu.memory_space<vmem>>, %arg8: memref<256x512xbf16, #tpu.memory_space<vmem>>, %arg9: memref<1x512xf32, #tpu.memory_space<vmem>>, %arg10: memref<1x512xf32, #tpu.memory_space<vmem>>, %arg11: memref<1x512xf32, #tpu.memory_space<vmem>>, %arg12: memref<512x1024xbf16, #tpu.memory_space<vmem>>, %arg13: memref<1x1024xf32, #tpu.memory_space<vmem>>, %arg14: memref<1x1024xf32, #tpu.memory_space<vmem>>, %arg15: memref<1x1024xf32, #tpu.memory_space<vmem>>, %arg16: memref<2x1024xbf16, #tpu.memory_space<vmem>>) attributes {dimension_semantics = [#tpu.dimension_semantics<arbitrary>], iteration_bounds = array<i64: 1>, scalar_prefetch = 0 : i64, scratch_operands = 0 : i64, tpu.core_type = #tpu.core_type<tc>, window_params = [{pipeline_mode = #tpu.pipeline_mode<synchronous>, transform_indices = @transform_0, window_bounds = array<i64: 2, 1024>}, {pipeline_mode = #tpu.pipeline_mode<synchronous>, transform_indices = @transform_1, window_bounds = array<i64: 1024, 128>}, {pipeline_mode = #tpu.pipeline_mode<synchronous>, transform_indices = @transform_2, window_bounds = array<i64: 1, 128>}, {pipeline_mode = #tpu.pipeline_mode<synchronous>, transform_indices = @transform_3, window_bounds = array<i64: 128, 256>}, {pipeline_mode = #tpu.pipeline_mode<synchronous>, transform_indices = @transform_4, window_bounds = array<i64: 1, 256>}, {pipeline_mode = #tpu.pipeline_mode<synchronous>, transform_indices = @transform_5, window_bounds = array<i64: 1, 256>}, {pipeline_mode = #tpu.pipeline_mode<synchronous>, transform_indices = @transform_6, window_bounds = array<i64: 1, 256>}, {pipeline_mode = #tpu.pipeline_mode<synchronous>, transform_indices = @transform_7, window_bounds = array<i64: 256, 512>}, {pipeline_mode = #tpu.pipeline_mode<synchronous>, transform_indices = @transform_8, window_bounds = array<i64: 1, 512>}, {pipeline_mode = #tpu.pipeline_mode<synchronous>, transform_indices = @transform_9, window_bounds = array<i64: 1, 512>}, {pipeline_mode = #tpu.pipeline_mode<synchronous>, transform_indices = @transform_10, window_bounds = array<i64: 1, 512>}, {pipeline_mode = #tpu.pipeline_mode<synchronous>, transform_indices = @transform_11, window_bounds = array<i64: 512, 1024>}, {pipeline_mode = #tpu.pipeline_mode<synchronous>, transform_indices = @transform_12, window_bounds = array<i64: 1, 1024>}, {pipeline_mode = #tpu.pipeline_mode<synchronous>, transform_indices = @transform_13, window_bounds = array<i64: 1, 1024>}, {pipeline_mode = #tpu.pipeline_mode<synchronous>, transform_indices = @transform_14, window_bounds = array<i64: 1, 1024>}, {pipeline_mode = #tpu.pipeline_mode<synchronous>, transform_indices = @transform_15, window_bounds = array<i64: 2, 1024>}]} {
    %c0 = arith.constant 0 : index
    %c0_0 = arith.constant 0 : index
    %0 = vector.load %arg1[%c0, %c0_0] : memref<2x1024xbf16, #tpu.memory_space<vmem>>, vector<2x1024xbf16>
    %c0_1 = arith.constant 0 : index
    %c0_2 = arith.constant 0 : index
    %1 = vector.load %arg2[%c0_1, %c0_2] : memref<1024x128xbf16, #tpu.memory_space<vmem>>, vector<1024x128xbf16>
    %cst = arith.constant dense<0.000000e+00> : vector<2x128xf32>
    %2 = tpu.matmul %0, %1, %cst {dimension_numbers = #tpu.dot_dimension_numbers<[1], [0], [0], [1], [0, 0, 1, 1], [], []>} : vector<2x1024xbf16>, vector<1024x128xbf16>, vector<2x128xf32> -> vector<2x128xf32>
    %c0_3 = arith.constant 0 : index
    %c0_4 = arith.constant 0 : index
    %3 = vector.load %arg3[%c0_3, %c0_4] : memref<1x128xf32, #tpu.memory_space<vmem>>, vector<1x128xf32>
    %4 = vector.broadcast %3 : vector<1x128xf32> to vector<2x128xf32>
    %5 = arith.addf %2, %4 : vector<2x128xf32>
    %cst_5 = arith.constant 0.000000e+00 : f32
    %6 = vector.broadcast %cst_5 : f32 to vector<2x128xf32>
    %7 = arith.cmpf ogt, %5, %6 : vector<2x128xf32>
    %cst_6 = arith.constant 2.000000e-01 : f32
    %8 = vector.broadcast %cst_6 : f32 to vector<2x128xf32>
    %9 = arith.mulf %8, %5 : vector<2x128xf32>
    %10 = arith.select %7, %5, %9 : vector<2x128xi1>, vector<2x128xf32>
    %11 = arith.truncf %10 : vector<2x128xf32> to vector<2x128xbf16>
    %c0_7 = arith.constant 0 : index
    %c0_8 = arith.constant 0 : index
    %12 = vector.load %arg4[%c0_7, %c0_8] : memref<128x256xbf16, #tpu.memory_space<vmem>>, vector<128x256xbf16>
    %cst_9 = arith.constant dense<0.000000e+00> : vector<2x256xf32>
    %13 = tpu.matmul %11, %12, %cst_9 {dimension_numbers = #tpu.dot_dimension_numbers<[1], [0], [0], [1], [0, 0, 1, 1], [], []>} : vector<2x128xbf16>, vector<128x256xbf16>, vector<2x256xf32> -> vector<2x256xf32>
    %c0_10 = arith.constant 0 : index
    %c0_11 = arith.constant 0 : index
    %14 = vector.load %arg5[%c0_10, %c0_11] : memref<1x256xf32, #tpu.memory_space<vmem>>, vector<1x256xf32>
    %15 = vector.broadcast %14 : vector<1x256xf32> to vector<2x256xf32>
    %16 = arith.addf %13, %15 : vector<2x256xf32>
    %cst_12 = arith.constant dense<0.000000e+00> : vector<256xf32>
    %17 = vector.multi_reduction <add>, %16, %cst_12 [0] : vector<2x256xf32> to vector<256xf32>
    %18 = vector.shape_cast %17 : vector<256xf32> to vector<1x256xf32>
    %cst_13 = arith.constant 2.000000e+00 : f32
    %19 = vector.broadcast %cst_13 : f32 to vector<1x256xf32>
    %20 = arith.divf %18, %19 : vector<1x256xf32>
    %21 = vector.broadcast %20 : vector<1x256xf32> to vector<2x256xf32>
    %22 = arith.subf %16, %21 : vector<2x256xf32>
    %23 = arith.mulf %22, %22 : vector<2x256xf32>
    %cst_14 = arith.constant dense<0.000000e+00> : vector<256xf32>
    %24 = vector.multi_reduction <add>, %23, %cst_14 [0] : vector<2x256xf32> to vector<256xf32>
    %25 = vector.shape_cast %24 : vector<256xf32> to vector<1x256xf32>
    %cst_15 = arith.constant 2.000000e+00 : f32
    %26 = vector.broadcast %cst_15 : f32 to vector<1x256xf32>
    %27 = arith.divf %25, %26 : vector<1x256xf32>
    %28 = vector.broadcast %20 : vector<1x256xf32> to vector<2x256xf32>
    %29 = arith.subf %16, %28 : vector<2x256xf32>
    %cst_16 = arith.constant 8.000000e-01 : f32
    %30 = vector.broadcast %cst_16 : f32 to vector<1x256xf32>
    %31 = arith.addf %27, %30 : vector<1x256xf32>
    %32 = math.rsqrt %31 : vector<1x256xf32>
    %33 = vector.broadcast %32 : vector<1x256xf32> to vector<2x256xf32>
    %34 = arith.mulf %29, %33 : vector<2x256xf32>
    %c0_17 = arith.constant 0 : index
    %c0_18 = arith.constant 0 : index
    %35 = vector.load %arg6[%c0_17, %c0_18] : memref<1x256xf32, #tpu.memory_space<vmem>>, vector<1x256xf32>
    %36 = vector.broadcast %35 : vector<1x256xf32> to vector<2x256xf32>
    %37 = arith.mulf %34, %36 : vector<2x256xf32>
    %c0_19 = arith.constant 0 : index
    %c0_20 = arith.constant 0 : index
    %38 = vector.load %arg7[%c0_19, %c0_20] : memref<1x256xf32, #tpu.memory_space<vmem>>, vector<1x256xf32>
    %39 = vector.broadcast %38 : vector<1x256xf32> to vector<2x256xf32>
    %40 = arith.addf %37, %39 : vector<2x256xf32>
    %cst_21 = arith.constant 0.000000e+00 : f32
    %41 = vector.broadcast %cst_21 : f32 to vector<2x256xf32>
    %42 = arith.cmpf ogt, %40, %41 : vector<2x256xf32>
    %cst_22 = arith.constant 2.000000e-01 : f32
    %43 = vector.broadcast %cst_22 : f32 to vector<2x256xf32>
    %44 = arith.mulf %43, %40 : vector<2x256xf32>
    %45 = arith.select %42, %40, %44 : vector<2x256xi1>, vector<2x256xf32>
    %46 = arith.truncf %45 : vector<2x256xf32> to vector<2x256xbf16>
    %c0_23 = arith.constant 0 : index
    %c0_24 = arith.constant 0 : index
    %47 = vector.load %arg8[%c0_23, %c0_24] : memref<256x512xbf16, #tpu.memory_space<vmem>>, vector<256x512xbf16>
    %cst_25 = arith.constant dense<0.000000e+00> : vector<2x512xf32>
    %48 = tpu.matmul %46, %47, %cst_25 {dimension_numbers = #tpu.dot_dimension_numbers<[1], [0], [0], [1], [0, 0, 1, 1], [], []>} : vector<2x256xbf16>, vector<256x512xbf16>, vector<2x512xf32> -> vector<2x512xf32>
    %c0_26 = arith.constant 0 : index
    %c0_27 = arith.constant 0 : index
    %49 = vector.load %arg9[%c0_26, %c0_27] : memref<1x512xf32, #tpu.memory_space<vmem>>, vector<1x512xf32>
    %50 = vector.broadcast %49 : vector<1x512xf32> to vector<2x512xf32>
    %51 = arith.addf %48, %50 : vector<2x512xf32>
    %cst_28 = arith.constant dense<0.000000e+00> : vector<512xf32>
    %52 = vector.multi_reduction <add>, %51, %cst_28 [0] : vector<2x512xf32> to vector<512xf32>
    %53 = vector.shape_cast %52 : vector<512xf32> to vector<1x512xf32>
    %cst_29 = arith.constant 2.000000e+00 : f32
    %54 = vector.broadcast %cst_29 : f32 to vector<1x512xf32>
    %55 = arith.divf %53, %54 : vector<1x512xf32>
    %56 = vector.broadcast %55 : vector<1x512xf32> to vector<2x512xf32>
    %57 = arith.subf %51, %56 : vector<2x512xf32>
    %58 = arith.mulf %57, %57 : vector<2x512xf32>
    %cst_30 = arith.constant dense<0.000000e+00> : vector<512xf32>
    %59 = vector.multi_reduction <add>, %58, %cst_30 [0] : vector<2x512xf32> to vector<512xf32>
    %60 = vector.shape_cast %59 : vector<512xf32> to vector<1x512xf32>
    %cst_31 = arith.constant 2.000000e+00 : f32
    %61 = vector.broadcast %cst_31 : f32 to vector<1x512xf32>
    %62 = arith.divf %60, %61 : vector<1x512xf32>
    %63 = vector.broadcast %55 : vector<1x512xf32> to vector<2x512xf32>
    %64 = arith.subf %51, %63 : vector<2x512xf32>
    %cst_32 = arith.constant 8.000000e-01 : f32
    %65 = vector.broadcast %cst_32 : f32 to vector<1x512xf32>
    %66 = arith.addf %62, %65 : vector<1x512xf32>
    %67 = math.rsqrt %66 : vector<1x512xf32>
    %68 = vector.broadcast %67 : vector<1x512xf32> to vector<2x512xf32>
    %69 = arith.mulf %64, %68 : vector<2x512xf32>
    %c0_33 = arith.constant 0 : index
    %c0_34 = arith.constant 0 : index
    %70 = vector.load %arg10[%c0_33, %c0_34] : memref<1x512xf32, #tpu.memory_space<vmem>>, vector<1x512xf32>
    %71 = vector.broadcast %70 : vector<1x512xf32> to vector<2x512xf32>
    %72 = arith.mulf %69, %71 : vector<2x512xf32>
    %c0_35 = arith.constant 0 : index
    %c0_36 = arith.constant 0 : index
    %73 = vector.load %arg11[%c0_35, %c0_36] : memref<1x512xf32, #tpu.memory_space<vmem>>, vector<1x512xf32>
    %74 = vector.broadcast %73 : vector<1x512xf32> to vector<2x512xf32>
    %75 = arith.addf %72, %74 : vector<2x512xf32>
    %cst_37 = arith.constant 0.000000e+00 : f32
    %76 = vector.broadcast %cst_37 : f32 to vector<2x512xf32>
    %77 = arith.cmpf ogt, %75, %76 : vector<2x512xf32>
    %cst_38 = arith.constant 2.000000e-01 : f32
    %78 = vector.broadcast %cst_38 : f32 to vector<2x512xf32>
    %79 = arith.mulf %78, %75 : vector<2x512xf32>
    %80 = arith.select %77, %75, %79 : vector<2x512xi1>, vector<2x512xf32>
    %81 = arith.truncf %80 : vector<2x512xf32> to vector<2x512xbf16>
    %c0_39 = arith.constant 0 : index
    %c0_40 = arith.constant 0 : index
    %82 = vector.load %arg12[%c0_39, %c0_40] : memref<512x1024xbf16, #tpu.memory_space<vmem>>, vector<512x1024xbf16>
    %cst_41 = arith.constant dense<0.000000e+00> : vector<2x1024xf32>
    %83 = tpu.matmul %81, %82, %cst_41 {dimension_numbers = #tpu.dot_dimension_numbers<[1], [0], [0], [1], [0, 0, 1, 1], [], []>} : vector<2x512xbf16>, vector<512x1024xbf16>, vector<2x1024xf32> -> vector<2x1024xf32>
    %c0_42 = arith.constant 0 : index
    %c0_43 = arith.constant 0 : index
    %84 = vector.load %arg13[%c0_42, %c0_43] : memref<1x1024xf32, #tpu.memory_space<vmem>>, vector<1x1024xf32>
    %85 = vector.broadcast %84 : vector<1x1024xf32> to vector<2x1024xf32>
    %86 = arith.addf %83, %85 : vector<2x1024xf32>
    %cst_44 = arith.constant dense<0.000000e+00> : vector<1024xf32>
    %87 = vector.multi_reduction <add>, %86, %cst_44 [0] : vector<2x1024xf32> to vector<1024xf32>
    %88 = vector.shape_cast %87 : vector<1024xf32> to vector<1x1024xf32>
    %cst_45 = arith.constant 2.000000e+00 : f32
    %89 = vector.broadcast %cst_45 : f32 to vector<1x1024xf32>
    %90 = arith.divf %88, %89 : vector<1x1024xf32>
    %91 = vector.broadcast %90 : vector<1x1024xf32> to vector<2x1024xf32>
    %92 = arith.subf %86, %91 : vector<2x1024xf32>
    %93 = arith.mulf %92, %92 : vector<2x1024xf32>
    %cst_46 = arith.constant dense<0.000000e+00> : vector<1024xf32>
    %94 = vector.multi_reduction <add>, %93, %cst_46 [0] : vector<2x1024xf32> to vector<1024xf32>
    %95 = vector.shape_cast %94 : vector<1024xf32> to vector<1x1024xf32>
    %cst_47 = arith.constant 2.000000e+00 : f32
    %96 = vector.broadcast %cst_47 : f32 to vector<1x1024xf32>
    %97 = arith.divf %95, %96 : vector<1x1024xf32>
    %98 = vector.broadcast %90 : vector<1x1024xf32> to vector<2x1024xf32>
    %99 = arith.subf %86, %98 : vector<2x1024xf32>
    %cst_48 = arith.constant 8.000000e-01 : f32
    %100 = vector.broadcast %cst_48 : f32 to vector<1x1024xf32>
    %101 = arith.addf %97, %100 : vector<1x1024xf32>
    %102 = math.rsqrt %101 : vector<1x1024xf32>
    %103 = vector.broadcast %102 : vector<1x1024xf32> to vector<2x1024xf32>
    %104 = arith.mulf %99, %103 : vector<2x1024xf32>
    %c0_49 = arith.constant 0 : index
    %c0_50 = arith.constant 0 : index
    %105 = vector.load %arg14[%c0_49, %c0_50] : memref<1x1024xf32, #tpu.memory_space<vmem>>, vector<1x1024xf32>
    %106 = vector.broadcast %105 : vector<1x1024xf32> to vector<2x1024xf32>
    %107 = arith.mulf %104, %106 : vector<2x1024xf32>
    %c0_51 = arith.constant 0 : index
    %c0_52 = arith.constant 0 : index
    %108 = vector.load %arg15[%c0_51, %c0_52] : memref<1x1024xf32, #tpu.memory_space<vmem>>, vector<1x1024xf32>
    %109 = vector.broadcast %108 : vector<1x1024xf32> to vector<2x1024xf32>
    %110 = arith.addf %107, %109 : vector<2x1024xf32>
    %cst_53 = arith.constant 0.000000e+00 : f32
    %111 = vector.broadcast %cst_53 : f32 to vector<2x1024xf32>
    %112 = arith.cmpf ogt, %110, %111 : vector<2x1024xf32>
    %cst_54 = arith.constant 2.000000e-01 : f32
    %113 = vector.broadcast %cst_54 : f32 to vector<2x1024xf32>
    %114 = arith.mulf %113, %110 : vector<2x1024xf32>
    %115 = arith.select %112, %110, %114 : vector<2x1024xi1>, vector<2x1024xf32>
    %116 = arith.truncf %115 : vector<2x1024xf32> to vector<2x1024xbf16>
    %c0_55 = arith.constant 0 : index
    %c0_56 = arith.constant 0 : index
    %117 = vector.load %arg16[%c0_55, %c0_56] : memref<2x1024xbf16, #tpu.memory_space<vmem>>, vector<2x1024xbf16>
    tpu.vector_store %arg16[%c0_55, %c0_56], %116 {strides = array<i32>} : memref<2x1024xbf16, #tpu.memory_space<vmem>>, vector<2x1024xbf16>,
    return
  }
  func.func @transform_0(%arg0: i32) -> (i32, i32) {
    %c0_i32 = arith.constant 0 : i32
    %c0_i32_0 = arith.constant 0 : i32
    %c0_i32_1 = arith.constant 0 : i32
    return %c0_i32, %c0_i32_0 : i32, i32
  }
  func.func @transform_1(%arg0: i32) -> (i32, i32) {
    %c0_i32 = arith.constant 0 : i32
    %c0_i32_0 = arith.constant 0 : i32
    %c0_i32_1 = arith.constant 0 : i32
    return %c0_i32, %c0_i32_0 : i32, i32
  }
  func.func @transform_2(%arg0: i32) -> (i32, i32) {
    %c0_i32 = arith.constant 0 : i32
    %c0_i32_0 = arith.constant 0 : i32
    %c0_i32_1 = arith.constant 0 : i32
    return %c0_i32, %c0_i32_0 : i32, i32
  }
  func.func @transform_3(%arg0: i32) -> (i32, i32) {
    %c0_i32 = arith.constant 0 : i32
    %c0_i32_0 = arith.constant 0 : i32
    %c0_i32_1 = arith.constant 0 : i32
    return %c0_i32, %c0_i32_0 : i32, i32
  }
  func.func @transform_4(%arg0: i32) -> (i32, i32) {
    %c0_i32 = arith.constant 0 : i32
    %c0_i32_0 = arith.constant 0 : i32
    %c0_i32_1 = arith.constant 0 : i32
    return %c0_i32, %c0_i32_0 : i32, i32
  }
  func.func @transform_5(%arg0: i32) -> (i32, i32) {
    %c0_i32 = arith.constant 0 : i32
    %c0_i32_0 = arith.constant 0 : i32
    %c0_i32_1 = arith.constant 0 : i32
    return %c0_i32, %c0_i32_0 : i32, i32
  }
  func.func @transform_6(%arg0: i32) -> (i32, i32) {
    %c0_i32 = arith.constant 0 : i32
    %c0_i32_0 = arith.constant 0 : i32
    %c0_i32_1 = arith.constant 0 : i32
    return %c0_i32, %c0_i32_0 : i32, i32
  }
  func.func @transform_7(%arg0: i32) -> (i32, i32) {
    %c0_i32 = arith.constant 0 : i32
    %c0_i32_0 = arith.constant 0 : i32
    %c0_i32_1 = arith.constant 0 : i32
    return %c0_i32, %c0_i32_0 : i32, i32
  }
  func.func @transform_8(%arg0: i32) -> (i32, i32) {
    %c0_i32 = arith.constant 0 : i32
    %c0_i32_0 = arith.constant 0 : i32
    %c0_i32_1 = arith.constant 0 : i32
    return %c0_i32, %c0_i32_0 : i32, i32
  }
  func.func @transform_9(%arg0: i32) -> (i32, i32) {
    %c0_i32 = arith.constant 0 : i32
    %c0_i32_0 = arith.constant 0 : i32
    %c0_i32_1 = arith.constant 0 : i32
    return %c0_i32, %c0_i32_0 : i32, i32
  }
  func.func @transform_10(%arg0: i32) -> (i32, i32) {
    %c0_i32 = arith.constant 0 : i32
    %c0_i32_0 = arith.constant 0 : i32
    %c0_i32_1 = arith.constant 0 : i32
    return %c0_i32, %c0_i32_0 : i32, i32
  }
  func.func @transform_11(%arg0: i32) -> (i32, i32) {
    %c0_i32 = arith.constant 0 : i32
    %c0_i32_0 = arith.constant 0 : i32
    %c0_i32_1 = arith.constant 0 : i32
    return %c0_i32, %c0_i32_0 : i32, i32
  }
  func.func @transform_12(%arg0: i32) -> (i32, i32) {
    %c0_i32 = arith.constant 0 : i32
    %c0_i32_0 = arith.constant 0 : i32
    %c0_i32_1 = arith.constant 0 : i32
    return %c0_i32, %c0_i32_0 : i32, i32
  }
  func.func @transform_13(%arg0: i32) -> (i32, i32) {
    %c0_i32 = arith.constant 0 : i32
    %c0_i32_0 = arith.constant 0 : i32
    %c0_i32_1 = arith.constant 0 : i32
    return %c0_i32, %c0_i32_0 : i32, i32
  }
  func.func @transform_14(%arg0: i32) -> (i32, i32) {
    %c0_i32 = arith.constant 0 : i32
    %c0_i32_0 = arith.constant 0 : i32
    %c0_i32_1 = arith.constant 0 : i32
    return %c0_i32, %c0_i32_0 : i32, i32
  }
  func.func @transform_15(%arg0: i32) -> (i32, i32) {
    %c0_i32 = arith.constant 0 : i32
    %c0_i32_0 = arith.constant 0 : i32
    %c0_i32_1 = arith.constant 0 : i32
    return %c0_i32, %c0_i32_0 : i32, i32
  }
}

module attributes {stable_mosaic.version = 11 : i64} {
  func.func @_stream_kernel_single_k(%arg0: i32, %arg1: i32, %arg2: memref<2x1024xbf16, #tpu.memory_space<vmem>>, %arg3: memref<1024x1024xi8, #tpu.memory_space<vmem>>, %arg4: memref<1x1024xf32, #tpu.memory_space<vmem>>, %arg5: memref<1x1024xf32, #tpu.memory_space<vmem>>, %arg6: memref<2x1024xf32, #tpu.memory_space<vmem>>) attributes {dimension_semantics = [#tpu.dimension_semantics<parallel>, #tpu.dimension_semantics<arbitrary>], iteration_bounds = array<i64: 1, 1>, scalar_prefetch = 0 : i64, scratch_operands = 0 : i64, tpu.core_type = #tpu.core_type<tc>, window_params = [{transform_indices = @transform_0, window_bounds = array<i64: 2, 1024>}, {transform_indices = @transform_1, window_bounds = array<i64: 1024, 1024>}, {transform_indices = @transform_2, window_bounds = array<i64: 1, 1024>}, {transform_indices = @transform_3, window_bounds = array<i64: 1, 1024>}, {transform_indices = @transform_4, window_bounds = array<i64: 2, 1024>}]} {
    %c0 = arith.constant 0 : index
    %c0_0 = arith.constant 0 : index
    %0 = vector.load %arg3[%c0, %c0_0] : memref<1024x1024xi8, #tpu.memory_space<vmem>>, vector<1024x1024xi8>
    %1 = arith.sitofp %0 : vector<1024x1024xi8> to vector<1024x1024xf32>
    %2 = arith.truncf %1 : vector<1024x1024xf32> to vector<1024x1024xbf16>
    %c0_1 = arith.constant 0 : index
    %c0_2 = arith.constant 0 : index
    %3 = vector.load %arg2[%c0_1, %c0_2] : memref<2x1024xbf16, #tpu.memory_space<vmem>>, vector<2x1024xbf16>
    %cst = arith.constant dense<0.000000e+00> : vector<2x1024xf32>
    %4 = tpu.matmul %3, %2, %cst {dimension_numbers = #tpu.dot_dimension_numbers<[1], [0], [0], [1], [0, 0, 1, 1], [], []>} : vector<2x1024xbf16>, vector<1024x1024xbf16>, vector<2x1024xf32> -> vector<2x1024xf32>
    %c0_3 = arith.constant 0 : index
    %c0_4 = arith.constant 0 : index
    %5 = vector.load %arg4[%c0_3, %c0_4] : memref<1x1024xf32, #tpu.memory_space<vmem>>, vector<1x1024xf32>
    %6 = vector.broadcast %5 : vector<1x1024xf32> to vector<2x1024xf32>
    %7 = arith.mulf %4, %6 : vector<2x1024xf32>
    %c0_5 = arith.constant 0 : index
    %c0_6 = arith.constant 0 : index
    %8 = vector.load %arg5[%c0_5, %c0_6] : memref<1x1024xf32, #tpu.memory_space<vmem>>, vector<1x1024xf32>
    %9 = vector.broadcast %8 : vector<1x1024xf32> to vector<2x1024xf32>
    %10 = arith.addf %7, %9 : vector<2x1024xf32>
    %11 = math.tanh %10 : vector<2x1024xf32>
    %c0_7 = arith.constant 0 : index
    %c0_8 = arith.constant 0 : index
    %12 = vector.load %arg6[%c0_7, %c0_8] : memref<2x1024xf32, #tpu.memory_space<vmem>>, vector<2x1024xf32>
    tpu.vector_store %arg6[%c0_7, %c0_8], %11 {strides = array<i32>} : memref<2x1024xf32, #tpu.memory_space<vmem>>, vector<2x1024xf32>,
    return
  }
  func.func @transform_0(%arg0: i32, %arg1: i32) -> (i32, i32) {
    %c0_i32 = arith.constant 0 : i32
    %c0_i32_0 = arith.constant 0 : i32
    return %c0_i32, %arg1 : i32, i32
  }
  func.func @transform_1(%arg0: i32, %arg1: i32) -> (i32, i32) {
    %c0_i32 = arith.constant 0 : i32
    return %arg1, %arg0 : i32, i32
  }
  func.func @transform_2(%arg0: i32, %arg1: i32) -> (i32, i32) {
    %c0_i32 = arith.constant 0 : i32
    %c0_i32_0 = arith.constant 0 : i32
    return %c0_i32, %arg0 : i32, i32
  }
  func.func @transform_3(%arg0: i32, %arg1: i32) -> (i32, i32) {
    %c0_i32 = arith.constant 0 : i32
    %c0_i32_0 = arith.constant 0 : i32
    return %c0_i32, %arg0 : i32, i32
  }
  func.func @transform_4(%arg0: i32, %arg1: i32) -> (i32, i32) {
    %c0_i32 = arith.constant 0 : i32
    %c0_i32_0 = arith.constant 0 : i32
    return %c0_i32, %arg0 : i32, i32
  }
}

</mosaic_0001>

<llo_original>
// kernel: generator_forward.3
$region0: #{generator_forward.3}
  #allocation0 [shape = 'u32[]', space=smem, size = 0x4, offset = 0x4, fixed_abs, tag = 'smem constant byte address 0x4 - core index']
  #allocation1 [shape = 'u32[144,128]{1,0:T(1,128)}', space=vmem, size = 0x12000, scoped, tag = 'internal scratch']
  %s0 = inlined_call_operand.hbm [shape: bf16[2,1024], index: 0, kind: input, shape index: {}]
  %s1 = inlined_call_operand.hbm [shape: s8[1024,1024], index: 1, kind: input, shape index: {}]
  %s2 = inlined_call_operand.hbm [shape: f32[1,1024], index: 2, kind: input, shape index: {}]
  %s3 = inlined_call_operand.hbm [shape: f32[1,1024], index: 3, kind: input, shape index: {}]
  %s4 = inlined_call_operand.hbm [shape: f32[2,1024], index: 4, kind: output, shape index: {}]
  %s5 = sld [smem:[#allocation0]]
  $region42: #{generator_forward.3} parent=0
    _
  %s7 = ssub.s32 1, %s5
  %s8 = scalar_select 0, %s7, %s5
  $region1: #{generator_forward.3} parent=0
    #allocation2 [shape = 'u8[4096]{0}', space=vmem, size = 0x1000, scoped, tag = 'input window, operand 0, single buffered']
    #allocation3 [shape = 's32[1]{0}', space=sflag, size = 0x4, scoped, tag = 'scoped memory for generator_forward.3']
    #allocation4 [shape = 's32[1]{0}', space=sflag, size = 0x4, scoped, tag = 'scoped memory for generator_forward.3']
    #allocation5 [shape = 'u8[1048576]{0}', space=vmem, size = 0x100000, scoped, tag = 'input window, operand 1, single buffered']
    #allocation6 [shape = 's32[1]{0}', space=sflag, size = 0x4, scoped, tag = 'scoped memory for generator_forward.3']
    #allocation7 [shape = 'u8[4096]{0}', space=vmem, size = 0x1000, scoped, tag = 'input window, operand 2, single buffered']
    #allocation8 [shape = 'u8[4096]{0}', space=vmem, size = 0x1000, scoped, tag = 'input window, operand 3, single buffered']
    #allocation9 [shape = 's32[1]{0}', space=sflag, size = 0x4, scoped, tag = 'scoped memory for generator_forward.3']
    #allocation10 [shape = 'u8[8192]{0}', space=vmem, size = 0x2000, scoped, tag = 'output window, operand 0, single buffered']
    %9 = vsyncpa [#allocation3], 0
    %10 = vsyncpa [#allocation6], 0
    %11 = vsyncpa [#allocation9], 0
    %12 = vsyncpa [#allocation4], 0
    // Predicated region
    $region2: #{generator_forward.3} parent=1 // pred_check
      _
    $region3: #{generator_forward.3} parent=1 // pred_check_branch
      %14 = sbr.rel (0) target = $region5
    $region4: #{generator_forward.3} parent=1 // pred_region
      %s16 = ssub.s32 128, 128
      %17 = vsyncadd [#allocation3], %s16
      %s19 = sshll.u32 [#allocation2], 4
      %s20 = int_to_ptr.vmem [resolvable:$true] %s19
      %22 = dma.hbm_to_vmem [thread:$0]  %s0, 128, %s20, [#allocation3]
    $region5: #{generator_forward.3} parent=1 // pred_fallthru
      _
    // Predicated region
    $region6: #{generator_forward.3} parent=1 // pred_check
      _
    $region7: #{generator_forward.3} parent=1 // pred_check_branch
      %24 = sbr.rel (0) target = $region9
    $region8: #{generator_forward.3} parent=1 // pred_region
      %s26 = ssub.s32 32768, 32768
      %27 = vsyncadd [#allocation6], %s26
      %s28 = sshll.u32 [#allocation5], 4
      %s29 = int_to_ptr.vmem [resolvable:$true] %s28
      %34 = dma.hbm_to_vmem [thread:$0]  %s1, 32768, %s29, [#allocation6], 1024, 1024, 64
    $region9: #{generator_forward.3} parent=1 // pred_fallthru
      _
    // Predicated region
    $region10: #{generator_forward.3} parent=1 // pred_check
      _
    $region11: #{generator_forward.3} parent=1 // pred_check_branch
      %36 = sbr.rel (0) target = $region13
    $region12: #{generator_forward.3} parent=1 // pred_region
      %s38 = ssub.s32 128, 128
      %39 = vsyncadd [#allocation6], %s38
      %s41 = sshll.u32 [#allocation7], 4
      %s42 = int_to_ptr.vmem [resolvable:$true] %s41
      %44 = dma.hbm_to_vmem [thread:$0]  %s2, 128, %s42, [#allocation6]
    $region13: #{generator_forward.3} parent=1 // pred_fallthru
      _
    // Predicated region
    $region14: #{generator_forward.3} parent=1 // pred_check
      _
    $region15: #{generator_forward.3} parent=1 // pred_check_branch
      %46 = sbr.rel (0) target = $region17
    $region16: #{generator_forward.3} parent=1 // pred_region
      %s48 = ssub.s32 128, 128
      %49 = vsyncadd [#allocation9], %s48
      %s51 = sshll.u32 [#allocation8], 4
      %s52 = int_to_ptr.vmem [resolvable:$true] %s51
      %54 = dma.hbm_to_vmem [thread:$0]  %s3, 128, %s52, [#allocation9]
    $region17: #{generator_forward.3} parent=1 // pred_fallthru
      _
    // Predicated region
    $region18: #{generator_forward.3} parent=1 // pred_check
      _
    $region19: #{generator_forward.3} parent=1 // pred_check_branch
      %56 = sbr.rel (0) target = $region21
    $region20: #{generator_forward.3} parent=1 // pred_region
      %57 = dma.done [#allocation3], 128
    $region21: #{generator_forward.3} parent=1 // pred_fallthru
      _
    // Predicated region
    $region22: #{generator_forward.3} parent=1 // pred_check
      _
    $region23: #{generator_forward.3} parent=1 // pred_check_branch
      %59 = sbr.rel (0) target = $region25
    $region24: #{generator_forward.3} parent=1 // pred_region
      %60 = dma.done [#allocation6], 32768
    $region25: #{generator_forward.3} parent=1 // pred_fallthru
      _
    // Predicated region
    $region26: #{generator_forward.3} parent=1 // pred_check
      _
    $region27: #{generator_forward.3} parent=1 // pred_check_branch
      %62 = sbr.rel (0) target = $region29
    $region28: #{generator_forward.3} parent=1 // pred_region
      %63 = dma.done [#allocation6], 128
    $region29: #{generator_forward.3} parent=1 // pred_fallthru
      _
    // Predicated region
    $region30: #{generator_forward.3} parent=1 // pred_check
      _
    $region31: #{generator_forward.3} parent=1 // pred_check_branch
      %65 = sbr.rel (0) target = $region33
    $region32: #{generator_forward.3} parent=1 // pred_region
      %66 = dma.done [#allocation9], 128
    $region33: #{generator_forward.3} parent=1 // pred_fallthru
      _
    %v67 = vld [vmem:[#allocation5] sm:$0xff]
    %v68 = vld [vmem:[#allocation5 + $0x8] sm:$0xff]
    %v69 = vld [vmem:[#allocation5 + $0x10] sm:$0xff]
    %v70 = vld [vmem:[#allocation5 + $0x18] sm:$0xff]
    %v71 = vld [vmem:[#allocation5 + $0x20] sm:$0xff]
    %v72 = vld [vmem:[#allocation5 + $0x28] sm:$0xff]
    %v73 = vld [vmem:[#allocation5 + $0x30] sm:$0xff]
    %v74 = vld [vmem:[#allocation5 + $0x38] sm:$0xff]
    %v75 = vld [vmem:[#allocation5 + $0x40] sm:$0xff]
    %v76 = vld [vmem:[#allocation5 + $0x48] sm:$0xff]
    %v77 = vld [vmem:[#allocation5 + $0x50] sm:$0xff]
    %v78 = vld [vmem:[#allocation5 + $0x58] sm:$0xff]
    %v79 = vld [vmem:[#allocation5 + $0x60] sm:$0xff]
    %v80 = vld [vmem:[#allocation5 + $0x68] sm:$0xff]
    %v81 = vld [vmem:[#allocation5 + $0x70] sm:$0xff]
    %v82 = vld [vmem:[#allocation5 + $0x78] sm:$0xff]
    %v83 = vld [vmem:[#allocation5 + $0x80] sm:$0xff]
    %v84 = vld [vmem:[#allocation5 + $0x88] sm:$0xff]
    %v85 = vld [vmem:[#allocation5 + $0x90] sm:$0xff]
    %v86 = vld [vmem:[#allocation5 + $0x98] sm:$0xff]
    %v87 = vld [vmem:[#allocation5 + $0xa0] sm:$0xff]
    %v88 = vld [vmem:[#allocation5 + $0xa8] sm:$0xff]
    %v89 = vld [vmem:[#allocation5 + $0xb0] sm:$0xff]
    %v90 = vld [vmem:[#allocation5 + $0xb8] sm:$0xff]
    %v91 = vld [vmem:[#allocation5 + $0xc0] sm:$0xff]
    %v92 = vld [vmem:[#allocation5 + $0xc8] sm:$0xff]
    %v93 = vld [vmem:[#allocation5 + $0xd0] sm:$0xff]
    %v94 = vld [vmem:[#allocation5 + $0xd8] sm:$0xff]
    %v95 = vld [vmem:[#allocation5 + $0xe0] sm:$0xff]
    %v96 = vld [vmem:[#allocation5 + $0xe8] sm:$0xff]
    %v97 = vld [vmem:[#allocation5 + $0xf0] sm:$0xff]
    %v98 = vld [vmem:[#allocation5 + $0xf8] sm:$0xff]
    %v99 = vld [vmem:[#allocation5 + $0x100] sm:$0xff]
    %v100 = vld [vmem:[#allocation5 + $0x108] sm:$0xff]
    %v101 = vld [vmem:[#allocation5 + $0x110] sm:$0xff]
    %v102 = vld [vmem:[#allocation5 + $0x118] sm:$0xff]
    %v103 = vld [vmem:[#allocation5 + $0x120] sm:$0xff]
    %v104 = vld [vmem:[#allocation5 + $0x128] sm:$0xff]
    %v105 = vld [vmem:[#allocation5 + $0x130] sm:$0xff]
    %v106 = vld [vmem:[#allocation5 + $0x138] sm:$0xff]
    %v107 = vld [vmem:[#allocation5 + $0x140] sm:$0xff]
    %v108 = vld [vmem:[#allocation5 + $0x148] sm:$0xff]
    %v109 = vld [vmem:[#allocation5 + $0x150] sm:$0xff]
    %v110 = vld [vmem:[#allocation5 + $0x158] sm:$0xff]
    %v111 = vld [vmem:[#allocation5 + $0x160] sm:$0xff]
    %v112 = vld [vmem:[#allocation5 + $0x168] sm:$0xff]
    %v113 = vld [vmem:[#allocation5 + $0x170] sm:$0xff]
    %v114 = vld [vmem:[#allocation5 + $0x178] sm:$0xff]
    %v115 = vld [vmem:[#allocation5 + $0x180] sm:$0xff]
    %v116 = vld [vmem:[#allocation5 + $0x188] sm:$0xff]
    %v117 = vld [vmem:[#allocation5 + $0x190] sm:$0xff]
    %v118 = vld [vmem:[#allocation5 + $0x198] sm:$0xff]
    %v119 = vld [vmem:[#allocation5 + $0x1a0] sm:$0xff]
    %v120 = vld [vmem:[#allocation5 + $0x1a8] sm:$0xff]
    %v121 = vld [vmem:[#allocation5 + $0x1b0] sm:$0xff]
    %v122 = vld [vmem:[#allocation5 + $0x1b8] sm:$0xff]
    %v123 = vld [vmem:[#allocation5 + $0x1c0] sm:$0xff]
    %v124 = vld [vmem:[#allocation5 + $0x1c8] sm:$0xff]
    %v125 = vld [vmem:[#allocation5 + $0x1d0] sm:$0xff]
    %v126 = vld [vmem:[#allocation5 + $0x1d8] sm:$0xff]
    %v127 = vld [vmem:[#allocation5 + $0x1e0] sm:$0xff]
    %v128 = vld [vmem:[#allocation5 + $0x1e8] sm:$0xff]
    %v129 = vld [vmem:[#allocation5 + $0x1f0] sm:$0xff]
    %v130 = vld [vmem:[#allocation5 + $0x1f8] sm:$0xff]
    %v131 = vld [vmem:[#allocation5 + $0x200] sm:$0xff]
    %v132 = vld [vmem:[#allocation5 + $0x208] sm:$0xff]
    %v133 = vld [vmem:[#allocation5 + $0x210] sm:$0xff]
    %v134 = vld [vmem:[#allocation5 + $0x218] sm:$0xff]
    %v135 = vld [vmem:[#allocation5 + $0x220] sm:$0xff]
    %v136 = vld [vmem:[#allocation5 + $0x228] sm:$0xff]
    %v137 = vld [vmem:[#allocation5 + $0x230] sm:$0xff]
    %v138 = vld [vmem:[#allocation5 + $0x238] sm:$0xff]
    %v139 = vld [vmem:[#allocation5 + $0x240] sm:$0xff]
    %v140 = vld [vmem:[#allocation5 + $0x248] sm:$0xff]
    %v141 = vld [vmem:[#allocation5 + $0x250] sm:$0xff]
    %v142 = vld [vmem:[#allocation5 + $0x258] sm:$0xff]
    %v143 = vld [vmem:[#allocation5 + $0x260] sm:$0xff]
    %v144 = vld [vmem:[#allocation5 + $0x268] sm:$0xff]
    %v145 = vld [vmem:[#allocation5 + $0x270] sm:$0xff]
    %v146 = vld [vmem:[#allocation5 + $0x278] sm:$0xff]
    %v147 = vld [vmem:[#allocation5 + $0x280] sm:$0xff]
    %v148 = vld [vmem:[#allocation5 + $0x288] sm:$0xff]
    %v149 = vld [vmem:[#allocation5 + $0x290] sm:$0xff]
    %v150 = vld [vmem:[#allocation5 + $0x298] sm:$0xff]
    %v151 = vld [vmem:[#allocation5 + $0x2a0] sm:$0xff]
    %v152 = vld [vmem:[#allocation5 + $0x2a8] sm:$0xff]
    %v153 = vld [vmem:[#allocation5 + $0x2b0] sm:$0xff]
    %v154 = vld [vmem:[#allocation5 + $0x2b8] sm:$0xff]
    %v155 = vld [vmem:[#allocation5 + $0x2c0] sm:$0xff]
    %v156 = vld [vmem:[#allocation5 + $0x2c8] sm:$0xff]
    %v157 = vld [vmem:[#allocation5 + $0x2d0] sm:$0xff]
    %v158 = vld [vmem:[#allocation5 + $0x2d8] sm:$0xff]
    %v159 = vld [vmem:[#allocation5 + $0x2e0] sm:$0xff]
    %v160 = vld [vmem:[#allocation5 + $0x2e8] sm:$0xff]
    %v161 = vld [vmem:[#allocation5 + $0x2f0] sm:$0xff]
    %v162 = vld [vmem:[#allocation5 + $0x2f8] sm:$0xff]
    %v163 = vld [vmem:[#allocation5 + $0x300] sm:$0xff]
    %v164 = vld [vmem:[#allocation5 + $0x308] sm:$0xff]
    %v165 = vld [vmem:[#allocation5 + $0x310] sm:$0xff]
    %v166 = vld [vmem:[#allocation5 + $0x318] sm:$0xff]
    %v167 = vld [vmem:[#allocation5 + $0x320] sm:$0xff]
    %v168 = vld [vmem:[#allocation5 + $0x328] sm:$0xff]
    %v169 = vld [vmem:[#allocation5 + $0x330] sm:$0xff]
    %v170 = vld [vmem:[#allocation5 + $0x338] sm:$0xff]
    %v171 = vld [vmem:[#allocation5 + $0x340] sm:$0xff]
    %v172 = vld [vmem:[#allocation5 + $0x348] sm:$0xff]
    %v173 = vld [vmem:[#allocation5 + $0x350] sm:$0xff]
    %v174 = vld [vmem:[#allocation5 + $0x358] sm:$0xff]
    %v175 = vld [vmem:[#allocation5 + $0x360] sm:$0xff]
    %v176 = vld [vmem:[#allocation5 + $0x368] sm:$0xff]
    %v177 = vld [vmem:[#allocation5 + $0x370] sm:$0xff]
    %v178 = vld [vmem:[#allocation5 + $0x378] sm:$0xff]
    %v179 = vld [vmem:[#allocation5 + $0x380] sm:$0xff]
    %v180 = vld [vmem:[#allocation5 + $0x388] sm:$0xff]
    %v181 = vld [vmem:[#allocation5 + $0x390] sm:$0xff]
    %v182 = vld [vmem:[#allocation5 + $0x398] sm:$0xff]
    %v183 = vld [vmem:[#allocation5 + $0x3a0] sm:$0xff]
    %v184 = vld [vmem:[#allocation5 + $0x3a8] sm:$0xff]
    %v185 = vld [vmem:[#allocation5 + $0x3b0] sm:$0xff]
    %v186 = vld [vmem:[#allocation5 + $0x3b8] sm:$0xff]
    %v187 = vld [vmem:[#allocation5 + $0x3c0] sm:$0xff]
    %v188 = vld [vmem:[#allocation5 + $0x3c8] sm:$0xff]
    %v189 = vld [vmem:[#allocation5 + $0x3d0] sm:$0xff]
    %v190 = vld [vmem:[#allocation5 + $0x3d8] sm:$0xff]
    %v191 = vld [vmem:[#allocation5 + $0x3e0] sm:$0xff]
    %v192 = vld [vmem:[#allocation5 + $0x3e8] sm:$0xff]
    %v193 = vld [vmem:[#allocation5 + $0x3f0] sm:$0xff]
    %v194 = vld [vmem:[#allocation5 + $0x3f8] sm:$0xff]
    %v195 = vld [vmem:[#allocation5 + $0x400] sm:$0xff]
    %v196 = vld [vmem:[#allocation5 + $0x408] sm:$0xff]
    %v197 = vld [vmem:[#allocation5 + $0x410] sm:$0xff]
    %v198 = vld [vmem:[#allocation5 + $0x418] sm:$0xff]
    %v199 = vld [vmem:[#allocation5 + $0x420] sm:$0xff]
    %v200 = vld [vmem:[#allocation5 + $0x428] sm:$0xff]
    %v201 = vld [vmem:[#allocation5 + $0x430] sm:$0xff]
    %v202 = vld [vmem:[#allocation5 + $0x438] sm:$0xff]
    %v203 = vld [vmem:[#allocation5 + $0x440] sm:$0xff]
    %v204 = vld [vmem:[#allocation5 + $0x448] sm:$0xff]
    %v205 = vld [vmem:[#allocation5 + $0x450] sm:$0xff]
    %v206 = vld [vmem:[#allocation5 + $0x458] sm:$0xff]
    %v207 = vld [vmem:[#allocation5 + $0x460] sm:$0xff]
    %v208 = vld [vmem:[#allocation5 + $0x468] sm:$0xff]
    %v209 = vld [vmem:[#allocation5 + $0x470] sm:$0xff]
    %v210 = vld [vmem:[#allocation5 + $0x478] sm:$0xff]
    %v211 = vld [vmem:[#allocation5 + $0x480] sm:$0xff]
    %v212 = vld [vmem:[#allocation5 + $0x488] sm:$0xff]
    %v213 = vld [vmem:[#allocation5 + $0x490] sm:$0xff]
    %v214 = vld [vmem:[#allocation5 + $0x498] sm:$0xff]
    %v215 = vld [vmem:[#allocation5 + $0x4a0] sm:$0xff]
    %v216 = vld [vmem:[#allocation5 + $0x4a8] sm:$0xff]
    %v217 = vld [vmem:[#allocation5 + $0x4b0] sm:$0xff]
    %v218 = vld [vmem:[#allocation5 + $0x4b8] sm:$0xff]
    %v219 = vld [vmem:[#allocation5 + $0x4c0] sm:$0xff]
    %v220 = vld [vmem:[#allocation5 + $0x4c8] sm:$0xff]
    %v221 = vld [vmem:[#allocation5 + $0x4d0] sm:$0xff]
    %v222 = vld [vmem:[#allocation5 + $0x4d8] sm:$0xff]
    %v223 = vld [vmem:[#allocation5 + $0x4e0] sm:$0xff]
    %v224 = vld [vmem:[#allocation5 + $0x4e8] sm:$0xff]
    %v225 = vld [vmem:[#allocation5 + $0x4f0] sm:$0xff]
    %v226 = vld [vmem:[#allocation5 + $0x4f8] sm:$0xff]
    %v227 = vld [vmem:[#allocation5 + $0x500] sm:$0xff]
    %v228 = vld [vmem:[#allocation5 + $0x508] sm:$0xff]
    %v229 = vld [vmem:[#allocation5 + $0x510] sm:$0xff]
    %v230 = vld [vmem:[#allocation5 + $0x518] sm:$0xff]
    %v231 = vld [vmem:[#allocation5 + $0x520] sm:$0xff]
    %v232 = vld [vmem:[#allocation5 + $0x528] sm:$0xff]
    %v233 = vld [vmem:[#allocation5 + $0x530] sm:$0xff]
    %v234 = vld [vmem:[#allocation5 + $0x538] sm:$0xff]
    %v235 = vld [vmem:[#allocation5 + $0x540] sm:$0xff]
    %v236 = vld [vmem:[#allocation5 + $0x548] sm:$0xff]
    %v237 = vld [vmem:[#allocation5 + $0x550] sm:$0xff]
    %v238 = vld [vmem:[#allocation5 + $0x558] sm:$0xff]
    %v239 = vld [vmem:[#allocation5 + $0x560] sm:$0xff]
    %v240 = vld [vmem:[#allocation5 + $0x568] sm:$0xff]
    %v241 = vld [vmem:[#allocation5 + $0x570] sm:$0xff]
    %v242 = vld [vmem:[#allocation5 + $0x578] sm:$0xff]
    %v243 = vld [vmem:[#allocation5 + $0x580] sm:$0xff]
    %v244 = vld [vmem:[#allocation5 + $0x588] sm:$0xff]
    %v245 = vld [vmem:[#allocation5 + $0x590] sm:$0xff]
    %v246 = vld [vmem:[#allocation5 + $0x598] sm:$0xff]
    %v247 = vld [vmem:[#allocation5 + $0x5a0] sm:$0xff]
    %v248 = vld [vmem:[#allocation5 + $0x5a8] sm:$0xff]
    %v249 = vld [vmem:[#allocation5 + $0x5b0] sm:$0xff]
    %v250 = vld [vmem:[#allocation5 + $0x5b8] sm:$0xff]
    %v251 = vld [vmem:[#allocation5 + $0x5c0] sm:$0xff]
    %v252 = vld [vmem:[#allocation5 + $0x5c8] sm:$0xff]
    %v253 = vld [vmem:[#allocation5 + $0x5d0] sm:$0xff]
    %v254 = vld [vmem:[#allocation5 + $0x5d8] sm:$0xff]
    %v255 = vld [vmem:[#allocation5 + $0x5e0] sm:$0xff]
    %v256 = vld [vmem:[#allocation5 + $0x5e8] sm:$0xff]
    %v257 = vld [vmem:[#allocation5 + $0x5f0] sm:$0xff]
    %v258 = vld [vmem:[#allocation5 + $0x5f8] sm:$0xff]
    %v259 = vld [vmem:[#allocation5 + $0x600] sm:$0xff]
    %v260 = vld [vmem:[#allocation5 + $0x608] sm:$0xff]
    %v261 = vld [vmem:[#allocation5 + $0x610] sm:$0xff]
    %v262 = vld [vmem:[#allocation5 + $0x618] sm:$0xff]
    %v263 = vld [vmem:[#allocation5 + $0x620] sm:$0xff]
    %v264 = vld [vmem:[#allocation5 + $0x628] sm:$0xff]
    %v265 = vld [vmem:[#allocation5 + $0x630] sm:$0xff]
    %v266 = vld [vmem:[#allocation5 + $0x638] sm:$0xff]
    %v267 = vld [vmem:[#allocation5 + $0x640] sm:$0xff]
    %v268 = vld [vmem:[#allocation5 + $0x648] sm:$0xff]
    %v269 = vld [vmem:[#allocation5 + $0x650] sm:$0xff]
    %v270 = vld [vmem:[#allocation5 + $0x658] sm:$0xff]
    %v271 = vld [vmem:[#allocation5 + $0x660] sm:$0xff]
    %v272 = vld [vmem:[#allocation5 + $0x668] sm:$0xff]
    %v273 = vld [vmem:[#allocation5 + $0x670] sm:$0xff]
    %v274 = vld [vmem:[#allocation5 + $0x678] sm:$0xff]
    %v275 = vld [vmem:[#allocation5 + $0x680] sm:$0xff]
    %v276 = vld [vmem:[#allocation5 + $0x688] sm:$0xff]
    %v277 = vld [vmem:[#allocation5 + $0x690] sm:$0xff]
    %v278 = vld [vmem:[#allocation5 + $0x698] sm:$0xff]
    %v279 = vld [vmem:[#allocation5 + $0x6a0] sm:$0xff]
    %v280 = vld [vmem:[#allocation5 + $0x6a8] sm:$0xff]
    %v281 = vld [vmem:[#allocation5 + $0x6b0] sm:$0xff]
    %v282 = vld [vmem:[#allocation5 + $0x6b8] sm:$0xff]
    %v283 = vld [vmem:[#allocation5 + $0x6c0] sm:$0xff]
    %v284 = vld [vmem:[#allocation5 + $0x6c8] sm:$0xff]
    %v285 = vld [vmem:[#allocation5 + $0x6d0] sm:$0xff]
    %v286 = vld [vmem:[#allocation5 + $0x6d8] sm:$0xff]
    %v287 = vld [vmem:[#allocation5 + $0x6e0] sm:$0xff]
    %v288 = vld [vmem:[#allocation5 + $0x6e8] sm:$0xff]
    %v289 = vld [vmem:[#allocation5 + $0x6f0] sm:$0xff]
    %v290 = vld [vmem:[#allocation5 + $0x6f8] sm:$0xff]
    %v291 = vld [vmem:[#allocation5 + $0x700] sm:$0xff]
    %v292 = vld [vmem:[#allocation5 + $0x708] sm:$0xff]
    %v293 = vld [vmem:[#allocation5 + $0x710] sm:$0xff]
    %v294 = vld [vmem:[#allocation5 + $0x718] sm:$0xff]
    %v295 = vld [vmem:[#allocation5 + $0x720] sm:$0xff]
    %v296 = vld [vmem:[#allocation5 + $0x728] sm:$0xff]
    %v297 = vld [vmem:[#allocation5 + $0x730] sm:$0xff]
    %v298 = vld [vmem:[#allocation5 + $0x738] sm:$0xff]
    %v299 = vld [vmem:[#allocation5 + $0x740] sm:$0xff]
    %v300 = vld [vmem:[#allocation5 + $0x748] sm:$0xff]
    %v301 = vld [vmem:[#allocation5 + $0x750] sm:$0xff]
    %v302 = vld [vmem:[#allocation5 + $0x758] sm:$0xff]
    %v303 = vld [vmem:[#allocation5 + $0x760] sm:$0xff]
    %v304 = vld [vmem:[#allocation5 + $0x768] sm:$0xff]
    %v305 = vld [vmem:[#allocation5 + $0x770] sm:$0xff]
    %v306 = vld [vmem:[#allocation5 + $0x778] sm:$0xff]
    %v307 = vld [vmem:[#allocation5 + $0x780] sm:$0xff]
    %v308 = vld [vmem:[#allocation5 + $0x788] sm:$0xff]
    %v309 = vld [vmem:[#allocation5 + $0x790] sm:$0xff]
    %v310 = vld [vmem:[#allocation5 + $0x798] sm:$0xff]
    %v311 = vld [vmem:[#allocation5 + $0x7a0] sm:$0xff]
    %v312 = vld [vmem:[#allocation5 + $0x7a8] sm:$0xff]
    %v313 = vld [vmem:[#allocation5 + $0x7b0] sm:$0xff]
    %v314 = vld [vmem:[#allocation5 + $0x7b8] sm:$0xff]
    %v315 = vld [vmem:[#allocation5 + $0x7c0] sm:$0xff]
    %v316 = vld [vmem:[#allocation5 + $0x7c8] sm:$0xff]
    %v317 = vld [vmem:[#allocation5 + $0x7d0] sm:$0xff]
    %v318 = vld [vmem:[#allocation5 + $0x7d8] sm:$0xff]
    %v319 = vld [vmem:[#allocation5 + $0x7e0] sm:$0xff]
    %v320 = vld [vmem:[#allocation5 + $0x7e8] sm:$0xff]
    %v321 = vld [vmem:[#allocation5 + $0x7f0] sm:$0xff]
    %v322 = vld [vmem:[#allocation5 + $0x7f8] sm:$0xff]
    %v323 = vunpack.c.l.s8.bf16 %v67
    %v324 = vunpack.c.l.s8.bf16 %v68
    %v325 = vunpack.c.l.s8.bf16 %v69
    %v326 = vunpack.c.l.s8.bf16 %v70
    %v327 = vunpack.c.l.s8.bf16 %v71
    %v328 = vunpack.c.l.s8.bf16 %v72
    %v329 = vunpack.c.l.s8.bf16 %v73
    %v330 = vunpack.c.l.s8.bf16 %v74
    %v331 = vunpack.c.h.s8.bf16 %v67
    %v332 = vunpack.c.h.s8.bf16 %v68
    %v333 = vunpack.c.h.s8.bf16 %v69
    %v334 = vunpack.c.h.s8.bf16 %v70
    %v335 = vunpack.c.h.s8.bf16 %v71
    %v336 = vunpack.c.h.s8.bf16 %v72
    %v337 = vunpack.c.h.s8.bf16 %v73
    %v338 = vunpack.c.h.s8.bf16 %v74
    %v339 = vunpack.c.l.s8.bf16 %v75
    %v340 = vunpack.c.l.s8.bf16 %v76
    %v341 = vunpack.c.l.s8.bf16 %v77
    %v342 = vunpack.c.l.s8.bf16 %v78
    %v343 = vunpack.c.l.s8.bf16 %v79
    %v344 = vunpack.c.l.s8.bf16 %v80
    %v345 = vunpack.c.l.s8.bf16 %v81
    %v346 = vunpack.c.l.s8.bf16 %v82
    %v347 = vunpack.c.h.s8.bf16 %v75
    %v348 = vunpack.c.h.s8.bf16 %v76
    %v349 = vunpack.c.h.s8.bf16 %v77
    %v350 = vunpack.c.h.s8.bf16 %v78
    %v351 = vunpack.c.h.s8.bf16 %v79
    %v352 = vunpack.c.h.s8.bf16 %v80
    %v353 = vunpack.c.h.s8.bf16 %v81
    %v354 = vunpack.c.h.s8.bf16 %v82
    %v355 = vunpack.c.l.s8.bf16 %v83
    %v356 = vunpack.c.l.s8.bf16 %v84
    %v357 = vunpack.c.l.s8.bf16 %v85
    %v358 = vunpack.c.l.s8.bf16 %v86
    %v359 = vunpack.c.l.s8.bf16 %v87
    %v360 = vunpack.c.l.s8.bf16 %v88
    %v361 = vunpack.c.l.s8.bf16 %v89
    %v362 = vunpack.c.l.s8.bf16 %v90
    %v363 = vunpack.c.h.s8.bf16 %v83
    %v364 = vunpack.c.h.s8.bf16 %v84
    %v365 = vunpack.c.h.s8.bf16 %v85
    %v366 = vunpack.c.h.s8.bf16 %v86
    %v367 = vunpack.c.h.s8.bf16 %v87
    %v368 = vunpack.c.h.s8.bf16 %v88
    %v369 = vunpack.c.h.s8.bf16 %v89
    %v370 = vunpack.c.h.s8.bf16 %v90
    %v371 = vunpack.c.l.s8.bf16 %v91
    %v372 = vunpack.c.l.s8.bf16 %v92
    %v373 = vunpack.c.l.s8.bf16 %v93
    %v374 = vunpack.c.l.s8.bf16 %v94
    %v375 = vunpack.c.l.s8.bf16 %v95
    %v376 = vunpack.c.l.s8.bf16 %v96
    %v377 = vunpack.c.l.s8.bf16 %v97
    %v378 = vunpack.c.l.s8.bf16 %v98
    %v379 = vunpack.c.h.s8.bf16 %v91
    %v380 = vunpack.c.h.s8.bf16 %v92
    %v381 = vunpack.c.h.s8.bf16 %v93
    %v382 = vunpack.c.h.s8.bf16 %v94
    %v383 = vunpack.c.h.s8.bf16 %v95
    %v384 = vunpack.c.h.s8.bf16 %v96
    %v385 = vunpack.c.h.s8.bf16 %v97
    %v386 = vunpack.c.h.s8.bf16 %v98
    %v387 = vunpack.c.l.s8.bf16 %v99
    %v388 = vunpack.c.l.s8.bf16 %v100
    %v389 = vunpack.c.l.s8.bf16 %v101
    %v390 = vunpack.c.l.s8.bf16 %v102
    %v391 = vunpack.c.l.s8.bf16 %v103
    %v392 = vunpack.c.l.s8.bf16 %v104
    %v393 = vunpack.c.l.s8.bf16 %v105
    %v394 = vunpack.c.l.s8.bf16 %v106
    %v395 = vunpack.c.h.s8.bf16 %v99
    %v396 = vunpack.c.h.s8.bf16 %v100
    %v397 = vunpack.c.h.s8.bf16 %v101
    %v398 = vunpack.c.h.s8.bf16 %v102
    %v399 = vunpack.c.h.s8.bf16 %v103
    %v400 = vunpack.c.h.s8.bf16 %v104
    %v401 = vunpack.c.h.s8.bf16 %v105
    %v402 = vunpack.c.h.s8.bf16 %v106
    %v403 = vunpack.c.l.s8.bf16 %v107
    %v404 = vunpack.c.l.s8.bf16 %v108
    %v405 = vunpack.c.l.s8.bf16 %v109
    %v406 = vunpack.c.l.s8.bf16 %v110
    %v407 = vunpack.c.l.s8.bf16 %v111
    %v408 = vunpack.c.l.s8.bf16 %v112
    %v409 = vunpack.c.l.s8.bf16 %v113
    %v410 = vunpack.c.l.s8.bf16 %v114
    %v411 = vunpack.c.h.s8.bf16 %v107
    %v412 = vunpack.c.h.s8.bf16 %v108
    %v413 = vunpack.c.h.s8.bf16 %v109
    %v414 = vunpack.c.h.s8.bf16 %v110
    %v415 = vunpack.c.h.s8.bf16 %v111
    %v416 = vunpack.c.h.s8.bf16 %v112
    %v417 = vunpack.c.h.s8.bf16 %v113
    %v418 = vunpack.c.h.s8.bf16 %v114
    %v419 = vunpack.c.l.s8.bf16 %v115
    %v420 = vunpack.c.l.s8.bf16 %v116
    %v421 = vunpack.c.l.s8.bf16 %v117
    %v422 = vunpack.c.l.s8.bf16 %v118
    %v423 = vunpack.c.l.s8.bf16 %v119
    %v424 = vunpack.c.l.s8.bf16 %v120
    %v425 = vunpack.c.l.s8.bf16 %v121
    %v426 = vunpack.c.l.s8.bf16 %v122
    %v427 = vunpack.c.h.s8.bf16 %v115
    %v428 = vunpack.c.h.s8.bf16 %v116
    %v429 = vunpack.c.h.s8.bf16 %v117
    %v430 = vunpack.c.h.s8.bf16 %v118
    %v431 = vunpack.c.h.s8.bf16 %v119
    %v432 = vunpack.c.h.s8.bf16 %v120
    %v433 = vunpack.c.h.s8.bf16 %v121
    %v434 = vunpack.c.h.s8.bf16 %v122
    %v435 = vunpack.c.l.s8.bf16 %v123
    %v436 = vunpack.c.l.s8.bf16 %v124
    %v437 = vunpack.c.l.s8.bf16 %v125
    %v438 = vunpack.c.l.s8.bf16 %v126
    %v439 = vunpack.c.l.s8.bf16 %v127
    %v440 = vunpack.c.l.s8.bf16 %v128
    %v441 = vunpack.c.l.s8.bf16 %v129
    %v442 = vunpack.c.l.s8.bf16 %v130
    %v443 = vunpack.c.h.s8.bf16 %v123
    %v444 = vunpack.c.h.s8.bf16 %v124
    %v445 = vunpack.c.h.s8.bf16 %v125
    %v446 = vunpack.c.h.s8.bf16 %v126
    %v447 = vunpack.c.h.s8.bf16 %v127
    %v448 = vunpack.c.h.s8.bf16 %v128
    %v449 = vunpack.c.h.s8.bf16 %v129
    %v450 = vunpack.c.h.s8.bf16 %v130
    %v451 = vunpack.c.l.s8.bf16 %v131
    %v452 = vunpack.c.l.s8.bf16 %v132
    %v453 = vunpack.c.l.s8.bf16 %v133
    %v454 = vunpack.c.l.s8.bf16 %v134
    %v455 = vunpack.c.l.s8.bf16 %v135
    %v456 = vunpack.c.l.s8.bf16 %v136
    %v457 = vunpack.c.l.s8.bf16 %v137
    %v458 = vunpack.c.l.s8.bf16 %v138
    %v459 = vunpack.c.h.s8.bf16 %v131
    %v460 = vunpack.c.h.s8.bf16 %v132
    %v461 = vunpack.c.h.s8.bf16 %v133
    %v462 = vunpack.c.h.s8.bf16 %v134
    %v463 = vunpack.c.h.s8.bf16 %v135
    %v464 = vunpack.c.h.s8.bf16 %v136
    %v465 = vunpack.c.h.s8.bf16 %v137
    %v466 = vunpack.c.h.s8.bf16 %v138
    %v467 = vunpack.c.l.s8.bf16 %v139
    %v468 = vunpack.c.l.s8.bf16 %v140
    %v469 = vunpack.c.l.s8.bf16 %v141
    %v470 = vunpack.c.l.s8.bf16 %v142
    %v471 = vunpack.c.l.s8.bf16 %v143
    %v472 = vunpack.c.l.s8.bf16 %v144
    %v473 = vunpack.c.l.s8.bf16 %v145
    %v474 = vunpack.c.l.s8.bf16 %v146
    %v475 = vunpack.c.h.s8.bf16 %v139
    %v476 = vunpack.c.h.s8.bf16 %v140
    %v477 = vunpack.c.h.s8.bf16 %v141
    %v478 = vunpack.c.h.s8.bf16 %v142
    %v479 = vunpack.c.h.s8.bf16 %v143
    %v480 = vunpack.c.h.s8.bf16 %v144
    %v481 = vunpack.c.h.s8.bf16 %v145
    %v482 = vunpack.c.h.s8.bf16 %v146
    %v483 = vunpack.c.l.s8.bf16 %v147
    %v484 = vunpack.c.l.s8.bf16 %v148
    %v485 = vunpack.c.l.s8.bf16 %v149
    %v486 = vunpack.c.l.s8.bf16 %v150
    %v487 = vunpack.c.l.s8.bf16 %v151
    %v488 = vunpack.c.l.s8.bf16 %v152
    %v489 = vunpack.c.l.s8.bf16 %v153
    %v490 = vunpack.c.l.s8.bf16 %v154
    %v491 = vunpack.c.h.s8.bf16 %v147
    %v492 = vunpack.c.h.s8.bf16 %v148
    %v493 = vunpack.c.h.s8.bf16 %v149
    %v494 = vunpack.c.h.s8.bf16 %v150
    %v495 = vunpack.c.h.s8.bf16 %v151
    %v496 = vunpack.c.h.s8.bf16 %v152
    %v497 = vunpack.c.h.s8.bf16 %v153
    %v498 = vunpack.c.h.s8.bf16 %v154
    %v499 = vunpack.c.l.s8.bf16 %v155
    %v500 = vunpack.c.l.s8.bf16 %v156
    %v501 = vunpack.c.l.s8.bf16 %v157
    %v502 = vunpack.c.l.s8.bf16 %v158
    %v503 = vunpack.c.l.s8.bf16 %v159
    %v504 = vunpack.c.l.s8.bf16 %v160
    %v505 = vunpack.c.l.s8.bf16 %v161
    %v506 = vunpack.c.l.s8.bf16 %v162
    %v507 = vunpack.c.h.s8.bf16 %v155
    %v508 = vunpack.c.h.s8.bf16 %v156
    %v509 = vunpack.c.h.s8.bf16 %v157
    %v510 = vunpack.c.h.s8.bf16 %v158
    %v511 = vunpack.c.h.s8.bf16 %v159
    %v512 = vunpack.c.h.s8.bf16 %v160
    %v513 = vunpack.c.h.s8.bf16 %v161
    %v514 = vunpack.c.h.s8.bf16 %v162
    %v515 = vunpack.c.l.s8.bf16 %v163
    %v516 = vunpack.c.l.s8.bf16 %v164
    %v517 = vunpack.c.l.s8.bf16 %v165
    %v518 = vunpack.c.l.s8.bf16 %v166
    %v519 = vunpack.c.l.s8.bf16 %v167
    %v520 = vunpack.c.l.s8.bf16 %v168
    %v521 = vunpack.c.l.s8.bf16 %v169
    %v522 = vunpack.c.l.s8.bf16 %v170
    %v523 = vunpack.c.h.s8.bf16 %v163
    %v524 = vunpack.c.h.s8.bf16 %v164
    %v525 = vunpack.c.h.s8.bf16 %v165
    %v526 = vunpack.c.h.s8.bf16 %v166
    %v527 = vunpack.c.h.s8.bf16 %v167
    %v528 = vunpack.c.h.s8.bf16 %v168
    %v529 = vunpack.c.h.s8.bf16 %v169
    %v530 = vunpack.c.h.s8.bf16 %v170
    %v531 = vunpack.c.l.s8.bf16 %v171
    %v532 = vunpack.c.l.s8.bf16 %v172
    %v533 = vunpack.c.l.s8.bf16 %v173
    %v534 = vunpack.c.l.s8.bf16 %v174
    %v535 = vunpack.c.l.s8.bf16 %v175
    %v536 = vunpack.c.l.s8.bf16 %v176
    %v537 = vunpack.c.l.s8.bf16 %v177
    %v538 = vunpack.c.l.s8.bf16 %v178
    %v539 = vunpack.c.h.s8.bf16 %v171
    %v540 = vunpack.c.h.s8.bf16 %v172
    %v541 = vunpack.c.h.s8.bf16 %v173
    %v542 = vunpack.c.h.s8.bf16 %v174
    %v543 = vunpack.c.h.s8.bf16 %v175
    %v544 = vunpack.c.h.s8.bf16 %v176
    %v545 = vunpack.c.h.s8.bf16 %v177
    %v546 = vunpack.c.h.s8.bf16 %v178
    %v547 = vunpack.c.l.s8.bf16 %v179
    %v548 = vunpack.c.l.s8.bf16 %v180
    %v549 = vunpack.c.l.s8.bf16 %v181
    %v550 = vunpack.c.l.s8.bf16 %v182
    %v551 = vunpack.c.l.s8.bf16 %v183
    %v552 = vunpack.c.l.s8.bf16 %v184
    %v553 = vunpack.c.l.s8.bf16 %v185
    %v554 = vunpack.c.l.s8.bf16 %v186
    %v555 = vunpack.c.h.s8.bf16 %v179
    %v556 = vunpack.c.h.s8.bf16 %v180
    %v557 = vunpack.c.h.s8.bf16 %v181
    %v558 = vunpack.c.h.s8.bf16 %v182
    %v559 = vunpack.c.h.s8.bf16 %v183
    %v560 = vunpack.c.h.s8.bf16 %v184
    %v561 = vunpack.c.h.s8.bf16 %v185
    %v562 = vunpack.c.h.s8.bf16 %v186
    %v563 = vunpack.c.l.s8.bf16 %v187
    %v564 = vunpack.c.l.s8.bf16 %v188
    %v565 = vunpack.c.l.s8.bf16 %v189
    %v566 = vunpack.c.l.s8.bf16 %v190
    %v567 = vunpack.c.l.s8.bf16 %v191
    %v568 = vunpack.c.l.s8.bf16 %v192
    %v569 = vunpack.c.l.s8.bf16 %v193
    %v570 = vunpack.c.l.s8.bf16 %v194
    %v571 = vunpack.c.h.s8.bf16 %v187
    %v572 = vunpack.c.h.s8.bf16 %v188
    %v573 = vunpack.c.h.s8.bf16 %v189
    %v574 = vunpack.c.h.s8.bf16 %v190
    %v575 = vunpack.c.h.s8.bf16 %v191
    %v576 = vunpack.c.h.s8.bf16 %v192
    %v577 = vunpack.c.h.s8.bf16 %v193
    %v578 = vunpack.c.h.s8.bf16 %v194
    %v579 = vunpack.c.l.s8.bf16 %v195
    %v580 = vunpack.c.l.s8.bf16 %v196
    %v581 = vunpack.c.l.s8.bf16 %v197
    %v582 = vunpack.c.l.s8.bf16 %v198
    %v583 = vunpack.c.l.s8.bf16 %v199
    %v584 = vunpack.c.l.s8.bf16 %v200
    %v585 = vunpack.c.l.s8.bf16 %v201
    %v586 = vunpack.c.l.s8.bf16 %v202
    %v587 = vunpack.c.h.s8.bf16 %v195
    %v588 = vunpack.c.h.s8.bf16 %v196
    %v589 = vunpack.c.h.s8.bf16 %v197
    %v590 = vunpack.c.h.s8.bf16 %v198
    %v591 = vunpack.c.h.s8.bf16 %v199
    %v592 = vunpack.c.h.s8.bf16 %v200
    %v593 = vunpack.c.h.s8.bf16 %v201
    %v594 = vunpack.c.h.s8.bf16 %v202
    %v595 = vunpack.c.l.s8.bf16 %v203
    %v596 = vunpack.c.l.s8.bf16 %v204
    %v597 = vunpack.c.l.s8.bf16 %v205
    %v598 = vunpack.c.l.s8.bf16 %v206
    %v599 = vunpack.c.l.s8.bf16 %v207
    %v600 = vunpack.c.l.s8.bf16 %v208
    %v601 = vunpack.c.l.s8.bf16 %v209
    %v602 = vunpack.c.l.s8.bf16 %v210
    %v603 = vunpack.c.h.s8.bf16 %v203
    %v604 = vunpack.c.h.s8.bf16 %v204
    %v605 = vunpack.c.h.s8.bf16 %v205
    %v606 = vunpack.c.h.s8.bf16 %v206
    %v607 = vunpack.c.h.s8.bf16 %v207
    %v608 = vunpack.c.h.s8.bf16 %v208
    %v609 = vunpack.c.h.s8.bf16 %v209
    %v610 = vunpack.c.h.s8.bf16 %v210
    %v611 = vunpack.c.l.s8.bf16 %v211
    %v612 = vunpack.c.l.s8.bf16 %v212
    %v613 = vunpack.c.l.s8.bf16 %v213
    %v614 = vunpack.c.l.s8.bf16 %v214
    %v615 = vunpack.c.l.s8.bf16 %v215
    %v616 = vunpack.c.l.s8.bf16 %v216
    %v617 = vunpack.c.l.s8.bf16 %v217
    %v618 = vunpack.c.l.s8.bf16 %v218
    %v619 = vunpack.c.h.s8.bf16 %v211
    %v620 = vunpack.c.h.s8.bf16 %v212
    %v621 = vunpack.c.h.s8.bf16 %v213
    %v622 = vunpack.c.h.s8.bf16 %v214
    %v623 = vunpack.c.h.s8.bf16 %v215
    %v624 = vunpack.c.h.s8.bf16 %v216
    %v625 = vunpack.c.h.s8.bf16 %v217
    %v626 = vunpack.c.h.s8.bf16 %v218
    %v627 = vunpack.c.l.s8.bf16 %v219
    %v628 = vunpack.c.l.s8.bf16 %v220
    %v629 = vunpack.c.l.s8.bf16 %v221
    %v630 = vunpack.c.l.s8.bf16 %v222
    %v631 = vunpack.c.l.s8.bf16 %v223
    %v632 = vunpack.c.l.s8.bf16 %v224
    %v633 = vunpack.c.l.s8.bf16 %v225
    %v634 = vunpack.c.l.s8.bf16 %v226
    %v635 = vunpack.c.h.s8.bf16 %v219
    %v636 = vunpack.c.h.s8.bf16 %v220
    %v637 = vunpack.c.h.s8.bf16 %v221
    %v638 = vunpack.c.h.s8.bf16 %v222
    %v639 = vunpack.c.h.s8.bf16 %v223
    %v640 = vunpack.c.h.s8.bf16 %v224
    %v641 = vunpack.c.h.s8.bf16 %v225
    %v642 = vunpack.c.h.s8.bf16 %v226
    %v643 = vunpack.c.l.s8.bf16 %v227
    %v644 = vunpack.c.l.s8.bf16 %v228
    %v645 = vunpack.c.l.s8.bf16 %v229
    %v646 = vunpack.c.l.s8.bf16 %v230
    %v647 = vunpack.c.l.s8.bf16 %v231
    %v648 = vunpack.c.l.s8.bf16 %v232
    %v649 = vunpack.c.l.s8.bf16 %v233
    %v650 = vunpack.c.l.s8.bf16 %v234
    %v651 = vunpack.c.h.s8.bf16 %v227
    %v652 = vunpack.c.h.s8.bf16 %v228
    %v653 = vunpack.c.h.s8.bf16 %v229
    %v654 = vunpack.c.h.s8.bf16 %v230
    %v655 = vunpack.c.h.s8.bf16 %v231
    %v656 = vunpack.c.h.s8.bf16 %v232
    %v657 = vunpack.c.h.s8.bf16 %v233
    %v658 = vunpack.c.h.s8.bf16 %v234
    %v659 = vunpack.c.l.s8.bf16 %v235
    %v660 = vunpack.c.l.s8.bf16 %v236
    %v661 = vunpack.c.l.s8.bf16 %v237
    %v662 = vunpack.c.l.s8.bf16 %v238
    %v663 = vunpack.c.l.s8.bf16 %v239
    %v664 = vunpack.c.l.s8.bf16 %v240
    %v665 = vunpack.c.l.s8.bf16 %v241
    %v666 = vunpack.c.l.s8.bf16 %v242
    %v667 = vunpack.c.h.s8.bf16 %v235
    %v668 = vunpack.c.h.s8.bf16 %v236
    %v669 = vunpack.c.h.s8.bf16 %v237
    %v670 = vunpack.c.h.s8.bf16 %v238
    %v671 = vunpack.c.h.s8.bf16 %v239
    %v672 = vunpack.c.h.s8.bf16 %v240
    %v673 = vunpack.c.h.s8.bf16 %v241
    %v674 = vunpack.c.h.s8.bf16 %v242
    %v675 = vunpack.c.l.s8.bf16 %v243
    %v676 = vunpack.c.l.s8.bf16 %v244
    %v677 = vunpack.c.l.s8.bf16 %v245
    %v678 = vunpack.c.l.s8.bf16 %v246
    %v679 = vunpack.c.l.s8.bf16 %v247
    %v680 = vunpack.c.l.s8.bf16 %v248
    %v681 = vunpack.c.l.s8.bf16 %v249
    %v682 = vunpack.c.l.s8.bf16 %v250
    %v683 = vunpack.c.h.s8.bf16 %v243
    %v684 = vunpack.c.h.s8.bf16 %v244
    %v685 = vunpack.c.h.s8.bf16 %v245
    %v686 = vunpack.c.h.s8.bf16 %v246
    %v687 = vunpack.c.h.s8.bf16 %v247
    %v688 = vunpack.c.h.s8.bf16 %v248
    %v689 = vunpack.c.h.s8.bf16 %v249
    %v690 = vunpack.c.h.s8.bf16 %v250
    %v691 = vunpack.c.l.s8.bf16 %v251
    %v692 = vunpack.c.l.s8.bf16 %v252
    %v693 = vunpack.c.l.s8.bf16 %v253
    %v694 = vunpack.c.l.s8.bf16 %v254
    %v695 = vunpack.c.l.s8.bf16 %v255
    %v696 = vunpack.c.l.s8.bf16 %v256
    %v697 = vunpack.c.l.s8.bf16 %v257
    %v698 = vunpack.c.l.s8.bf16 %v258
    %v699 = vunpack.c.h.s8.bf16 %v251
    %v700 = vunpack.c.h.s8.bf16 %v252
    %v701 = vunpack.c.h.s8.bf16 %v253
    %v702 = vunpack.c.h.s8.bf16 %v254
    %v703 = vunpack.c.h.s8.bf16 %v255
    %v704 = vunpack.c.h.s8.bf16 %v256
    %v705 = vunpack.c.h.s8.bf16 %v257
    %v706 = vunpack.c.h.s8.bf16 %v258
    %v707 = vunpack.c.l.s8.bf16 %v259
    %v708 = vunpack.c.l.s8.bf16 %v260
    %v709 = vunpack.c.l.s8.bf16 %v261
    %v710 = vunpack.c.l.s8.bf16 %v262
    %v711 = vunpack.c.l.s8.bf16 %v263
    %v712 = vunpack.c.l.s8.bf16 %v264
    %v713 = vunpack.c.l.s8.bf16 %v265
    %v714 = vunpack.c.l.s8.bf16 %v266
    %v715 = vunpack.c.h.s8.bf16 %v259
    %v716 = vunpack.c.h.s8.bf16 %v260
    %v717 = vunpack.c.h.s8.bf16 %v261
    %v718 = vunpack.c.h.s8.bf16 %v262
    %v719 = vunpack.c.h.s8.bf16 %v263
    %v720 = vunpack.c.h.s8.bf16 %v264
    %v721 = vunpack.c.h.s8.bf16 %v265
    %v722 = vunpack.c.h.s8.bf16 %v266
    %v723 = vunpack.c.l.s8.bf16 %v267
    %v724 = vunpack.c.l.s8.bf16 %v268
    %v725 = vunpack.c.l.s8.bf16 %v269
    %v726 = vunpack.c.l.s8.bf16 %v270
    %v727 = vunpack.c.l.s8.bf16 %v271
    %v728 = vunpack.c.l.s8.bf16 %v272
    %v729 = vunpack.c.l.s8.bf16 %v273
    %v730 = vunpack.c.l.s8.bf16 %v274
    %v731 = vunpack.c.h.s8.bf16 %v267
    %v732 = vunpack.c.h.s8.bf16 %v268
    %v733 = vunpack.c.h.s8.bf16 %v269
    %v734 = vunpack.c.h.s8.bf16 %v270
    %v735 = vunpack.c.h.s8.bf16 %v271
    %v736 = vunpack.c.h.s8.bf16 %v272
    %v737 = vunpack.c.h.s8.bf16 %v273
    %v738 = vunpack.c.h.s8.bf16 %v274
    %v739 = vunpack.c.l.s8.bf16 %v275
    %v740 = vunpack.c.l.s8.bf16 %v276
    %v741 = vunpack.c.l.s8.bf16 %v277
    %v742 = vunpack.c.l.s8.bf16 %v278
    %v743 = vunpack.c.l.s8.bf16 %v279
    %v744 = vunpack.c.l.s8.bf16 %v280
    %v745 = vunpack.c.l.s8.bf16 %v281
    %v746 = vunpack.c.l.s8.bf16 %v282
    %v747 = vunpack.c.h.s8.bf16 %v275
    %v748 = vunpack.c.h.s8.bf16 %v276
    %v749 = vunpack.c.h.s8.bf16 %v277
    %v750 = vunpack.c.h.s8.bf16 %v278
    %v751 = vunpack.c.h.s8.bf16 %v279
    %v752 = vunpack.c.h.s8.bf16 %v280
    %v753 = vunpack.c.h.s8.bf16 %v281
    %v754 = vunpack.c.h.s8.bf16 %v282
    %v755 = vunpack.c.l.s8.bf16 %v283
    %v756 = vunpack.c.l.s8.bf16 %v284
    %v757 = vunpack.c.l.s8.bf16 %v285
    %v758 = vunpack.c.l.s8.bf16 %v286
    %v759 = vunpack.c.l.s8.bf16 %v287
    %v760 = vunpack.c.l.s8.bf16 %v288
    %v761 = vunpack.c.l.s8.bf16 %v289
    %v762 = vunpack.c.l.s8.bf16 %v290
    %v763 = vunpack.c.h.s8.bf16 %v283
    %v764 = vunpack.c.h.s8.bf16 %v284
    %v765 = vunpack.c.h.s8.bf16 %v285
    %v766 = vunpack.c.h.s8.bf16 %v286
    %v767 = vunpack.c.h.s8.bf16 %v287
    %v768 = vunpack.c.h.s8.bf16 %v288
    %v769 = vunpack.c.h.s8.bf16 %v289
    %v770 = vunpack.c.h.s8.bf16 %v290
    %v771 = vunpack.c.l.s8.bf16 %v291
    %v772 = vunpack.c.l.s8.bf16 %v292
    %v773 = vunpack.c.l.s8.bf16 %v293
    %v774 = vunpack.c.l.s8.bf16 %v294
    %v775 = vunpack.c.l.s8.bf16 %v295
    %v776 = vunpack.c.l.s8.bf16 %v296
    %v777 = vunpack.c.l.s8.bf16 %v297
    %v778 = vunpack.c.l.s8.bf16 %v298
    %v779 = vunpack.c.h.s8.bf16 %v291
    %v780 = vunpack.c.h.s8.bf16 %v292
    %v781 = vunpack.c.h.s8.bf16 %v293
    %v782 = vunpack.c.h.s8.bf16 %v294
    %v783 = vunpack.c.h.s8.bf16 %v295
    %v784 = vunpack.c.h.s8.bf16 %v296
    %v785 = vunpack.c.h.s8.bf16 %v297
    %v786 = vunpack.c.h.s8.bf16 %v298
    %v787 = vunpack.c.l.s8.bf16 %v299
    %v788 = vunpack.c.l.s8.bf16 %v300
    %v789 = vunpack.c.l.s8.bf16 %v301
    %v790 = vunpack.c.l.s8.bf16 %v302
    %v791 = vunpack.c.l.s8.bf16 %v303
    %v792 = vunpack.c.l.s8.bf16 %v304
    %v793 = vunpack.c.l.s8.bf16 %v305
    %v794 = vunpack.c.l.s8.bf16 %v306
    %v795 = vunpack.c.h.s8.bf16 %v299
    %v796 = vunpack.c.h.s8.bf16 %v300
    %v797 = vunpack.c.h.s8.bf16 %v301
    %v798 = vunpack.c.h.s8.bf16 %v302
    %v799 = vunpack.c.h.s8.bf16 %v303
    %v800 = vunpack.c.h.s8.bf16 %v304
    %v801 = vunpack.c.h.s8.bf16 %v305
    %v802 = vunpack.c.h.s8.bf16 %v306
    %v803 = vunpack.c.l.s8.bf16 %v307
    %v804 = vunpack.c.l.s8.bf16 %v308
    %v805 = vunpack.c.l.s8.bf16 %v309
    %v806 = vunpack.c.l.s8.bf16 %v310
    %v807 = vunpack.c.l.s8.bf16 %v311
    %v808 = vunpack.c.l.s8.bf16 %v312
    %v809 = vunpack.c.l.s8.bf16 %v313
    %v810 = vunpack.c.l.s8.bf16 %v314
    %v811 = vunpack.c.h.s8.bf16 %v307
    %v812 = vunpack.c.h.s8.bf16 %v308
    %v813 = vunpack.c.h.s8.bf16 %v309
    %v814 = vunpack.c.h.s8.bf16 %v310
    %v815 = vunpack.c.h.s8.bf16 %v311
    %v816 = vunpack.c.h.s8.bf16 %v312
    %v817 = vunpack.c.h.s8.bf16 %v313
    %v818 = vunpack.c.h.s8.bf16 %v314
    %v819 = vunpack.c.l.s8.bf16 %v315
    %v820 = vunpack.c.l.s8.bf16 %v316
    %v821 = vunpack.c.l.s8.bf16 %v317
    %v822 = vunpack.c.l.s8.bf16 %v318
    %v823 = vunpack.c.l.s8.bf16 %v319
    %v824 = vunpack.c.l.s8.bf16 %v320
    %v825 = vunpack.c.l.s8.bf16 %v321
    %v826 = vunpack.c.l.s8.bf16 %v322
    %v827 = vunpack.c.h.s8.bf16 %v315
    %v828 = vunpack.c.h.s8.bf16 %v316
    %v829 = vunpack.c.h.s8.bf16 %v317
    %v830 = vunpack.c.h.s8.bf16 %v318
    %v831 = vunpack.c.h.s8.bf16 %v319
    %v832 = vunpack.c.h.s8.bf16 %v320
    %v833 = vunpack.c.h.s8.bf16 %v321
    %v834 = vunpack.c.h.s8.bf16 %v322
    %v835 = vld [vmem:[#allocation2] sm:$0xff]
    %v837 = vcombine.high %v835, %v835
    %v839 = vunpack.c.l.s4 1966171168
    %v840 = vunpack.c.0.s8 %v839
    %v841 = vlaneseq
    %v842 = vshrl.u32 %v841, 7
    %v843 = vsub.s32 %v840, %v842
    %v844 = vrot.slane %v835, %v843
    %v846 = vunpack.c.l.s4 1966171168
    %v847 = vunpack.c.0.s8 %v846
    %v848 = vlaneseq
    %v849 = vshrl.u32 %v848, 7
    %v850 = vsub.s32 %v847, %v849
    %v851 = vrot.slane %v837, %v850
    %v852 = vcombine.high %v844, %v844
    %v853 = vcombine.high %v851, %v851
    %v855 = vunpack.c.l.s4 1966171168
    %v856 = vunpack.c.0.s8 %v855
    %v857 = vlaneseq
    %v858 = vshrl.u32 %v857, 7
    %v859 = vsub.s32 %v856, %v858
    %v860 = vrot.slane %v844, %v859
    %v862 = vunpack.c.l.s4 1966171168
    %v863 = vunpack.c.0.s8 %v862
    %v864 = vlaneseq
    %v865 = vshrl.u32 %v864, 7
    %v866 = vsub.s32 %v863, %v865
    %v867 = vrot.slane %v851, %v866
    %v869 = vunpack.c.l.s4 1966171168
    %v870 = vunpack.c.0.s8 %v869
    %v871 = vlaneseq
    %v872 = vshrl.u32 %v871, 7
    %v873 = vsub.s32 %v870, %v872
    %v874 = vrot.slane %v852, %v873
    %v876 = vunpack.c.l.s4 1966171168
    %v877 = vunpack.c.0.s8 %v876
    %v878 = vlaneseq
    %v879 = vshrl.u32 %v878, 7
    %v880 = vsub.s32 %v877, %v879
    %v881 = vrot.slane %v853, %v880
    %v882 = vcombine.high %v860, %v860
    %v883 = vcombine.high %v867, %v867
    %v884 = vcombine.high %v874, %v874
    %v885 = vcombine.high %v881, %v881
    %894 = vmatprep.subr.bf16.mxu0 %v324
    %895 = vmatpush1.bf16.msra.mxu0 %v323
    %896 = vmatprep.subr.bf16.mxu0 %v332
    %897 = vmatpush1.bf16.msra.mxu0 %v331
    %898 = vmatprep.subr.bf16.mxu0 %v340
    %899 = vmatpush1.bf16.msra.mxu0 %v339
    %900 = vmatprep.subr.bf16.mxu0 %v348
    %901 = vmatpush1.bf16.msra.mxu0 %v347
    %902 = vmatprep.subr.bf16.mxu0 %v356
    %903 = vmatpush1.bf16.msra.mxu0 %v355
    %904 = vmatprep.subr.bf16.mxu0 %v364
    %905 = vmatpush1.bf16.msra.mxu0 %v363
    %906 = vmatprep.subr.bf16.mxu0 %v372
    %907 = vmatpush1.bf16.msra.mxu0 %v371
    %908 = vmatprep.subr.bf16.mxu0 %v380
    %909 = vmatpush1.bf16.msra.mxu0 %v379
    %910 = vmatprep.subr.bf16.mxu0 %v388
    %911 = vmatpush1.bf16.msra.mxu0 %v387
    %912 = vmatprep.subr.bf16.mxu0 %v396
    %913 = vmatpush1.bf16.msra.mxu0 %v395
    %914 = vmatprep.subr.bf16.mxu0 %v404
    %915 = vmatpush1.bf16.msra.mxu0 %v403
    %916 = vmatprep.subr.bf16.mxu0 %v412
    %917 = vmatpush1.bf16.msra.mxu0 %v411
    %918 = vmatprep.subr.bf16.mxu0 %v420
    %919 = vmatpush1.bf16.msra.mxu0 %v419
    %920 = vmatprep.subr.bf16.mxu0 %v428
    %921 = vmatpush1.bf16.msra.mxu0 %v427
    %922 = vmatprep.subr.bf16.mxu0 %v436
    %923 = vmatpush1.bf16.msra.mxu0 %v435
    %924 = vmatprep.subr.bf16.mxu0 %v444
    %925 = vmatpush1.bf16.msra.mxu0 %v443
    %926 = vmatprep.mubr.bf16.mxu0 %v874
    %927 = vmatmul.mubr.bf16.gmra.mrb[0].mxu0 %v860
    %v928 = vpop.f32.mrb[0].mxu0
    %v929 = vadd.f32 0.0, %v928
    %v930 = vpop.f32.mrb[0].mxu0
    %v931 = vadd.f32 0.0, %v930
    %v932 = vpop.f32.mrb[0].mxu0
    %v933 = vpop.f32.mrb[0].mxu0
    %934 = vdwg.mxu0
    %935 = vmatprep.subr.bf16.mxu0 %v452
    %936 = vmatpush1.bf16.msra.mxu0 %v451
    %937 = vmatprep.subr.bf16.mxu0 %v460
    %938 = vmatpush1.bf16.msra.mxu0 %v459
    %939 = vmatprep.subr.bf16.mxu0 %v468
    %940 = vmatpush1.bf16.msra.mxu0 %v467
    %941 = vmatprep.subr.bf16.mxu0 %v476
    %942 = vmatpush1.bf16.msra.mxu0 %v475
    %943 = vmatprep.subr.bf16.mxu0 %v484
    %944 = vmatpush1.bf16.msra.mxu0 %v483
    %945 = vmatprep.subr.bf16.mxu0 %v492
    %946 = vmatpush1.bf16.msra.mxu0 %v491
    %947 = vmatprep.subr.bf16.mxu0 %v500
    %948 = vmatpush1.bf16.msra.mxu0 %v499
    %949 = vmatprep.subr.bf16.mxu0 %v508
    %950 = vmatpush1.bf16.msra.mxu0 %v507
    %951 = vmatprep.subr.bf16.mxu0 %v516
    %952 = vmatpush1.bf16.msra.mxu0 %v515
    %953 = vmatprep.subr.bf16.mxu0 %v524
    %954 = vmatpush1.bf16.msra.mxu0 %v523
    %955 = vmatprep.subr.bf16.mxu0 %v532
    %956 = vmatpush1.bf16.msra.mxu0 %v531
    %957 = vmatprep.subr.bf16.mxu0 %v540
    %958 = vmatpush1.bf16.msra.mxu0 %v539
    %959 = vmatprep.subr.bf16.mxu0 %v548
    %960 = vmatpush1.bf16.msra.mxu0 %v547
    %961 = vmatprep.subr.bf16.mxu0 %v556
    %962 = vmatpush1.bf16.msra.mxu0 %v555
    %963 = vmatprep.subr.bf16.mxu0 %v564
    %964 = vmatpush1.bf16.msra.mxu0 %v563
    %965 = vmatprep.subr.bf16.mxu0 %v572
    %966 = vmatpush1.bf16.msra.mxu0 %v571
    %967 = vmatprep.mubr.bf16.mxu0 %v884
    %968 = vmatmul.mubr.bf16.gmra.mrb[0].mxu0 %v882
    %v969 = vpop.f32.mrb[0].mxu0
    %v970 = vadd.f32 %v929, %v969
    %v971 = vpop.f32.mrb[0].mxu0
    %v972 = vadd.f32 %v931, %v971
    %v973 = vpop.f32.mrb[0].mxu0
    %v974 = vpop.f32.mrb[0].mxu0
    %975 = vdwg.mxu0
    %976 = vmatprep.subr.bf16.mxu0 %v580
    %977 = vmatpush1.bf16.msra.mxu0 %v579
    %978 = vmatprep.subr.bf16.mxu0 %v588
    %979 = vmatpush1.bf16.msra.mxu0 %v587
    %980 = vmatprep.subr.bf16.mxu0 %v596
    %981 = vmatpush1.bf16.msra.mxu0 %v595
    %982 = vmatprep.subr.bf16.mxu0 %v604
    %983 = vmatpush1.bf16.msra.mxu0 %v603
    %984 = vmatprep.subr.bf16.mxu0 %v612
    %985 = vmatpush1.bf16.msra.mxu0 %v611
    %986 = vmatprep.subr.bf16.mxu0 %v620
    %987 = vmatpush1.bf16.msra.mxu0 %v619
    %988 = vmatprep.subr.bf16.mxu0 %v628
    %989 = vmatpush1.bf16.msra.mxu0 %v627
    %990 = vmatprep.subr.bf16.mxu0 %v636
    %991 = vmatpush1.bf16.msra.mxu0 %v635
    %992 = vmatprep.subr.bf16.mxu0 %v644
    %993 = vmatpush1.bf16.msra.mxu0 %v643
    %994 = vmatprep.subr.bf16.mxu0 %v652
    %995 = vmatpush1.bf16.msra.mxu0 %v651
    %996 = vmatprep.subr.bf16.mxu0 %v660
    %997 = vmatpush1.bf16.msra.mxu0 %v659
    %998 = vmatprep.subr.bf16.mxu0 %v668
    %999 = vmatpush1.bf16.msra.mxu0 %v667
    %1000 = vmatprep.subr.bf16.mxu0 %v676
    %1001 = vmatpush1.bf16.msra.mxu0 %v675
    %1002 = vmatprep.subr.bf16.mxu0 %v684
    %1003 = vmatpush1.bf16.msra.mxu0 %v683
    %1004 = vmatprep.subr.bf16.mxu0 %v692
    %1005 = vmatpush1.bf16.msra.mxu0 %v691
    %1006 = vmatprep.subr.bf16.mxu0 %v700
    %1007 = vmatpush1.bf16.msra.mxu0 %v699
    %1008 = vmatprep.mubr.bf16.mxu0 %v881
    %1009 = vmatmul.mubr.bf16.gmra.mrb[0].mxu0 %v867
    %v1010 = vpop.f32.mrb[0].mxu0
    %v1011 = vadd.f32 %v970, %v1010
    %v1012 = vpop.f32.mrb[0].mxu0
    %v1013 = vadd.f32 %v972, %v1012
    %v1014 = vpop.f32.mrb[0].mxu0
    %v1015 = vpop.f32.mrb[0].mxu0
    %1016 = vdwg.mxu0
    %1017 = vmatprep.subr.bf16.mxu0 %v708
    %1018 = vmatpush1.bf16.msra.mxu0 %v707
    %1019 = vmatprep.subr.bf16.mxu0 %v716
    %1020 = vmatpush1.bf16.msra.mxu0 %v715
    %1021 = vmatprep.subr.bf16.mxu0 %v724
    %1022 = vmatpush1.bf16.msra.mxu0 %v723
    %1023 = vmatprep.subr.bf16.mxu0 %v732
    %1024 = vmatpush1.bf16.msra.mxu0 %v731
    %1025 = vmatprep.subr.bf16.mxu0 %v740
    %1026 = vmatpush1.bf16.msra.mxu0 %v739
    %1027 = vmatprep.subr.bf16.mxu0 %v748
    %1028 = vmatpush1.bf16.msra.mxu0 %v747
    %1029 = vmatprep.subr.bf16.mxu0 %v756
    %1030 = vmatpush1.bf16.msra.mxu0 %v755
    %1031 = vmatprep.subr.bf16.mxu0 %v764
    %1032 = vmatpush1.bf16.msra.mxu0 %v763
    %1033 = vmatprep.subr.bf16.mxu0 %v772
    %1034 = vmatpush1.bf16.msra.mxu0 %v771
    %1035 = vmatprep.subr.bf16.mxu0 %v780
    %1036 = vmatpush1.bf16.msra.mxu0 %v779
    %1037 = vmatprep.subr.bf16.mxu0 %v788
    %1038 = vmatpush1.bf16.msra.mxu0 %v787
    %1039 = vmatprep.subr.bf16.mxu0 %v796
    %1040 = vmatpush1.bf16.msra.mxu0 %v795
    %1041 = vmatprep.subr.bf16.mxu0 %v804
    %1042 = vmatpush1.bf16.msra.mxu0 %v803
    %1043 = vmatprep.subr.bf16.mxu0 %v812
    %1044 = vmatpush1.bf16.msra.mxu0 %v811
    %1045 = vmatprep.subr.bf16.mxu0 %v820
    %1046 = vmatpush1.bf16.msra.mxu0 %v819
    %1047 = vmatprep.subr.bf16.mxu0 %v828
    %1048 = vmatpush1.bf16.msra.mxu0 %v827
    %1049 = vmatprep.mubr.bf16.mxu0 %v885
    %1050 = vmatmul.mubr.bf16.gmra.mrb[0].mxu0 %v883
    %v1051 = vpop.f32.mrb[0].mxu0
    %v1052 = vadd.f32 %v1011, %v1051
    %v1053 = vpop.f32.mrb[0].mxu0
    %v1054 = vadd.f32 %v1013, %v1053
    %v1055 = vpop.f32.mrb[0].mxu0
    %v1056 = vpop.f32.mrb[0].mxu0
    %1057 = vdwg.mxu0
    %1058 = vmatprep.subr.bf16.mxu0 %v326
    %1059 = vmatpush1.bf16.msra.mxu0 %v325
    %1060 = vmatprep.subr.bf16.mxu0 %v334
    %1061 = vmatpush1.bf16.msra.mxu0 %v333
    %1062 = vmatprep.subr.bf16.mxu0 %v342
    %1063 = vmatpush1.bf16.msra.mxu0 %v341
    %1064 = vmatprep.subr.bf16.mxu0 %v350
    %1065 = vmatpush1.bf16.msra.mxu0 %v349
    %1066 = vmatprep.subr.bf16.mxu0 %v358
    %1067 = vmatpush1.bf16.msra.mxu0 %v357
    %1068 = vmatprep.subr.bf16.mxu0 %v366
    %1069 = vmatpush1.bf16.msra.mxu0 %v365
    %1070 = vmatprep.subr.bf16.mxu0 %v374
    %1071 = vmatpush1.bf16.msra.mxu0 %v373
    %1072 = vmatprep.subr.bf16.mxu0 %v382
    %1073 = vmatpush1.bf16.msra.mxu0 %v381
    %1074 = vmatprep.subr.bf16.mxu0 %v390
    %1075 = vmatpush1.bf16.msra.mxu0 %v389
    %1076 = vmatprep.subr.bf16.mxu0 %v398
    %1077 = vmatpush1.bf16.msra.mxu0 %v397
    %1078 = vmatprep.subr.bf16.mxu0 %v406
    %1079 = vmatpush1.bf16.msra.mxu0 %v405
    %1080 = vmatprep.subr.bf16.mxu0 %v414
    %1081 = vmatpush1.bf16.msra.mxu0 %v413
    %1082 = vmatprep.subr.bf16.mxu0 %v422
    %1083 = vmatpush1.bf16.msra.mxu0 %v421
    %1084 = vmatprep.subr.bf16.mxu0 %v430
    %1085 = vmatpush1.bf16.msra.mxu0 %v429
    %1086 = vmatprep.subr.bf16.mxu0 %v438
    %1087 = vmatpush1.bf16.msra.mxu0 %v437
    %1088 = vmatprep.subr.bf16.mxu0 %v446
    %1089 = vmatpush1.bf16.msra.mxu0 %v445
    %1090 = vmatprep.mubr.bf16.mxu0 %v874
    %1091 = vmatmul.mubr.bf16.gmra.mrb[0].mxu0 %v860
    %v1092 = vpop.f32.mrb[0].mxu0
    %v1093 = vadd.f32 0.0, %v1092
    %v1094 = vpop.f32.mrb[0].mxu0
    %v1095 = vadd.f32 0.0, %v1094
    %v1096 = vpop.f32.mrb[0].mxu0
    %v1097 = vpop.f32.mrb[0].mxu0
    %1098 = vdwg.mxu0
    %1099 = vmatprep.subr.bf16.mxu0 %v454
    %1100 = vmatpush1.bf16.msra.mxu0 %v453
    %1101 = vmatprep.subr.bf16.mxu0 %v462
    %1102 = vmatpush1.bf16.msra.mxu0 %v461
    %1103 = vmatprep.subr.bf16.mxu0 %v470
    %1104 = vmatpush1.bf16.msra.mxu0 %v469
    %1105 = vmatprep.subr.bf16.mxu0 %v478
    %1106 = vmatpush1.bf16.msra.mxu0 %v477
    %1107 = vmatprep.subr.bf16.mxu0 %v486
    %1108 = vmatpush1.bf16.msra.mxu0 %v485
    %1109 = vmatprep.subr.bf16.mxu0 %v494
    %1110 = vmatpush1.bf16.msra.mxu0 %v493
    %1111 = vmatprep.subr.bf16.mxu0 %v502
    %1112 = vmatpush1.bf16.msra.mxu0 %v501
    %1113 = vmatprep.subr.bf16.mxu0 %v510
    %1114 = vmatpush1.bf16.msra.mxu0 %v509
    %1115 = vmatprep.subr.bf16.mxu0 %v518
    %1116 = vmatpush1.bf16.msra.mxu0 %v517
    %1117 = vmatprep.subr.bf16.mxu0 %v526
    %1118 = vmatpush1.bf16.msra.mxu0 %v525
    %1119 = vmatprep.subr.bf16.mxu0 %v534
    %1120 = vmatpush1.bf16.msra.mxu0 %v533
    %1121 = vmatprep.subr.bf16.mxu0 %v542
    %1122 = vmatpush1.bf16.msra.mxu0 %v541
    %1123 = vmatprep.subr.bf16.mxu0 %v550
    %1124 = vmatpush1.bf16.msra.mxu0 %v549
    %1125 = vmatprep.subr.bf16.mxu0 %v558
    %1126 = vmatpush1.bf16.msra.mxu0 %v557
    %1127 = vmatprep.subr.bf16.mxu0 %v566
    %1128 = vmatpush1.bf16.msra.mxu0 %v565
    %1129 = vmatprep.subr.bf16.mxu0 %v574
    %1130 = vmatpush1.bf16.msra.mxu0 %v573
    %1131 = vmatprep.mubr.bf16.mxu0 %v884
    %1132 = vmatmul.mubr.bf16.gmra.mrb[0].mxu0 %v882
    %v1133 = vpop.f32.mrb[0].mxu0
    %v1134 = vadd.f32 %v1093, %v1133
    %v1135 = vpop.f32.mrb[0].mxu0
    %v1136 = vadd.f32 %v1095, %v1135
    %v1137 = vpop.f32.mrb[0].mxu0
    %v1138 = vpop.f32.mrb[0].mxu0
    %1139 = vdwg.mxu0
    %1140 = vmatprep.subr.bf16.mxu0 %v582
    %1141 = vmatpush1.bf16.msra.mxu0 %v581
    %1142 = vmatprep.subr.bf16.mxu0 %v590
    %1143 = vmatpush1.bf16.msra.mxu0 %v589
    %1144 = vmatprep.subr.bf16.mxu0 %v598
    %1145 = vmatpush1.bf16.msra.mxu0 %v597
    %1146 = vmatprep.subr.bf16.mxu0 %v606
    %1147 = vmatpush1.bf16.msra.mxu0 %v605
    %1148 = vmatprep.subr.bf16.mxu0 %v614
    %1149 = vmatpush1.bf16.msra.mxu0 %v613
    %1150 = vmatprep.subr.bf16.mxu0 %v622
    %1151 = vmatpush1.bf16.msra.mxu0 %v621
    %1152 = vmatprep.subr.bf16.mxu0 %v630
    %1153 = vmatpush1.bf16.msra.mxu0 %v629
    %1154 = vmatprep.subr.bf16.mxu0 %v638
    %1155 = vmatpush1.bf16.msra.mxu0 %v637
    %1156 = vmatprep.subr.bf16.mxu0 %v646
    %1157 = vmatpush1.bf16.msra.mxu0 %v645
    %1158 = vmatprep.subr.bf16.mxu0 %v654
    %1159 = vmatpush1.bf16.msra.mxu0 %v653
    %1160 = vmatprep.subr.bf16.mxu0 %v662
    %1161 = vmatpush1.bf16.msra.mxu0 %v661
    %1162 = vmatprep.subr.bf16.mxu0 %v670
    %1163 = vmatpush1.bf16.msra.mxu0 %v669
    %1164 = vmatprep.subr.bf16.mxu0 %v678
    %1165 = vmatpush1.bf16.msra.mxu0 %v677
    %1166 = vmatprep.subr.bf16.mxu0 %v686
    %1167 = vmatpush1.bf16.msra.mxu0 %v685
    %1168 = vmatprep.subr.bf16.mxu0 %v694
    %1169 = vmatpush1.bf16.msra.mxu0 %v693
    %1170 = vmatprep.subr.bf16.mxu0 %v702
    %1171 = vmatpush1.bf16.msra.mxu0 %v701
    %1172 = vmatprep.mubr.bf16.mxu0 %v881
    %1173 = vmatmul.mubr.bf16.gmra.mrb[0].mxu0 %v867
    %v1174 = vpop.f32.mrb[0].mxu0
    %v1175 = vadd.f32 %v1134, %v1174
    %v1176 = vpop.f32.mrb[0].mxu0
    %v1177 = vadd.f32 %v1136, %v1176
    %v1178 = vpop.f32.mrb[0].mxu0
    %v1179 = vpop.f32.mrb[0].mxu0
    %1180 = vdwg.mxu0
    %1181 = vmatprep.subr.bf16.mxu0 %v710
    %1182 = vmatpush1.bf16.msra.mxu0 %v709
    %1183 = vmatprep.subr.bf16.mxu0 %v718
    %1184 = vmatpush1.bf16.msra.mxu0 %v717
    %1185 = vmatprep.subr.bf16.mxu0 %v726
    %1186 = vmatpush1.bf16.msra.mxu0 %v725
    %1187 = vmatprep.subr.bf16.mxu0 %v734
    %1188 = vmatpush1.bf16.msra.mxu0 %v733
    %1189 = vmatprep.subr.bf16.mxu0 %v742
    %1190 = vmatpush1.bf16.msra.mxu0 %v741
    %1191 = vmatprep.subr.bf16.mxu0 %v750
    %1192 = vmatpush1.bf16.msra.mxu0 %v749
    %1193 = vmatprep.subr.bf16.mxu0 %v758
    %1194 = vmatpush1.bf16.msra.mxu0 %v757
    %1195 = vmatprep.subr.bf16.mxu0 %v766
    %1196 = vmatpush1.bf16.msra.mxu0 %v765
    %1197 = vmatprep.subr.bf16.mxu0 %v774
    %1198 = vmatpush1.bf16.msra.mxu0 %v773
    %1199 = vmatprep.subr.bf16.mxu0 %v782
    %1200 = vmatpush1.bf16.msra.mxu0 %v781
    %1201 = vmatprep.subr.bf16.mxu0 %v790
    %1202 = vmatpush1.bf16.msra.mxu0 %v789
    %1203 = vmatprep.subr.bf16.mxu0 %v798
    %1204 = vmatpush1.bf16.msra.mxu0 %v797
    %1205 = vmatprep.subr.bf16.mxu0 %v806
    %1206 = vmatpush1.bf16.msra.mxu0 %v805
    %1207 = vmatprep.subr.bf16.mxu0 %v814
    %1208 = vmatpush1.bf16.msra.mxu0 %v813
    %1209 = vmatprep.subr.bf16.mxu0 %v822
    %1210 = vmatpush1.bf16.msra.mxu0 %v821
    %1211 = vmatprep.subr.bf16.mxu0 %v830
    %1212 = vmatpush1.bf16.msra.mxu0 %v829
    %1213 = vmatprep.mubr.bf16.mxu0 %v885
    %1214 = vmatmul.mubr.bf16.gmra.mrb[0].mxu0 %v883
    %v1215 = vpop.f32.mrb[0].mxu0
    %v1216 = vadd.f32 %v1175, %v1215
    %v1217 = vpop.f32.mrb[0].mxu0
    %v1218 = vadd.f32 %v1177, %v1217
    %v1219 = vpop.f32.mrb[0].mxu0
    %v1220 = vpop.f32.mrb[0].mxu0
    %1221 = vdwg.mxu0
    %1222 = vmatprep.subr.bf16.mxu0 %v328
    %1223 = vmatpush1.bf16.msra.mxu0 %v327
    %1224 = vmatprep.subr.bf16.mxu0 %v336
    %1225 = vmatpush1.bf16.msra.mxu0 %v335
    %1226 = vmatprep.subr.bf16.mxu0 %v344
    %1227 = vmatpush1.bf16.msra.mxu0 %v343
    %1228 = vmatprep.subr.bf16.mxu0 %v352
    %1229 = vmatpush1.bf16.msra.mxu0 %v351
    %1230 = vmatprep.subr.bf16.mxu0 %v360
    %1231 = vmatpush1.bf16.msra.mxu0 %v359
    %1232 = vmatprep.subr.bf16.mxu0 %v368
    %1233 = vmatpush1.bf16.msra.mxu0 %v367
    %1234 = vmatprep.subr.bf16.mxu0 %v376
    %1235 = vmatpush1.bf16.msra.mxu0 %v375
    %1236 = vmatprep.subr.bf16.mxu0 %v384
    %1237 = vmatpush1.bf16.msra.mxu0 %v383
    %1238 = vmatprep.subr.bf16.mxu0 %v392
    %1239 = vmatpush1.bf16.msra.mxu0 %v391
    %1240 = vmatprep.subr.bf16.mxu0 %v400
    %1241 = vmatpush1.bf16.msra.mxu0 %v399
    %1242 = vmatprep.subr.bf16.mxu0 %v408
    %1243 = vmatpush1.bf16.msra.mxu0 %v407
    %1244 = vmatprep.subr.bf16.mxu0 %v416
    %1245 = vmatpush1.bf16.msra.mxu0 %v415
    %1246 = vmatprep.subr.bf16.mxu0 %v424
    %1247 = vmatpush1.bf16.msra.mxu0 %v423
    %1248 = vmatprep.subr.bf16.mxu0 %v432
    %1249 = vmatpush1.bf16.msra.mxu0 %v431
    %1250 = vmatprep.subr.bf16.mxu0 %v440
    %1251 = vmatpush1.bf16.msra.mxu0 %v439
    %1252 = vmatprep.subr.bf16.mxu0 %v448
    %1253 = vmatpush1.bf16.msra.mxu0 %v447
    %1254 = vmatprep.mubr.bf16.mxu0 %v874
    %1255 = vmatmul.mubr.bf16.gmra.mrb[0].mxu0 %v860
    %v1256 = vpop.f32.mrb[0].mxu0
    %v1257 = vadd.f32 0.0, %v1256
    %v1258 = vpop.f32.mrb[0].mxu0
    %v1259 = vadd.f32 0.0, %v1258
    %v1260 = vpop.f32.mrb[0].mxu0
    %v1261 = vpop.f32.mrb[0].mxu0
    %1262 = vdwg.mxu0
    %1263 = vmatprep.subr.bf16.mxu0 %v456
    %1264 = vmatpush1.bf16.msra.mxu0 %v455
    %1265 = vmatprep.subr.bf16.mxu0 %v464
    %1266 = vmatpush1.bf16.msra.mxu0 %v463
    %1267 = vmatprep.subr.bf16.mxu0 %v472
    %1268 = vmatpush1.bf16.msra.mxu0 %v471
    %1269 = vmatprep.subr.bf16.mxu0 %v480
    %1270 = vmatpush1.bf16.msra.mxu0 %v479
    %1271 = vmatprep.subr.bf16.mxu0 %v488
    %1272 = vmatpush1.bf16.msra.mxu0 %v487
    %1273 = vmatprep.subr.bf16.mxu0 %v496
    %1274 = vmatpush1.bf16.msra.mxu0 %v495
    %1275 = vmatprep.subr.bf16.mxu0 %v504
    %1276 = vmatpush1.bf16.msra.mxu0 %v503
    %1277 = vmatprep.subr.bf16.mxu0 %v512
    %1278 = vmatpush1.bf16.msra.mxu0 %v511
    %1279 = vmatprep.subr.bf16.mxu0 %v520
    %1280 = vmatpush1.bf16.msra.mxu0 %v519
    %1281 = vmatprep.subr.bf16.mxu0 %v528
    %1282 = vmatpush1.bf16.msra.mxu0 %v527
    %1283 = vmatprep.subr.bf16.mxu0 %v536
    %1284 = vmatpush1.bf16.msra.mxu0 %v535
    %1285 = vmatprep.subr.bf16.mxu0 %v544
    %1286 = vmatpush1.bf16.msra.mxu0 %v543
    %1287 = vmatprep.subr.bf16.mxu0 %v552
    %1288 = vmatpush1.bf16.msra.mxu0 %v551
    %1289 = vmatprep.subr.bf16.mxu0 %v560
    %1290 = vmatpush1.bf16.msra.mxu0 %v559
    %1291 = vmatprep.subr.bf16.mxu0 %v568
    %1292 = vmatpush1.bf16.msra.mxu0 %v567
    %1293 = vmatprep.subr.bf16.mxu0 %v576
    %1294 = vmatpush1.bf16.msra.mxu0 %v575
    %1295 = vmatprep.mubr.bf16.mxu0 %v884
    %1296 = vmatmul.mubr.bf16.gmra.mrb[0].mxu0 %v882
    %v1297 = vpop.f32.mrb[0].mxu0
    %v1298 = vadd.f32 %v1257, %v1297
    %v1299 = vpop.f32.mrb[0].mxu0
    %v1300 = vadd.f32 %v1259, %v1299
    %v1301 = vpop.f32.mrb[0].mxu0
    %v1302 = vpop.f32.mrb[0].mxu0
    %1303 = vdwg.mxu0
    %1304 = vmatprep.subr.bf16.mxu0 %v584
    %1305 = vmatpush1.bf16.msra.mxu0 %v583
    %1306 = vmatprep.subr.bf16.mxu0 %v592
    %1307 = vmatpush1.bf16.msra.mxu0 %v591
    %1308 = vmatprep.subr.bf16.mxu0 %v600
    %1309 = vmatpush1.bf16.msra.mxu0 %v599
    %1310 = vmatprep.subr.bf16.mxu0 %v608
    %1311 = vmatpush1.bf16.msra.mxu0 %v607
    %1312 = vmatprep.subr.bf16.mxu0 %v616
    %1313 = vmatpush1.bf16.msra.mxu0 %v615
    %1314 = vmatprep.subr.bf16.mxu0 %v624
    %1315 = vmatpush1.bf16.msra.mxu0 %v623
    %1316 = vmatprep.subr.bf16.mxu0 %v632
    %1317 = vmatpush1.bf16.msra.mxu0 %v631
    %1318 = vmatprep.subr.bf16.mxu0 %v640
    %1319 = vmatpush1.bf16.msra.mxu0 %v639
    %1320 = vmatprep.subr.bf16.mxu0 %v648
    %1321 = vmatpush1.bf16.msra.mxu0 %v647
    %1322 = vmatprep.subr.bf16.mxu0 %v656
    %1323 = vmatpush1.bf16.msra.mxu0 %v655
    %1324 = vmatprep.subr.bf16.mxu0 %v664
    %1325 = vmatpush1.bf16.msra.mxu0 %v663
    %1326 = vmatprep.subr.bf16.mxu0 %v672
    %1327 = vmatpush1.bf16.msra.mxu0 %v671
    %1328 = vmatprep.subr.bf16.mxu0 %v680
    %1329 = vmatpush1.bf16.msra.mxu0 %v679
    %1330 = vmatprep.subr.bf16.mxu0 %v688
    %1331 = vmatpush1.bf16.msra.mxu0 %v687
    %1332 = vmatprep.subr.bf16.mxu0 %v696
    %1333 = vmatpush1.bf16.msra.mxu0 %v695
    %1334 = vmatprep.subr.bf16.mxu0 %v704
    %1335 = vmatpush1.bf16.msra.mxu0 %v703
    %1336 = vmatprep.mubr.bf16.mxu0 %v881
    %1337 = vmatmul.mubr.bf16.gmra.mrb[0].mxu0 %v867
    %v1338 = vpop.f32.mrb[0].mxu0
    %v1339 = vadd.f32 %v1298, %v1338
    %v1340 = vpop.f32.mrb[0].mxu0
    %v1341 = vadd.f32 %v1300, %v1340
    %v1342 = vpop.f32.mrb[0].mxu0
    %v1343 = vpop.f32.mrb[0].mxu0
    %1344 = vdwg.mxu0
    %1345 = vmatprep.subr.bf16.mxu0 %v712
    %1346 = vmatpush1.bf16.msra.mxu0 %v711
    %1347 = vmatprep.subr.bf16.mxu0 %v720
    %1348 = vmatpush1.bf16.msra.mxu0 %v719
    %1349 = vmatprep.subr.bf16.mxu0 %v728
    %1350 = vmatpush1.bf16.msra.mxu0 %v727
    %1351 = vmatprep.subr.bf16.mxu0 %v736
    %1352 = vmatpush1.bf16.msra.mxu0 %v735
    %1353 = vmatprep.subr.bf16.mxu0 %v744
    %1354 = vmatpush1.bf16.msra.mxu0 %v743
    %1355 = vmatprep.subr.bf16.mxu0 %v752
    %1356 = vmatpush1.bf16.msra.mxu0 %v751
    %1357 = vmatprep.subr.bf16.mxu0 %v760
    %1358 = vmatpush1.bf16.msra.mxu0 %v759
    %1359 = vmatprep.subr.bf16.mxu0 %v768
    %1360 = vmatpush1.bf16.msra.mxu0 %v767
    %1361 = vmatprep.subr.bf16.mxu0 %v776
    %1362 = vmatpush1.bf16.msra.mxu0 %v775
    %1363 = vmatprep.subr.bf16.mxu0 %v784
    %1364 = vmatpush1.bf16.msra.mxu0 %v783
    %1365 = vmatprep.subr.bf16.mxu0 %v792
    %1366 = vmatpush1.bf16.msra.mxu0 %v791
    %1367 = vmatprep.subr.bf16.mxu0 %v800
    %1368 = vmatpush1.bf16.msra.mxu0 %v799
    %1369 = vmatprep.subr.bf16.mxu0 %v808
    %1370 = vmatpush1.bf16.msra.mxu0 %v807
    %1371 = vmatprep.subr.bf16.mxu0 %v816
    %1372 = vmatpush1.bf16.msra.mxu0 %v815
    %1373 = vmatprep.subr.bf16.mxu0 %v824
    %1374 = vmatpush1.bf16.msra.mxu0 %v823
    %1375 = vmatprep.subr.bf16.mxu0 %v832
    %1376 = vmatpush1.bf16.msra.mxu0 %v831
    %1377 = vmatprep.mubr.bf16.mxu0 %v885
    %1378 = vmatmul.mubr.bf16.gmra.mrb[0].mxu0 %v883
    %v1379 = vpop.f32.mrb[0].mxu0
    %v1380 = vadd.f32 %v1339, %v1379
    %v1381 = vpop.f32.mrb[0].mxu0
    %v1382 = vadd.f32 %v1341, %v1381
    %v1383 = vpop.f32.mrb[0].mxu0
    %v1384 = vpop.f32.mrb[0].mxu0
    %1385 = vdwg.mxu0
    %1386 = vmatprep.subr.bf16.mxu0 %v330
    %1387 = vmatpush1.bf16.msra.mxu0 %v329
    %1388 = vmatprep.subr.bf16.mxu0 %v338
    %1389 = vmatpush1.bf16.msra.mxu0 %v337
    %1390 = vmatprep.subr.bf16.mxu0 %v346
    %1391 = vmatpush1.bf16.msra.mxu0 %v345
    %1392 = vmatprep.subr.bf16.mxu0 %v354
    %1393 = vmatpush1.bf16.msra.mxu0 %v353
    %1394 = vmatprep.subr.bf16.mxu0 %v362
    %1395 = vmatpush1.bf16.msra.mxu0 %v361
    %1396 = vmatprep.subr.bf16.mxu0 %v370
    %1397 = vmatpush1.bf16.msra.mxu0 %v369
    %1398 = vmatprep.subr.bf16.mxu0 %v378
    %1399 = vmatpush1.bf16.msra.mxu0 %v377
    %1400 = vmatprep.subr.bf16.mxu0 %v386
    %1401 = vmatpush1.bf16.msra.mxu0 %v385
    %1402 = vmatprep.subr.bf16.mxu0 %v394
    %1403 = vmatpush1.bf16.msra.mxu0 %v393
    %1404 = vmatprep.subr.bf16.mxu0 %v402
    %1405 = vmatpush1.bf16.msra.mxu0 %v401
    %1406 = vmatprep.subr.bf16.mxu0 %v410
    %1407 = vmatpush1.bf16.msra.mxu0 %v409
    %1408 = vmatprep.subr.bf16.mxu0 %v418
    %1409 = vmatpush1.bf16.msra.mxu0 %v417
    %1410 = vmatprep.subr.bf16.mxu0 %v426
    %1411 = vmatpush1.bf16.msra.mxu0 %v425
    %1412 = vmatprep.subr.bf16.mxu0 %v434
    %1413 = vmatpush1.bf16.msra.mxu0 %v433
    %1414 = vmatprep.subr.bf16.mxu0 %v442
    %1415 = vmatpush1.bf16.msra.mxu0 %v441
    %1416 = vmatprep.subr.bf16.mxu0 %v450
    %1417 = vmatpush1.bf16.msra.mxu0 %v449
    %1418 = vmatprep.mubr.bf16.mxu0 %v874
    %1419 = vmatmul.mubr.bf16.gmra.mrb[0].mxu0 %v860
    %v1420 = vpop.f32.mrb[0].mxu0
    %v1421 = vadd.f32 0.0, %v1420
    %v1422 = vpop.f32.mrb[0].mxu0
    %v1423 = vadd.f32 0.0, %v1422
    %v1424 = vpop.f32.mrb[0].mxu0
    %v1425 = vpop.f32.mrb[0].mxu0
    %1426 = vdwg.mxu0
    %1427 = vmatprep.subr.bf16.mxu0 %v458
    %1428 = vmatpush1.bf16.msra.mxu0 %v457
    %1429 = vmatprep.subr.bf16.mxu0 %v466
    %1430 = vmatpush1.bf16.msra.mxu0 %v465
    %1431 = vmatprep.subr.bf16.mxu0 %v474
    %1432 = vmatpush1.bf16.msra.mxu0 %v473
    %1433 = vmatprep.subr.bf16.mxu0 %v482
    %1434 = vmatpush1.bf16.msra.mxu0 %v481
    %1435 = vmatprep.subr.bf16.mxu0 %v490
    %1436 = vmatpush1.bf16.msra.mxu0 %v489
    %1437 = vmatprep.subr.bf16.mxu0 %v498
    %1438 = vmatpush1.bf16.msra.mxu0 %v497
    %1439 = vmatprep.subr.bf16.mxu0 %v506
    %1440 = vmatpush1.bf16.msra.mxu0 %v505
    %1441 = vmatprep.subr.bf16.mxu0 %v514
    %1442 = vmatpush1.bf16.msra.mxu0 %v513
    %1443 = vmatprep.subr.bf16.mxu0 %v522
    %1444 = vmatpush1.bf16.msra.mxu0 %v521
    %1445 = vmatprep.subr.bf16.mxu0 %v530
    %1446 = vmatpush1.bf16.msra.mxu0 %v529
    %1447 = vmatprep.subr.bf16.mxu0 %v538
    %1448 = vmatpush1.bf16.msra.mxu0 %v537
    %1449 = vmatprep.subr.bf16.mxu0 %v546
    %1450 = vmatpush1.bf16.msra.mxu0 %v545
    %1451 = vmatprep.subr.bf16.mxu0 %v554
    %1452 = vmatpush1.bf16.msra.mxu0 %v553
    %1453 = vmatprep.subr.bf16.mxu0 %v562
    %1454 = vmatpush1.bf16.msra.mxu0 %v561
    %1455 = vmatprep.subr.bf16.mxu0 %v570
    %1456 = vmatpush1.bf16.msra.mxu0 %v569
    %1457 = vmatprep.subr.bf16.mxu0 %v578
    %1458 = vmatpush1.bf16.msra.mxu0 %v577
    %1459 = vmatprep.mubr.bf16.mxu0 %v884
    %1460 = vmatmul.mubr.bf16.gmra.mrb[0].mxu0 %v882
    %v1461 = vpop.f32.mrb[0].mxu0
    %v1462 = vadd.f32 %v1421, %v1461
    %v1463 = vpop.f32.mrb[0].mxu0
    %v1464 = vadd.f32 %v1423, %v1463
    %v1465 = vpop.f32.mrb[0].mxu0
    %v1466 = vpop.f32.mrb[0].mxu0
    %1467 = vdwg.mxu0
    %1468 = vmatprep.subr.bf16.mxu0 %v586
    %1469 = vmatpush1.bf16.msra.mxu0 %v585
    %1470 = vmatprep.subr.bf16.mxu0 %v594
    %1471 = vmatpush1.bf16.msra.mxu0 %v593
    %1472 = vmatprep.subr.bf16.mxu0 %v602
    %1473 = vmatpush1.bf16.msra.mxu0 %v601
    %1474 = vmatprep.subr.bf16.mxu0 %v610
    %1475 = vmatpush1.bf16.msra.mxu0 %v609
    %1476 = vmatprep.subr.bf16.mxu0 %v618
    %1477 = vmatpush1.bf16.msra.mxu0 %v617
    %1478 = vmatprep.subr.bf16.mxu0 %v626
    %1479 = vmatpush1.bf16.msra.mxu0 %v625
    %1480 = vmatprep.subr.bf16.mxu0 %v634
    %1481 = vmatpush1.bf16.msra.mxu0 %v633
    %1482 = vmatprep.subr.bf16.mxu0 %v642
    %1483 = vmatpush1.bf16.msra.mxu0 %v641
    %1484 = vmatprep.subr.bf16.mxu0 %v650
    %1485 = vmatpush1.bf16.msra.mxu0 %v649
    %1486 = vmatprep.subr.bf16.mxu0 %v658
    %1487 = vmatpush1.bf16.msra.mxu0 %v657
    %1488 = vmatprep.subr.bf16.mxu0 %v666
    %1489 = vmatpush1.bf16.msra.mxu0 %v665
    %1490 = vmatprep.subr.bf16.mxu0 %v674
    %1491 = vmatpush1.bf16.msra.mxu0 %v673
    %1492 = vmatprep.subr.bf16.mxu0 %v682
    %1493 = vmatpush1.bf16.msra.mxu0 %v681
    %1494 = vmatprep.subr.bf16.mxu0 %v690
    %1495 = vmatpush1.bf16.msra.mxu0 %v689
    %1496 = vmatprep.subr.bf16.mxu0 %v698
    %1497 = vmatpush1.bf16.msra.mxu0 %v697
    %1498 = vmatprep.subr.bf16.mxu0 %v706
    %1499 = vmatpush1.bf16.msra.mxu0 %v705
    %1500 = vmatprep.mubr.bf16.mxu0 %v881
    %1501 = vmatmul.mubr.bf16.gmra.mrb[0].mxu0 %v867
    %v1502 = vpop.f32.mrb[0].mxu0
    %v1503 = vadd.f32 %v1462, %v1502
    %v1504 = vpop.f32.mrb[0].mxu0
    %v1505 = vadd.f32 %v1464, %v1504
    %v1506 = vpop.f32.mrb[0].mxu0
    %v1507 = vpop.f32.mrb[0].mxu0
    %1508 = vdwg.mxu0
    %1509 = vmatprep.subr.bf16.mxu0 %v714
    %1510 = vmatpush1.bf16.msra.mxu0 %v713
    %1511 = vmatprep.subr.bf16.mxu0 %v722
    %1512 = vmatpush1.bf16.msra.mxu0 %v721
    %1513 = vmatprep.subr.bf16.mxu0 %v730
    %1514 = vmatpush1.bf16.msra.mxu0 %v729
    %1515 = vmatprep.subr.bf16.mxu0 %v738
    %1516 = vmatpush1.bf16.msra.mxu0 %v737
    %1517 = vmatprep.subr.bf16.mxu0 %v746
    %1518 = vmatpush1.bf16.msra.mxu0 %v745
    %1519 = vmatprep.subr.bf16.mxu0 %v754
    %1520 = vmatpush1.bf16.msra.mxu0 %v753
    %1521 = vmatprep.subr.bf16.mxu0 %v762
    %1522 = vmatpush1.bf16.msra.mxu0 %v761
    %1523 = vmatprep.subr.bf16.mxu0 %v770
    %1524 = vmatpush1.bf16.msra.mxu0 %v769
    %1525 = vmatprep.subr.bf16.mxu0 %v778
    %1526 = vmatpush1.bf16.msra.mxu0 %v777
    %1527 = vmatprep.subr.bf16.mxu0 %v786
    %1528 = vmatpush1.bf16.msra.mxu0 %v785
    %1529 = vmatprep.subr.bf16.mxu0 %v794
    %1530 = vmatpush1.bf16.msra.mxu0 %v793
    %1531 = vmatprep.subr.bf16.mxu0 %v802
    %1532 = vmatpush1.bf16.msra.mxu0 %v801
    %1533 = vmatprep.subr.bf16.mxu0 %v810
    %1534 = vmatpush1.bf16.msra.mxu0 %v809
    %1535 = vmatprep.subr.bf16.mxu0 %v818
    %1536 = vmatpush1.bf16.msra.mxu0 %v817
    %1537 = vmatprep.subr.bf16.mxu0 %v826
    %1538 = vmatpush1.bf16.msra.mxu0 %v825
    %1539 = vmatprep.subr.bf16.mxu0 %v834
    %1540 = vmatpush1.bf16.msra.mxu0 %v833
    %1541 = vmatprep.mubr.bf16.mxu0 %v885
    %1542 = vmatmul.mubr.bf16.gmra.mrb[0].mxu0 %v883
    %v1543 = vpop.f32.mrb[0].mxu0
    %v1544 = vadd.f32 %v1503, %v1543
    %v1545 = vpop.f32.mrb[0].mxu0
    %v1546 = vadd.f32 %v1505, %v1545
    %v1547 = vpop.f32.mrb[0].mxu0
    %v1548 = vpop.f32.mrb[0].mxu0
    %1549 = vdwg.mxu0
    %v1550 = vld [vmem:[#allocation7] sm:$0xff]
    %v1552 = vlaneseq
    %v1553 = vshrl.u32 %v1552, 7
    %v1554 = vsub.s32 0, %v1553
    %v1555 = vrot.slane %v1550, %v1554
    %v1556 = vlaneseq
    %v1557 = vshrl.u32 %v1556, 7
    %v1558 = vsub.s32 1, %v1557
    %v1559 = vrot.slane %v1550, %v1558
    %v1560 = vlaneseq
    %v1561 = vshrl.u32 %v1560, 7
    %v1562 = vsub.s32 2, %v1561
    %v1563 = vrot.slane %v1550, %v1562
    %v1564 = vlaneseq
    %v1565 = vshrl.u32 %v1564, 7
    %v1566 = vsub.s32 3, %v1565
    %v1567 = vrot.slane %v1550, %v1566
    %v1568 = vlaneseq
    %v1569 = vshrl.u32 %v1568, 7
    %v1570 = vsub.s32 4, %v1569
    %v1571 = vrot.slane %v1550, %v1570
    %v1572 = vlaneseq
    %v1573 = vshrl.u32 %v1572, 7
    %v1574 = vsub.s32 5, %v1573
    %v1575 = vrot.slane %v1550, %v1574
    %v1576 = vlaneseq
    %v1577 = vshrl.u32 %v1576, 7
    %v1578 = vsub.s32 6, %v1577
    %v1579 = vrot.slane %v1550, %v1578
    %v1580 = vlaneseq
    %v1581 = vshrl.u32 %v1580, 7
    %v1582 = vsub.s32 7, %v1581
    %v1583 = vrot.slane %v1550, %v1582
    %v1592 = vmul.f32 %v1052, %v1555
    %v1593 = vmul.f32 %v1054, %v1559
    %v1594 = vmul.f32 %v1216, %v1563
    %v1595 = vmul.f32 %v1218, %v1567
    %v1596 = vmul.f32 %v1380, %v1571
    %v1597 = vmul.f32 %v1382, %v1575
    %v1598 = vmul.f32 %v1544, %v1579
    %v1599 = vmul.f32 %v1546, %v1583
    %v1600 = vld [vmem:[#allocation8] sm:$0xff]
    %v1602 = vlaneseq
    %v1603 = vshrl.u32 %v1602, 7
    %v1604 = vsub.s32 0, %v1603
    %v1605 = vrot.slane %v1600, %v1604
    %v1606 = vlaneseq
    %v1607 = vshrl.u32 %v1606, 7
    %v1608 = vsub.s32 1, %v1607
    %v1609 = vrot.slane %v1600, %v1608
    %v1610 = vlaneseq
    %v1611 = vshrl.u32 %v1610, 7
    %v1612 = vsub.s32 2, %v1611
    %v1613 = vrot.slane %v1600, %v1612
    %v1614 = vlaneseq
    %v1615 = vshrl.u32 %v1614, 7
    %v1616 = vsub.s32 3, %v1615
    %v1617 = vrot.slane %v1600, %v1616
    %v1618 = vlaneseq
    %v1619 = vshrl.u32 %v1618, 7
    %v1620 = vsub.s32 4, %v1619
    %v1621 = vrot.slane %v1600, %v1620
    %v1622 = vlaneseq
    %v1623 = vshrl.u32 %v1622, 7
    %v1624 = vsub.s32 5, %v1623
    %v1625 = vrot.slane %v1600, %v1624
    %v1626 = vlaneseq
    %v1627 = vshrl.u32 %v1626, 7
    %v1628 = vsub.s32 6, %v1627
    %v1629 = vrot.slane %v1600, %v1628
    %v1630 = vlaneseq
    %v1631 = vshrl.u32 %v1630, 7
    %v1632 = vsub.s32 7, %v1631
    %v1633 = vrot.slane %v1600, %v1632
    %v1642 = vadd.f32 %v1592, %v1605
    %v1643 = vadd.f32 %v1593, %v1609
    %v1644 = vadd.f32 %v1594, %v1613
    %v1645 = vadd.f32 %v1595, %v1617
    %v1646 = vadd.f32 %v1596, %v1621
    %v1647 = vadd.f32 %v1597, %v1625
    %v1648 = vadd.f32 %v1598, %v1629
    %v1649 = vadd.f32 %v1599, %v1633
    %v1650 = vtanh.pop %v1642
    %v1651 = vtanh.pop %v1643
    %v1652 = vtanh.pop %v1644
    %v1653 = vtanh.pop %v1645
    %v1654 = vtanh.pop %v1646
    %v1655 = vtanh.pop %v1647
    %v1656 = vtanh.pop %v1648
    %v1657 = vtanh.pop %v1649
    %v1666 = vcombine.low %v1650, %v1651
    %v1667 = vcombine.low %v1652, %v1653
    %v1669 = vunpack.c.l.s4 1983009808
    %v1670 = vunpack.c.0.s8 %v1669
    %v1671 = vlaneseq
    %v1672 = vshrl.u32 %v1671, 7
    %v1673 = vsub.s32 %v1670, %v1672
    %v1674 = vrot.slane %v1666, %v1673
    %v1676 = vunpack.c.l.s4 1983009808
    %v1677 = vunpack.c.0.s8 %v1676
    %v1678 = vlaneseq
    %v1679 = vshrl.u32 %v1678, 7
    %v1680 = vsub.s32 %v1677, %v1679
    %v1681 = vrot.slane %v1667, %v1680
    %v1682 = vcombine.low %v1674, %v1681
    %v1683 = vcombine.low %v1654, %v1655
    %v1684 = vcombine.low %v1656, %v1657
    %v1686 = vunpack.c.l.s4 1983009808
    %v1687 = vunpack.c.0.s8 %v1686
    %v1688 = vlaneseq
    %v1689 = vshrl.u32 %v1688, 7
    %v1690 = vsub.s32 %v1687, %v1689
    %v1691 = vrot.slane %v1683, %v1690
    %v1693 = vunpack.c.l.s4 1983009808
    %v1694 = vunpack.c.0.s8 %v1693
    %v1695 = vlaneseq
    %v1696 = vshrl.u32 %v1695, 7
    %v1697 = vsub.s32 %v1694, %v1696
    %v1698 = vrot.slane %v1684, %v1697
    %v1699 = vcombine.low %v1691, %v1698
    %1702 = vst [vmem:[#allocation10] sm:$0xff] %v1682
    %1703 = vst [vmem:[#allocation10 + $0x8] sm:$0xff] %v1699
    // Predicated region
    $region34: #{generator_forward.3} parent=1 // pred_check
      _
    $region35: #{generator_forward.3} parent=1 // pred_check_branch
      %1705 = sbr.rel (0) target = $region37
    $region36: #{generator_forward.3} parent=1 // pred_region
      %s1707 = ssub.s32 256, 256
      %1708 = vsyncadd [#allocation4], %s1707
      %s1710 = sshll.u32 [#allocation10], 4
      %s1711 = int_to_ptr.vmem [resolvable:$true] %s1710
      %1713 = dma.vmem_to_hbm [thread:$0]  %s1711, 256, %s4, [#allocation4]
    $region37: #{generator_forward.3} parent=1 // pred_fallthru
      _
    // Predicated region
    $region38: #{generator_forward.3} parent=1 // pred_check
      _
    $region39: #{generator_forward.3} parent=1 // pred_check_branch
      %1715 = sbr.rel (0) target = $region41
    $region40: #{generator_forward.3} parent=1 // pred_region
      %1716 = dma.done [#allocation4], 256
    $region41: #{generator_forward.3} parent=1 // pred_fallthru
      _
    %1717 = vsyncpa [#allocation3], 1
    %1718 = vsyncpa [#allocation6], 1
    %1719 = vsyncpa [#allocation9], 1
    %1720 = vsyncpa [#allocation4], 1

// kernel: generator_forward.2
$region0: #{generator_forward.2}
  #allocation0 [shape = 'u32[]', space=smem, size = 0x4, offset = 0x4, fixed_abs, tag = 'smem constant byte address 0x4 - core index']
  #allocation1 [shape = 'u32[144,128]{1,0:T(1,128)}', space=vmem, size = 0x12000, scoped, tag = 'internal scratch']
  %s0 = inlined_call_operand.hbm [shape: bf16[2,1024], index: 0, kind: input, shape index: {}]
  %s1 = inlined_call_operand.hbm [shape: bf16[1024,128], index: 1, kind: input, shape index: {}]
  %s2 = inlined_call_operand.hbm [shape: f32[1,128], index: 2, kind: input, shape index: {}]
  %s3 = inlined_call_operand.hbm [shape: bf16[128,256], index: 3, kind: input, shape index: {}]
  %s4 = inlined_call_operand.hbm [shape: f32[1,256], index: 4, kind: input, shape index: {}]
  %s5 = inlined_call_operand.hbm [shape: f32[1,256], index: 5, kind: input, shape index: {}]
  %s6 = inlined_call_operand.hbm [shape: f32[1,256], index: 6, kind: input, shape index: {}]
  %s7 = inlined_call_operand.hbm [shape: bf16[256,512], index: 7, kind: input, shape index: {}]
  %s8 = inlined_call_operand.hbm [shape: f32[1,512], index: 8, kind: input, shape index: {}]
  %s9 = inlined_call_operand.hbm [shape: f32[1,512], index: 9, kind: input, shape index: {}]
  %s10 = inlined_call_operand.hbm [shape: f32[1,512], index: 10, kind: input, shape index: {}]
  %s11 = inlined_call_operand.hbm [shape: bf16[512,1024], index: 11, kind: input, shape index: {}]
  %s12 = inlined_call_operand.hbm [shape: f32[1,1024], index: 12, kind: input, shape index: {}]
  %s13 = inlined_call_operand.hbm [shape: f32[1,1024], index: 13, kind: input, shape index: {}]
  %s14 = inlined_call_operand.hbm [shape: f32[1,1024], index: 14, kind: input, shape index: {}]
  %s15 = inlined_call_operand.hbm [shape: bf16[2,1024], index: 15, kind: output, shape index: {}]
  %s16 = sld [smem:[#allocation0]]
  $region130: #{generator_forward.2} parent=0
    _
  %s18 = ssub.s32 1, %s16
  %s19 = scalar_select 0, %s18, %s16
  $region1: #{generator_forward.2} parent=0
    #allocation2 [shape = 'u8[4096]{0}', space=vmem, size = 0x1000, scoped, tag = 'input window, operand 0, single buffered']
    #allocation3 [shape = 's32[1]{0}', space=sflag, size = 0x4, scoped, tag = 'scoped memory for generator_forward.2']
    #allocation4 [shape = 's32[1]{0}', space=sflag, size = 0x4, scoped, tag = 'scoped memory for generator_forward.2']
    #allocation5 [shape = 'u8[262144]{0}', space=vmem, size = 0x40000, scoped, tag = 'input window, operand 1, single buffered']
    #allocation6 [shape = 's32[1]{0}', space=sflag, size = 0x4, scoped, tag = 'scoped memory for generator_forward.2']
    #allocation7 [shape = 'u8[512]{0}', space=vmem, size = 0x400, scoped, tag = 'input window, operand 2, single buffered']
    #allocation8 [shape = 'u8[65536]{0}', space=vmem, size = 0x10000, scoped, tag = 'input window, operand 3, single buffered']
    #allocation9 [shape = 's32[1]{0}', space=sflag, size = 0x4, scoped, tag = 'scoped memory for generator_forward.2']
    #allocation10 [shape = 'u8[1024]{0}', space=vmem, size = 0x400, scoped, tag = 'input window, operand 4, single buffered']
    #allocation11 [shape = 'u8[1024]{0}', space=vmem, size = 0x400, scoped, tag = 'input window, operand 5, single buffered']
    #allocation12 [shape = 's32[1]{0}', space=sflag, size = 0x4, scoped, tag = 'scoped memory for generator_forward.2']
    #allocation13 [shape = 'u8[1024]{0}', space=vmem, size = 0x400, scoped, tag = 'input window, operand 6, single buffered']
    #allocation14 [shape = 'u8[262144]{0}', space=vmem, size = 0x40000, scoped, tag = 'input window, operand 7, single buffered']
    #allocation15 [shape = 's32[1]{0}', space=sflag, size = 0x4, scoped, tag = 'scoped memory for generator_forward.2']
    #allocation16 [shape = 'u8[2048]{0}', space=vmem, size = 0x800, scoped, tag = 'input window, operand 8, single buffered']
    #allocation17 [shape = 'u8[2048]{0}', space=vmem, size = 0x800, scoped, tag = 'input window, operand 9, single buffered']
    #allocation18 [shape = 's32[1]{0}', space=sflag, size = 0x4, scoped, tag = 'scoped memory for generator_forward.2']
    #allocation19 [shape = 'u8[2048]{0}', space=vmem, size = 0x800, scoped, tag = 'input window, operand 10, single buffered']
    #allocation20 [shape = 'u8[1048576]{0}', space=vmem, size = 0x100000, scoped, tag = 'input window, operand 11, single buffered']
    #allocation21 [shape = 's32[1]{0}', space=sflag, size = 0x4, scoped, tag = 'scoped memory for generator_forward.2']
    #allocation22 [shape = 'u8[4096]{0}', space=vmem, size = 0x1000, scoped, tag = 'input window, operand 12, single buffered']
    #allocation23 [shape = 'u8[4096]{0}', space=vmem, size = 0x1000, scoped, tag = 'input window, operand 13, single buffered']
    #allocation24 [shape = 's32[1]{0}', space=sflag, size = 0x4, scoped, tag = 'scoped memory for generator_forward.2']
    #allocation25 [shape = 'u8[4096]{0}', space=vmem, size = 0x1000, scoped, tag = 'input window, operand 14, single buffered']
    #allocation26 [shape = 'u8[4096]{0}', space=vmem, size = 0x1000, scoped, tag = 'output window, operand 0, single buffered']
    %20 = vsyncpa [#allocation3], 0
    %21 = vsyncpa [#allocation6], 0
    %22 = vsyncpa [#allocation9], 0
    %23 = vsyncpa [#allocation12], 0
    %24 = vsyncpa [#allocation15], 0
    %25 = vsyncpa [#allocation18], 0
    %26 = vsyncpa [#allocation21], 0
    %27 = vsyncpa [#allocation24], 0
    %28 = vsyncpa [#allocation4], 0
    // Predicated region
    $region2: #{generator_forward.2} parent=1 // pred_check
      _
    $region3: #{generator_forward.2} parent=1 // pred_check_branch
      %30 = sbr.rel (0) target = $region5
    $region4: #{generator_forward.2} parent=1 // pred_region
      %s32 = ssub.s32 128, 128
      %33 = vsyncadd [#allocation3], %s32
      %s35 = sshll.u32 [#allocation2], 4
      %s36 = int_to_ptr.vmem [resolvable:$true] %s35
      %38 = dma.hbm_to_vmem [thread:$0]  %s0, 128, %s36, [#allocation3]
    $region5: #{generator_forward.2} parent=1 // pred_fallthru
      _
    // Predicated region
    $region6: #{generator_forward.2} parent=1 // pred_check
      _
    $region7: #{generator_forward.2} parent=1 // pred_check_branch
      %40 = sbr.rel (0) target = $region9
    $region8: #{generator_forward.2} parent=1 // pred_region
      %s42 = ssub.s32 8192, 8192
      %43 = vsyncadd [#allocation6], %s42
      %s44 = sshll.u32 [#allocation5], 4
      %s45 = int_to_ptr.vmem [resolvable:$true] %s44
      %50 = dma.hbm_to_vmem [thread:$0]  %s1, 8192, %s45, [#allocation6], 64, 64, 4
    $region9: #{generator_forward.2} parent=1 // pred_fallthru
      _
    // Predicated region
    $region10: #{generator_forward.2} parent=1 // pred_check
      _
    $region11: #{generator_forward.2} parent=1 // pred_check_branch
      %52 = sbr.rel (0) target = $region13
    $region12: #{generator_forward.2} parent=1 // pred_region
      %s54 = ssub.s32 16, 16
      %55 = vsyncadd [#allocation6], %s54
      %s57 = sshll.u32 [#allocation7], 4
      %s58 = int_to_ptr.vmem [resolvable:$true] %s57
      %60 = dma.hbm_to_vmem [thread:$0]  %s2, 16, %s58, [#allocation6]
    $region13: #{generator_forward.2} parent=1 // pred_fallthru
      _
    // Predicated region
    $region14: #{generator_forward.2} parent=1 // pred_check
      _
    $region15: #{generator_forward.2} parent=1 // pred_check_branch
      %62 = sbr.rel (0) target = $region17
    $region16: #{generator_forward.2} parent=1 // pred_region
      %s64 = ssub.s32 2048, 2048
      %65 = vsyncadd [#allocation9], %s64
      %s66 = sshll.u32 [#allocation8], 4
      %s67 = int_to_ptr.vmem [resolvable:$true] %s66
      %72 = dma.hbm_to_vmem [thread:$0]  %s3, 2048, %s67, [#allocation9], 128, 128, 8
    $region17: #{generator_forward.2} parent=1 // pred_fallthru
      _
    // Predicated region
    $region18: #{generator_forward.2} parent=1 // pred_check
      _
    $region19: #{generator_forward.2} parent=1 // pred_check_branch
      %74 = sbr.rel (0) target = $region21
    $region20: #{generator_forward.2} parent=1 // pred_region
      %s76 = ssub.s32 32, 32
      %77 = vsyncadd [#allocation9], %s76
      %s79 = sshll.u32 [#allocation10], 4
      %s80 = int_to_ptr.vmem [resolvable:$true] %s79
      %82 = dma.hbm_to_vmem [thread:$0]  %s4, 32, %s80, [#allocation9]
    $region21: #{generator_forward.2} parent=1 // pred_fallthru
      _
    // Predicated region
    $region22: #{generator_forward.2} parent=1 // pred_check
      _
    $region23: #{generator_forward.2} parent=1 // pred_check_branch
      %84 = sbr.rel (0) target = $region25
    $region24: #{generator_forward.2} parent=1 // pred_region
      %s86 = ssub.s32 32, 32
      %87 = vsyncadd [#allocation12], %s86
      %s89 = sshll.u32 [#allocation11], 4
      %s90 = int_to_ptr.vmem [resolvable:$true] %s89
      %92 = dma.hbm_to_vmem [thread:$0]  %s5, 32, %s90, [#allocation12]
    $region25: #{generator_forward.2} parent=1 // pred_fallthru
      _
    // Predicated region
    $region26: #{generator_forward.2} parent=1 // pred_check
      _
    $region27: #{generator_forward.2} parent=1 // pred_check_branch
      %94 = sbr.rel (0) target = $region29
    $region28: #{generator_forward.2} parent=1 // pred_region
      %s96 = ssub.s32 32, 32
      %97 = vsyncadd [#allocation12], %s96
      %s99 = sshll.u32 [#allocation13], 4
      %s100 = int_to_ptr.vmem [resolvable:$true] %s99
      %102 = dma.hbm_to_vmem [thread:$0]  %s6, 32, %s100, [#allocation12]
    $region29: #{generator_forward.2} parent=1 // pred_fallthru
      _
    // Predicated region
    $region30: #{generator_forward.2} parent=1 // pred_check
      _
    $region31: #{generator_forward.2} parent=1 // pred_check_branch
      %104 = sbr.rel (0) target = $region33
    $region32: #{generator_forward.2} parent=1 // pred_region
      %s106 = ssub.s32 8192, 8192
      %107 = vsyncadd [#allocation15], %s106
      %s108 = sshll.u32 [#allocation14], 4
      %s109 = int_to_ptr.vmem [resolvable:$true] %s108
      %114 = dma.hbm_to_vmem [thread:$0]  %s7, 8192, %s109, [#allocation15], 256, 256, 16
    $region33: #{generator_forward.2} parent=1 // pred_fallthru
      _
    // Predicated region
    $region34: #{generator_forward.2} parent=1 // pred_check
      _
    $region35: #{generator_forward.2} parent=1 // pred_check_branch
      %116 = sbr.rel (0) target = $region37
    $region36: #{generator_forward.2} parent=1 // pred_region
      %s118 = ssub.s32 64, 64
      %119 = vsyncadd [#allocation15], %s118
      %s121 = sshll.u32 [#allocation16], 4
      %s122 = int_to_ptr.vmem [resolvable:$true] %s121
      %124 = dma.hbm_to_vmem [thread:$0]  %s8, 64, %s122, [#allocation15]
    $region37: #{generator_forward.2} parent=1 // pred_fallthru
      _
    // Predicated region
    $region38: #{generator_forward.2} parent=1 // pred_check
      _
    $region39: #{generator_forward.2} parent=1 // pred_check_branch
      %126 = sbr.rel (0) target = $region41
    $region40: #{generator_forward.2} parent=1 // pred_region
      %s128 = ssub.s32 64, 64
      %129 = vsyncadd [#allocation18], %s128
      %s131 = sshll.u32 [#allocation17], 4
      %s132 = int_to_ptr.vmem [resolvable:$true] %s131
      %134 = dma.hbm_to_vmem [thread:$0]  %s9, 64, %s132, [#allocation18]
    $region41: #{generator_forward.2} parent=1 // pred_fallthru
      _
    // Predicated region
    $region42: #{generator_forward.2} parent=1 // pred_check
      _
    $region43: #{generator_forward.2} parent=1 // pred_check_branch
      %136 = sbr.rel (0) target = $region45
    $region44: #{generator_forward.2} parent=1 // pred_region
      %s138 = ssub.s32 64, 64
      %139 = vsyncadd [#allocation18], %s138
      %s141 = sshll.u32 [#allocation19], 4
      %s142 = int_to_ptr.vmem [resolvable:$true] %s141
      %144 = dma.hbm_to_vmem [thread:$0]  %s10, 64, %s142, [#allocation18]
    $region45: #{generator_forward.2} parent=1 // pred_fallthru
      _
    // Predicated region
    $region46: #{generator_forward.2} parent=1 // pred_check
      _
    $region47: #{generator_forward.2} parent=1 // pred_check_branch
      %146 = sbr.rel (0) target = $region49
    $region48: #{generator_forward.2} parent=1 // pred_region
      %s148 = ssub.s32 32768, 32768
      %149 = vsyncadd [#allocation21], %s148
      %s150 = sshll.u32 [#allocation20], 4
      %s151 = int_to_ptr.vmem [resolvable:$true] %s150
      %156 = dma.hbm_to_vmem [thread:$0]  %s11, 32768, %s151, [#allocation21], 512, 512, 32
    $region49: #{generator_forward.2} parent=1 // pred_fallthru
      _
    // Predicated region
    $region50: #{generator_forward.2} parent=1 // pred_check
      _
    $region51: #{generator_forward.2} parent=1 // pred_check_branch
      %158 = sbr.rel (0) target = $region53
    $region52: #{generator_forward.2} parent=1 // pred_region
      %s160 = ssub.s32 128, 128
      %161 = vsyncadd [#allocation21], %s160
      %s163 = sshll.u32 [#allocation22], 4
      %s164 = int_to_ptr.vmem [resolvable:$true] %s163
      %166 = dma.hbm_to_vmem [thread:$0]  %s12, 128, %s164, [#allocation21]
    $region53: #{generator_forward.2} parent=1 // pred_fallthru
      _
    // Predicated region
    $region54: #{generator_forward.2} parent=1 // pred_check
      _
    $region55: #{generator_forward.2} parent=1 // pred_check_branch
      %168 = sbr.rel (0) target = $region57
    $region56: #{generator_forward.2} parent=1 // pred_region
      %s170 = ssub.s32 128, 128
      %171 = vsyncadd [#allocation24], %s170
      %s173 = sshll.u32 [#allocation23], 4
      %s174 = int_to_ptr.vmem [resolvable:$true] %s173
      %176 = dma.hbm_to_vmem [thread:$0]  %s13, 128, %s174, [#allocation24]
    $region57: #{generator_forward.2} parent=1 // pred_fallthru
      _
    // Predicated region
    $region58: #{generator_forward.2} parent=1 // pred_check
      _
    $region59: #{generator_forward.2} parent=1 // pred_check_branch
      %178 = sbr.rel (0) target = $region61
    $region60: #{generator_forward.2} parent=1 // pred_region
      %s180 = ssub.s32 128, 128
      %181 = vsyncadd [#allocation24], %s180
      %s183 = sshll.u32 [#allocation25], 4
      %s184 = int_to_ptr.vmem [resolvable:$true] %s183
      %186 = dma.hbm_to_vmem [thread:$0]  %s14, 128, %s184, [#allocation24]
    $region61: #{generator_forward.2} parent=1 // pred_fallthru
      _
    // Predicated region
    $region62: #{generator_forward.2} parent=1 // pred_check
      _
    $region63: #{generator_forward.2} parent=1 // pred_check_branch
      %188 = sbr.rel (0) target = $region65
    $region64: #{generator_forward.2} parent=1 // pred_region
      %189 = dma.done [#allocation3], 128
    $region65: #{generator_forward.2} parent=1 // pred_fallthru
      _
    // Predicated region
    $region66: #{generator_forward.2} parent=1 // pred_check
      _
    $region67: #{generator_forward.2} parent=1 // pred_check_branch
      %191 = sbr.rel (0) target = $region69
    $region68: #{generator_forward.2} parent=1 // pred_region
      %192 = dma.done [#allocation6], 8192
    $region69: #{generator_forward.2} parent=1 // pred_fallthru
      _
    // Predicated region
    $region70: #{generator_forward.2} parent=1 // pred_check
      _
    $region71: #{generator_forward.2} parent=1 // pred_check_branch
      %194 = sbr.rel (0) target = $region73
    $region72: #{generator_forward.2} parent=1 // pred_region
      %195 = dma.done [#allocation6], 16
    $region73: #{generator_forward.2} parent=1 // pred_fallthru
      _
    // Predicated region
    $region74: #{generator_forward.2} parent=1 // pred_check
      _
    $region75: #{generator_forward.2} parent=1 // pred_check_branch
      %197 = sbr.rel (0) target = $region77
    $region76: #{generator_forward.2} parent=1 // pred_region
      %198 = dma.done [#allocation9], 2048
    $region77: #{generator_forward.2} parent=1 // pred_fallthru
      _
    // Predicated region
    $region78: #{generator_forward.2} parent=1 // pred_check
      _
    $region79: #{generator_forward.2} parent=1 // pred_check_branch
      %200 = sbr.rel (0) target = $region81
    $region80: #{generator_forward.2} parent=1 // pred_region
      %201 = dma.done [#allocation9], 32
    $region81: #{generator_forward.2} parent=1 // pred_fallthru
      _
    // Predicated region
    $region82: #{generator_forward.2} parent=1 // pred_check
      _
    $region83: #{generator_forward.2} parent=1 // pred_check_branch
      %203 = sbr.rel (0) target = $region85
    $region84: #{generator_forward.2} parent=1 // pred_region
      %204 = dma.done [#allocation12], 32
    $region85: #{generator_forward.2} parent=1 // pred_fallthru
      _
    // Predicated region
    $region86: #{generator_forward.2} parent=1 // pred_check
      _
    $region87: #{generator_forward.2} parent=1 // pred_check_branch
      %206 = sbr.rel (0) target = $region89
    $region88: #{generator_forward.2} parent=1 // pred_region
      %207 = dma.done [#allocation12], 32
    $region89: #{generator_forward.2} parent=1 // pred_fallthru
      _
    // Predicated region
    $region90: #{generator_forward.2} parent=1 // pred_check
      _
    $region91: #{generator_forward.2} parent=1 // pred_check_branch
      %209 = sbr.rel (0) target = $region93
    $region92: #{generator_forward.2} parent=1 // pred_region
      %210 = dma.done [#allocation15], 8192
    $region93: #{generator_forward.2} parent=1 // pred_fallthru
      _
    // Predicated region
    $region94: #{generator_forward.2} parent=1 // pred_check
      _
    $region95: #{generator_forward.2} parent=1 // pred_check_branch
      %212 = sbr.rel (0) target = $region97
    $region96: #{generator_forward.2} parent=1 // pred_region
      %213 = dma.done [#allocation15], 64
    $region97: #{generator_forward.2} parent=1 // pred_fallthru
      _
    // Predicated region
    $region98: #{generator_forward.2} parent=1 // pred_check
      _
    $region99: #{generator_forward.2} parent=1 // pred_check_branch
      %215 = sbr.rel (0) target = $region101
    $region100: #{generator_forward.2} parent=1 // pred_region
      %216 = dma.done [#allocation18], 64
    $region101: #{generator_forward.2} parent=1 // pred_fallthru
      _
    // Predicated region
    $region102: #{generator_forward.2} parent=1 // pred_check
      _
    $region103: #{generator_forward.2} parent=1 // pred_check_branch
      %218 = sbr.rel (0) target = $region105
    $region104: #{generator_forward.2} parent=1 // pred_region
      %219 = dma.done [#allocation18], 64
    $region105: #{generator_forward.2} parent=1 // pred_fallthru
      _
    // Predicated region
    $region106: #{generator_forward.2} parent=1 // pred_check
      _
    $region107: #{generator_forward.2} parent=1 // pred_check_branch
      %221 = sbr.rel (0) target = $region109
    $region108: #{generator_forward.2} parent=1 // pred_region
      %222 = dma.done [#allocation21], 32768
    $region109: #{generator_forward.2} parent=1 // pred_fallthru
      _
    // Predicated region
    $region110: #{generator_forward.2} parent=1 // pred_check
      _
    $region111: #{generator_forward.2} parent=1 // pred_check_branch
      %224 = sbr.rel (0) target = $region113
    $region112: #{generator_forward.2} parent=1 // pred_region
      %225 = dma.done [#allocation21], 128
    $region113: #{generator_forward.2} parent=1 // pred_fallthru
      _
    // Predicated region
    $region114: #{generator_forward.2} parent=1 // pred_check
      _
    $region115: #{generator_forward.2} parent=1 // pred_check_branch
      %227 = sbr.rel (0) target = $region117
    $region116: #{generator_forward.2} parent=1 // pred_region
      %228 = dma.done [#allocation24], 128
    $region117: #{generator_forward.2} parent=1 // pred_fallthru
      _
    // Predicated region
    $region118: #{generator_forward.2} parent=1 // pred_check
      _
    $region119: #{generator_forward.2} parent=1 // pred_check_branch
      %230 = sbr.rel (0) target = $region121
    $region120: #{generator_forward.2} parent=1 // pred_region
      %231 = dma.done [#allocation24], 128
    $region121: #{generator_forward.2} parent=1 // pred_fallthru
      _
    %v233 = vld [vmem:[#allocation2] sm:$0xff]
    %v234 = vld [vmem:[#allocation5] sm:$0xf]
    %v235 = vld [vmem:[#allocation5 + $0x4] sm:$0xf]
    %v236 = vld [vmem:[#allocation5 + $0x8] sm:$0xf]
    %v237 = vld [vmem:[#allocation5 + $0xc] sm:$0xf]
    %v238 = vld [vmem:[#allocation5 + $0x10] sm:$0xf]
    %v239 = vld [vmem:[#allocation5 + $0x14] sm:$0xf]
    %v240 = vld [vmem:[#allocation5 + $0x18] sm:$0xf]
    %v241 = vld [vmem:[#allocation5 + $0x1c] sm:$0xf]
    %v242 = vld [vmem:[#allocation5 + $0x20] sm:$0xf]
    %v243 = vld [vmem:[#allocation5 + $0x24] sm:$0xf]
    %v244 = vld [vmem:[#allocation5 + $0x28] sm:$0xf]
    %v245 = vld [vmem:[#allocation5 + $0x2c] sm:$0xf]
    %v246 = vld [vmem:[#allocation5 + $0x30] sm:$0xf]
    %v247 = vld [vmem:[#allocation5 + $0x34] sm:$0xf]
    %v248 = vld [vmem:[#allocation5 + $0x38] sm:$0xf]
    %v249 = vld [vmem:[#allocation5 + $0x3c] sm:$0xf]
    %v250 = vld [vmem:[#allocation5 + $0x40] sm:$0xf]
    %v251 = vld [vmem:[#allocation5 + $0x44] sm:$0xf]
    %v252 = vld [vmem:[#allocation5 + $0x48] sm:$0xf]
    %v253 = vld [vmem:[#allocation5 + $0x4c] sm:$0xf]
    %v254 = vld [vmem:[#allocation5 + $0x50] sm:$0xf]
    %v255 = vld [vmem:[#allocation5 + $0x54] sm:$0xf]
    %v256 = vld [vmem:[#allocation5 + $0x58] sm:$0xf]
    %v257 = vld [vmem:[#allocation5 + $0x5c] sm:$0xf]
    %v258 = vld [vmem:[#allocation5 + $0x60] sm:$0xf]
    %v259 = vld [vmem:[#allocation5 + $0x64] sm:$0xf]
    %v260 = vld [vmem:[#allocation5 + $0x68] sm:$0xf]
    %v261 = vld [vmem:[#allocation5 + $0x6c] sm:$0xf]
    %v262 = vld [vmem:[#allocation5 + $0x70] sm:$0xf]
    %v263 = vld [vmem:[#allocation5 + $0x74] sm:$0xf]
    %v264 = vld [vmem:[#allocation5 + $0x78] sm:$0xf]
    %v265 = vld [vmem:[#allocation5 + $0x7c] sm:$0xf]
    %v266 = vld [vmem:[#allocation5 + $0x80] sm:$0xf]
    %v267 = vld [vmem:[#allocation5 + $0x84] sm:$0xf]
    %v268 = vld [vmem:[#allocation5 + $0x88] sm:$0xf]
    %v269 = vld [vmem:[#allocation5 + $0x8c] sm:$0xf]
    %v270 = vld [vmem:[#allocation5 + $0x90] sm:$0xf]
    %v271 = vld [vmem:[#allocation5 + $0x94] sm:$0xf]
    %v272 = vld [vmem:[#allocation5 + $0x98] sm:$0xf]
    %v273 = vld [vmem:[#allocation5 + $0x9c] sm:$0xf]
    %v274 = vld [vmem:[#allocation5 + $0xa0] sm:$0xf]
    %v275 = vld [vmem:[#allocation5 + $0xa4] sm:$0xf]
    %v276 = vld [vmem:[#allocation5 + $0xa8] sm:$0xf]
    %v277 = vld [vmem:[#allocation5 + $0xac] sm:$0xf]
    %v278 = vld [vmem:[#allocation5 + $0xb0] sm:$0xf]
    %v279 = vld [vmem:[#allocation5 + $0xb4] sm:$0xf]
    %v280 = vld [vmem:[#allocation5 + $0xb8] sm:$0xf]
    %v281 = vld [vmem:[#allocation5 + $0xbc] sm:$0xf]
    %v282 = vld [vmem:[#allocation5 + $0xc0] sm:$0xf]
    %v283 = vld [vmem:[#allocation5 + $0xc4] sm:$0xf]
    %v284 = vld [vmem:[#allocation5 + $0xc8] sm:$0xf]
    %v285 = vld [vmem:[#allocation5 + $0xcc] sm:$0xf]
    %v286 = vld [vmem:[#allocation5 + $0xd0] sm:$0xf]
    %v287 = vld [vmem:[#allocation5 + $0xd4] sm:$0xf]
    %v288 = vld [vmem:[#allocation5 + $0xd8] sm:$0xf]
    %v289 = vld [vmem:[#allocation5 + $0xdc] sm:$0xf]
    %v290 = vld [vmem:[#allocation5 + $0xe0] sm:$0xf]
    %v291 = vld [vmem:[#allocation5 + $0xe4] sm:$0xf]
    %v292 = vld [vmem:[#allocation5 + $0xe8] sm:$0xf]
    %v293 = vld [vmem:[#allocation5 + $0xec] sm:$0xf]
    %v294 = vld [vmem:[#allocation5 + $0xf0] sm:$0xf]
    %v295 = vld [vmem:[#allocation5 + $0xf4] sm:$0xf]
    %v296 = vld [vmem:[#allocation5 + $0xf8] sm:$0xf]
    %v297 = vld [vmem:[#allocation5 + $0xfc] sm:$0xf]
    %v298 = vld [vmem:[#allocation5 + $0x100] sm:$0xf]
    %v299 = vld [vmem:[#allocation5 + $0x104] sm:$0xf]
    %v300 = vld [vmem:[#allocation5 + $0x108] sm:$0xf]
    %v301 = vld [vmem:[#allocation5 + $0x10c] sm:$0xf]
    %v302 = vld [vmem:[#allocation5 + $0x110] sm:$0xf]
    %v303 = vld [vmem:[#allocation5 + $0x114] sm:$0xf]
    %v304 = vld [vmem:[#allocation5 + $0x118] sm:$0xf]
    %v305 = vld [vmem:[#allocation5 + $0x11c] sm:$0xf]
    %v306 = vld [vmem:[#allocation5 + $0x120] sm:$0xf]
    %v307 = vld [vmem:[#allocation5 + $0x124] sm:$0xf]
    %v308 = vld [vmem:[#allocation5 + $0x128] sm:$0xf]
    %v309 = vld [vmem:[#allocation5 + $0x12c] sm:$0xf]
    %v310 = vld [vmem:[#allocation5 + $0x130] sm:$0xf]
    %v311 = vld [vmem:[#allocation5 + $0x134] sm:$0xf]
    %v312 = vld [vmem:[#allocation5 + $0x138] sm:$0xf]
    %v313 = vld [vmem:[#allocation5 + $0x13c] sm:$0xf]
    %v314 = vld [vmem:[#allocation5 + $0x140] sm:$0xf]
    %v315 = vld [vmem:[#allocation5 + $0x144] sm:$0xf]
    %v316 = vld [vmem:[#allocation5 + $0x148] sm:$0xf]
    %v317 = vld [vmem:[#allocation5 + $0x14c] sm:$0xf]
    %v318 = vld [vmem:[#allocation5 + $0x150] sm:$0xf]
    %v319 = vld [vmem:[#allocation5 + $0x154] sm:$0xf]
    %v320 = vld [vmem:[#allocation5 + $0x158] sm:$0xf]
    %v321 = vld [vmem:[#allocation5 + $0x15c] sm:$0xf]
    %v322 = vld [vmem:[#allocation5 + $0x160] sm:$0xf]
    %v323 = vld [vmem:[#allocation5 + $0x164] sm:$0xf]
    %v324 = vld [vmem:[#allocation5 + $0x168] sm:$0xf]
    %v325 = vld [vmem:[#allocation5 + $0x16c] sm:$0xf]
    %v326 = vld [vmem:[#allocation5 + $0x170] sm:$0xf]
    %v327 = vld [vmem:[#allocation5 + $0x174] sm:$0xf]
    %v328 = vld [vmem:[#allocation5 + $0x178] sm:$0xf]
    %v329 = vld [vmem:[#allocation5 + $0x17c] sm:$0xf]
    %v330 = vld [vmem:[#allocation5 + $0x180] sm:$0xf]
    %v331 = vld [vmem:[#allocation5 + $0x184] sm:$0xf]
    %v332 = vld [vmem:[#allocation5 + $0x188] sm:$0xf]
    %v333 = vld [vmem:[#allocation5 + $0x18c] sm:$0xf]
    %v334 = vld [vmem:[#allocation5 + $0x190] sm:$0xf]
    %v335 = vld [vmem:[#allocation5 + $0x194] sm:$0xf]
    %v336 = vld [vmem:[#allocation5 + $0x198] sm:$0xf]
    %v337 = vld [vmem:[#allocation5 + $0x19c] sm:$0xf]
    %v338 = vld [vmem:[#allocation5 + $0x1a0] sm:$0xf]
    %v339 = vld [vmem:[#allocation5 + $0x1a4] sm:$0xf]
    %v340 = vld [vmem:[#allocation5 + $0x1a8] sm:$0xf]
    %v341 = vld [vmem:[#allocation5 + $0x1ac] sm:$0xf]
    %v342 = vld [vmem:[#allocation5 + $0x1b0] sm:$0xf]
    %v343 = vld [vmem:[#allocation5 + $0x1b4] sm:$0xf]
    %v344 = vld [vmem:[#allocation5 + $0x1b8] sm:$0xf]
    %v345 = vld [vmem:[#allocation5 + $0x1bc] sm:$0xf]
    %v346 = vld [vmem:[#allocation5 + $0x1c0] sm:$0xf]
    %v347 = vld [vmem:[#allocation5 + $0x1c4] sm:$0xf]
    %v348 = vld [vmem:[#allocation5 + $0x1c8] sm:$0xf]
    %v349 = vld [vmem:[#allocation5 + $0x1cc] sm:$0xf]
    %v350 = vld [vmem:[#allocation5 + $0x1d0] sm:$0xf]
    %v351 = vld [vmem:[#allocation5 + $0x1d4] sm:$0xf]
    %v352 = vld [vmem:[#allocation5 + $0x1d8] sm:$0xf]
    %v353 = vld [vmem:[#allocation5 + $0x1dc] sm:$0xf]
    %v354 = vld [vmem:[#allocation5 + $0x1e0] sm:$0xf]
    %v355 = vld [vmem:[#allocation5 + $0x1e4] sm:$0xf]
    %v356 = vld [vmem:[#allocation5 + $0x1e8] sm:$0xf]
    %v357 = vld [vmem:[#allocation5 + $0x1ec] sm:$0xf]
    %v358 = vld [vmem:[#allocation5 + $0x1f0] sm:$0xf]
    %v359 = vld [vmem:[#allocation5 + $0x1f4] sm:$0xf]
    %v360 = vld [vmem:[#allocation5 + $0x1f8] sm:$0xf]
    %v361 = vld [vmem:[#allocation5 + $0x1fc] sm:$0xf]
    %v362 = vld [vmem:[#allocation7] sm:$0x1]
    %v364 = vlaneseq
    %v365 = vshrl.u32 %v364, 7
    %v366 = vsub.s32 0, %v365
    %v367 = vrot.slane %v362, %v366
    %v370 = vcombine.high %v233, %v233
    %v372 = vunpack.c.l.s4 1966171168
    %v373 = vunpack.c.0.s8 %v372
    %v374 = vlaneseq
    %v375 = vshrl.u32 %v374, 7
    %v376 = vsub.s32 %v373, %v375
    %v377 = vrot.slane %v233, %v376
    %v379 = vunpack.c.l.s4 1966171168
    %v380 = vunpack.c.0.s8 %v379
    %v381 = vlaneseq
    %v382 = vshrl.u32 %v381, 7
    %v383 = vsub.s32 %v380, %v382
    %v384 = vrot.slane %v370, %v383
    %v385 = vcombine.high %v377, %v377
    %v386 = vcombine.high %v384, %v384
    %v388 = vunpack.c.l.s4 1966171168
    %v389 = vunpack.c.0.s8 %v388
    %v390 = vlaneseq
    %v391 = vshrl.u32 %v390, 7
    %v392 = vsub.s32 %v389, %v391
    %v393 = vrot.slane %v377, %v392
    %v395 = vunpack.c.l.s4 1966171168
    %v396 = vunpack.c.0.s8 %v395
    %v397 = vlaneseq
    %v398 = vshrl.u32 %v397, 7
    %v399 = vsub.s32 %v396, %v398
    %v400 = vrot.slane %v384, %v399
    %v402 = vunpack.c.l.s4 1966171168
    %v403 = vunpack.c.0.s8 %v402
    %v404 = vlaneseq
    %v405 = vshrl.u32 %v404, 7
    %v406 = vsub.s32 %v403, %v405
    %v407 = vrot.slane %v385, %v406
    %v409 = vunpack.c.l.s4 1966171168
    %v410 = vunpack.c.0.s8 %v409
    %v411 = vlaneseq
    %v412 = vshrl.u32 %v411, 7
    %v413 = vsub.s32 %v410, %v412
    %v414 = vrot.slane %v386, %v413
    %v415 = vcombine.high %v393, %v393
    %v416 = vcombine.high %v400, %v400
    %v417 = vcombine.high %v407, %v407
    %v418 = vcombine.high %v414, %v414
    %v555 = vunpack.c.l.b16 %v234
    %v556 = vunpack.c.l.b16 %v235
    %v557 = vunpack.c.l.b16 %v236
    %v558 = vunpack.c.l.b16 %v237
    %v559 = vunpack.c.l.b16 %v238
    %v560 = vunpack.c.l.b16 %v239
    %v561 = vunpack.c.l.b16 %v240
    %v562 = vunpack.c.l.b16 %v241
    %v563 = vunpack.c.l.b16 %v242
    %v564 = vunpack.c.l.b16 %v243
    %v565 = vunpack.c.l.b16 %v244
    %v566 = vunpack.c.l.b16 %v245
    %v567 = vunpack.c.l.b16 %v246
    %v568 = vunpack.c.l.b16 %v247
    %v569 = vunpack.c.l.b16 %v248
    %v570 = vunpack.c.l.b16 %v249
    %v571 = vunpack.c.l.b16 %v250
    %v572 = vunpack.c.l.b16 %v251
    %v573 = vunpack.c.l.b16 %v252
    %v574 = vunpack.c.l.b16 %v253
    %v575 = vunpack.c.l.b16 %v254
    %v576 = vunpack.c.l.b16 %v255
    %v577 = vunpack.c.l.b16 %v256
    %v578 = vunpack.c.l.b16 %v257
    %v579 = vunpack.c.l.b16 %v258
    %v580 = vunpack.c.l.b16 %v259
    %v581 = vunpack.c.l.b16 %v260
    %v582 = vunpack.c.l.b16 %v261
    %v583 = vunpack.c.l.b16 %v262
    %v584 = vunpack.c.l.b16 %v263
    %v585 = vunpack.c.l.b16 %v264
    %v586 = vunpack.c.l.b16 %v265
    %v587 = vunpack.c.l.b16 %v266
    %v588 = vunpack.c.l.b16 %v267
    %v589 = vunpack.c.l.b16 %v268
    %v590 = vunpack.c.l.b16 %v269
    %v591 = vunpack.c.l.b16 %v270
    %v592 = vunpack.c.l.b16 %v271
    %v593 = vunpack.c.l.b16 %v272
    %v594 = vunpack.c.l.b16 %v273
    %v595 = vunpack.c.l.b16 %v274
    %v596 = vunpack.c.l.b16 %v275
    %v597 = vunpack.c.l.b16 %v276
    %v598 = vunpack.c.l.b16 %v277
    %v599 = vunpack.c.l.b16 %v278
    %v600 = vunpack.c.l.b16 %v279
    %v601 = vunpack.c.l.b16 %v280
    %v602 = vunpack.c.l.b16 %v281
    %v603 = vunpack.c.l.b16 %v282
    %v604 = vunpack.c.l.b16 %v283
    %v605 = vunpack.c.l.b16 %v284
    %v606 = vunpack.c.l.b16 %v285
    %v607 = vunpack.c.l.b16 %v286
    %v608 = vunpack.c.l.b16 %v287
    %v609 = vunpack.c.l.b16 %v288
    %v610 = vunpack.c.l.b16 %v289
    %v611 = vunpack.c.l.b16 %v290
    %v612 = vunpack.c.l.b16 %v291
    %v613 = vunpack.c.l.b16 %v292
    %v614 = vunpack.c.l.b16 %v293
    %v615 = vunpack.c.l.b16 %v294
    %v616 = vunpack.c.l.b16 %v295
    %v617 = vunpack.c.l.b16 %v296
    %v618 = vunpack.c.l.b16 %v297
    %v619 = vunpack.c.l.b16 %v298
    %v620 = vunpack.c.l.b16 %v299
    %v621 = vunpack.c.l.b16 %v300
    %v622 = vunpack.c.l.b16 %v301
    %v623 = vunpack.c.l.b16 %v302
    %v624 = vunpack.c.l.b16 %v303
    %v625 = vunpack.c.l.b16 %v304
    %v626 = vunpack.c.l.b16 %v305
    %v627 = vunpack.c.l.b16 %v306
    %v628 = vunpack.c.l.b16 %v307
    %v629 = vunpack.c.l.b16 %v308
    %v630 = vunpack.c.l.b16 %v309
    %v631 = vunpack.c.l.b16 %v310
    %v632 = vunpack.c.l.b16 %v311
    %v633 = vunpack.c.l.b16 %v312
    %v634 = vunpack.c.l.b16 %v313
    %v635 = vunpack.c.l.b16 %v314
    %v636 = vunpack.c.l.b16 %v315
    %v637 = vunpack.c.l.b16 %v316
    %v638 = vunpack.c.l.b16 %v317
    %v639 = vunpack.c.l.b16 %v318
    %v640 = vunpack.c.l.b16 %v319
    %v641 = vunpack.c.l.b16 %v320
    %v642 = vunpack.c.l.b16 %v321
    %v643 = vunpack.c.l.b16 %v322
    %v644 = vunpack.c.l.b16 %v323
    %v645 = vunpack.c.l.b16 %v324
    %v646 = vunpack.c.l.b16 %v325
    %v647 = vunpack.c.l.b16 %v326
    %v648 = vunpack.c.l.b16 %v327
    %v649 = vunpack.c.l.b16 %v328
    %v650 = vunpack.c.l.b16 %v329
    %v651 = vunpack.c.l.b16 %v330
    %v652 = vunpack.c.l.b16 %v331
    %v653 = vunpack.c.l.b16 %v332
    %v654 = vunpack.c.l.b16 %v333
    %v655 = vunpack.c.l.b16 %v334
    %v656 = vunpack.c.l.b16 %v335
    %v657 = vunpack.c.l.b16 %v336
    %v658 = vunpack.c.l.b16 %v337
    %v659 = vunpack.c.l.b16 %v338
    %v660 = vunpack.c.l.b16 %v339
    %v661 = vunpack.c.l.b16 %v340
    %v662 = vunpack.c.l.b16 %v341
    %v663 = vunpack.c.l.b16 %v342
    %v664 = vunpack.c.l.b16 %v343
    %v665 = vunpack.c.l.b16 %v344
    %v666 = vunpack.c.l.b16 %v345
    %v667 = vunpack.c.l.b16 %v346
    %v668 = vunpack.c.l.b16 %v347
    %v669 = vunpack.c.l.b16 %v348
    %v670 = vunpack.c.l.b16 %v349
    %v671 = vunpack.c.l.b16 %v350
    %v672 = vunpack.c.l.b16 %v351
    %v673 = vunpack.c.l.b16 %v352
    %v674 = vunpack.c.l.b16 %v353
    %v675 = vunpack.c.l.b16 %v354
    %v676 = vunpack.c.l.b16 %v355
    %v677 = vunpack.c.l.b16 %v356
    %v678 = vunpack.c.l.b16 %v357
    %v679 = vunpack.c.l.b16 %v358
    %v680 = vunpack.c.l.b16 %v359
    %v681 = vunpack.c.l.b16 %v360
    %v682 = vunpack.c.l.b16 %v361
    %v683 = vpack.c.b16 %v556, %v555
    %v684 = vpack.c.b16 %v558, %v557
    %v685 = vpack.c.b16 %v560, %v559
    %v686 = vpack.c.b16 %v562, %v561
    %v687 = vpack.c.b16 %v564, %v563
    %v688 = vpack.c.b16 %v566, %v565
    %v689 = vpack.c.b16 %v568, %v567
    %v690 = vpack.c.b16 %v570, %v569
    %v691 = vpack.c.b16 %v572, %v571
    %v692 = vpack.c.b16 %v574, %v573
    %v693 = vpack.c.b16 %v576, %v575
    %v694 = vpack.c.b16 %v578, %v577
    %v695 = vpack.c.b16 %v580, %v579
    %v696 = vpack.c.b16 %v582, %v581
    %v697 = vpack.c.b16 %v584, %v583
    %v698 = vpack.c.b16 %v586, %v585
    %v699 = vpack.c.b16 %v588, %v587
    %v700 = vpack.c.b16 %v590, %v589
    %v701 = vpack.c.b16 %v592, %v591
    %v702 = vpack.c.b16 %v594, %v593
    %v703 = vpack.c.b16 %v596, %v595
    %v704 = vpack.c.b16 %v598, %v597
    %v705 = vpack.c.b16 %v600, %v599
    %v706 = vpack.c.b16 %v602, %v601
    %v707 = vpack.c.b16 %v604, %v603
    %v708 = vpack.c.b16 %v606, %v605
    %v709 = vpack.c.b16 %v608, %v607
    %v710 = vpack.c.b16 %v610, %v609
    %v711 = vpack.c.b16 %v612, %v611
    %v712 = vpack.c.b16 %v614, %v613
    %v713 = vpack.c.b16 %v616, %v615
    %v714 = vpack.c.b16 %v618, %v617
    %v715 = vpack.c.b16 %v620, %v619
    %v716 = vpack.c.b16 %v622, %v621
    %v717 = vpack.c.b16 %v624, %v623
    %v718 = vpack.c.b16 %v626, %v625
    %v719 = vpack.c.b16 %v628, %v627
    %v720 = vpack.c.b16 %v630, %v629
    %v721 = vpack.c.b16 %v632, %v631
    %v722 = vpack.c.b16 %v634, %v633
    %v723 = vpack.c.b16 %v636, %v635
    %v724 = vpack.c.b16 %v638, %v637
    %v725 = vpack.c.b16 %v640, %v639
    %v726 = vpack.c.b16 %v642, %v641
    %v727 = vpack.c.b16 %v644, %v643
    %v728 = vpack.c.b16 %v646, %v645
    %v729 = vpack.c.b16 %v648, %v647
    %v730 = vpack.c.b16 %v650, %v649
    %v731 = vpack.c.b16 %v652, %v651
    %v732 = vpack.c.b16 %v654, %v653
    %v733 = vpack.c.b16 %v656, %v655
    %v734 = vpack.c.b16 %v658, %v657
    %v735 = vpack.c.b16 %v660, %v659
    %v736 = vpack.c.b16 %v662, %v661
    %v737 = vpack.c.b16 %v664, %v663
    %v738 = vpack.c.b16 %v666, %v665
    %v739 = vpack.c.b16 %v668, %v667
    %v740 = vpack.c.b16 %v670, %v669
    %v741 = vpack.c.b16 %v672, %v671
    %v742 = vpack.c.b16 %v674, %v673
    %v743 = vpack.c.b16 %v676, %v675
    %v744 = vpack.c.b16 %v678, %v677
    %v745 = vpack.c.b16 %v680, %v679
    %v746 = vpack.c.b16 %v682, %v681
    %811 = vmatprep.subr.bf16.mxu0 0
    %812 = vmatpush1.bf16.msra.mxu0 %v683
    %813 = vmatprep.subr.bf16.mxu0 0
    %814 = vmatpush1.bf16.msra.mxu0 %v684
    %815 = vmatprep.subr.bf16.mxu0 0
    %816 = vmatpush1.bf16.msra.mxu0 %v685
    %817 = vmatprep.subr.bf16.mxu0 0
    %818 = vmatpush1.bf16.msra.mxu0 %v686
    %819 = vmatprep.subr.bf16.mxu0 0
    %820 = vmatpush1.bf16.msra.mxu0 %v687
    %821 = vmatprep.subr.bf16.mxu0 0
    %822 = vmatpush1.bf16.msra.mxu0 %v688
    %823 = vmatprep.subr.bf16.mxu0 0
    %824 = vmatpush1.bf16.msra.mxu0 %v689
    %825 = vmatprep.subr.bf16.mxu0 0
    %826 = vmatpush1.bf16.msra.mxu0 %v690
    %827 = vmatprep.subr.bf16.mxu0 0
    %828 = vmatpush1.bf16.msra.mxu0 %v691
    %829 = vmatprep.subr.bf16.mxu0 0
    %830 = vmatpush1.bf16.msra.mxu0 %v692
    %831 = vmatprep.subr.bf16.mxu0 0
    %832 = vmatpush1.bf16.msra.mxu0 %v693
    %833 = vmatprep.subr.bf16.mxu0 0
    %834 = vmatpush1.bf16.msra.mxu0 %v694
    %835 = vmatprep.subr.bf16.mxu0 0
    %836 = vmatpush1.bf16.msra.mxu0 %v695
    %837 = vmatprep.subr.bf16.mxu0 0
    %838 = vmatpush1.bf16.msra.mxu0 %v696
    %839 = vmatprep.subr.bf16.mxu0 0
    %840 = vmatpush1.bf16.msra.mxu0 %v697
    %841 = vmatprep.subr.bf16.mxu0 0
    %842 = vmatpush1.bf16.msra.mxu0 %v698
    %843 = vmatprep.mubr.bf16.mxu0 %v407
    %844 = vmatmul.mubr.bf16.gmra.mrb[0].mxu0 %v393
    %v845 = vpop.f32.mrb[0].mxu0
    %v846 = vadd.f32 %v367, %v845
    %v847 = vpop.f32.mrb[0].mxu0
    %v848 = vpop.f32.mrb[0].mxu0
    %v849 = vpop.f32.mrb[0].mxu0
    %850 = vdwg.mxu0
    %851 = vmatprep.subr.bf16.mxu0 0
    %852 = vmatpush1.bf16.msra.mxu0 %v699
    %853 = vmatprep.subr.bf16.mxu0 0
    %854 = vmatpush1.bf16.msra.mxu0 %v700
    %855 = vmatprep.subr.bf16.mxu0 0
    %856 = vmatpush1.bf16.msra.mxu0 %v701
    %857 = vmatprep.subr.bf16.mxu0 0
    %858 = vmatpush1.bf16.msra.mxu0 %v702
    %859 = vmatprep.subr.bf16.mxu0 0
    %860 = vmatpush1.bf16.msra.mxu0 %v703
    %861 = vmatprep.subr.bf16.mxu0 0
    %862 = vmatpush1.bf16.msra.mxu0 %v704
    %863 = vmatprep.subr.bf16.mxu0 0
    %864 = vmatpush1.bf16.msra.mxu0 %v705
    %865 = vmatprep.subr.bf16.mxu0 0
    %866 = vmatpush1.bf16.msra.mxu0 %v706
    %867 = vmatprep.subr.bf16.mxu0 0
    %868 = vmatpush1.bf16.msra.mxu0 %v707
    %869 = vmatprep.subr.bf16.mxu0 0
    %870 = vmatpush1.bf16.msra.mxu0 %v708
    %871 = vmatprep.subr.bf16.mxu0 0
    %872 = vmatpush1.bf16.msra.mxu0 %v709
    %873 = vmatprep.subr.bf16.mxu0 0
    %874 = vmatpush1.bf16.msra.mxu0 %v710
    %875 = vmatprep.subr.bf16.mxu0 0
    %876 = vmatpush1.bf16.msra.mxu0 %v711
    %877 = vmatprep.subr.bf16.mxu0 0
    %878 = vmatpush1.bf16.msra.mxu0 %v712
    %879 = vmatprep.subr.bf16.mxu0 0
    %880 = vmatpush1.bf16.msra.mxu0 %v713
    %881 = vmatprep.subr.bf16.mxu0 0
    %882 = vmatpush1.bf16.msra.mxu0 %v714
    %883 = vmatprep.mubr.bf16.mxu0 %v417
    %884 = vmatmul.mubr.bf16.gmra.mrb[0].mxu0 %v415
    %v885 = vpop.f32.mrb[0].mxu0
    %v886 = vadd.f32 %v846, %v885
    %v887 = vpop.f32.mrb[0].mxu0
    %v888 = vpop.f32.mrb[0].mxu0
    %v889 = vpop.f32.mrb[0].mxu0
    %890 = vdwg.mxu0
    %891 = vmatprep.subr.bf16.mxu0 0
    %892 = vmatpush1.bf16.msra.mxu0 %v715
    %893 = vmatprep.subr.bf16.mxu0 0
    %894 = vmatpush1.bf16.msra.mxu0 %v716
    %895 = vmatprep.subr.bf16.mxu0 0
    %896 = vmatpush1.bf16.msra.mxu0 %v717
    %897 = vmatprep.subr.bf16.mxu0 0
    %898 = vmatpush1.bf16.msra.mxu0 %v718
    %899 = vmatprep.subr.bf16.mxu0 0
    %900 = vmatpush1.bf16.msra.mxu0 %v719
    %901 = vmatprep.subr.bf16.mxu0 0
    %902 = vmatpush1.bf16.msra.mxu0 %v720
    %903 = vmatprep.subr.bf16.mxu0 0
    %904 = vmatpush1.bf16.msra.mxu0 %v721
    %905 = vmatprep.subr.bf16.mxu0 0
    %906 = vmatpush1.bf16.msra.mxu0 %v722
    %907 = vmatprep.subr.bf16.mxu0 0
    %908 = vmatpush1.bf16.msra.mxu0 %v723
    %909 = vmatprep.subr.bf16.mxu0 0
    %910 = vmatpush1.bf16.msra.mxu0 %v724
    %911 = vmatprep.subr.bf16.mxu0 0
    %912 = vmatpush1.bf16.msra.mxu0 %v725
    %913 = vmatprep.subr.bf16.mxu0 0
    %914 = vmatpush1.bf16.msra.mxu0 %v726
    %915 = vmatprep.subr.bf16.mxu0 0
    %916 = vmatpush1.bf16.msra.mxu0 %v727
    %917 = vmatprep.subr.bf16.mxu0 0
    %918 = vmatpush1.bf16.msra.mxu0 %v728
    %919 = vmatprep.subr.bf16.mxu0 0
    %920 = vmatpush1.bf16.msra.mxu0 %v729
    %921 = vmatprep.subr.bf16.mxu0 0
    %922 = vmatpush1.bf16.msra.mxu0 %v730
    %923 = vmatprep.mubr.bf16.mxu0 %v414
    %924 = vmatmul.mubr.bf16.gmra.mrb[0].mxu0 %v400
    %v925 = vpop.f32.mrb[0].mxu0
    %v926 = vadd.f32 %v886, %v925
    %v927 = vpop.f32.mrb[0].mxu0
    %v928 = vpop.f32.mrb[0].mxu0
    %v929 = vpop.f32.mrb[0].mxu0
    %930 = vdwg.mxu0
    %931 = vmatprep.subr.bf16.mxu0 0
    %932 = vmatpush1.bf16.msra.mxu0 %v731
    %933 = vmatprep.subr.bf16.mxu0 0
    %934 = vmatpush1.bf16.msra.mxu0 %v732
    %935 = vmatprep.subr.bf16.mxu0 0
    %936 = vmatpush1.bf16.msra.mxu0 %v733
    %937 = vmatprep.subr.bf16.mxu0 0
    %938 = vmatpush1.bf16.msra.mxu0 %v734
    %939 = vmatprep.subr.bf16.mxu0 0
    %940 = vmatpush1.bf16.msra.mxu0 %v735
    %941 = vmatprep.subr.bf16.mxu0 0
    %942 = vmatpush1.bf16.msra.mxu0 %v736
    %943 = vmatprep.subr.bf16.mxu0 0
    %944 = vmatpush1.bf16.msra.mxu0 %v737
    %945 = vmatprep.subr.bf16.mxu0 0
    %946 = vmatpush1.bf16.msra.mxu0 %v738
    %947 = vmatprep.subr.bf16.mxu0 0
    %948 = vmatpush1.bf16.msra.mxu0 %v739
    %949 = vmatprep.subr.bf16.mxu0 0
    %950 = vmatpush1.bf16.msra.mxu0 %v740
    %951 = vmatprep.subr.bf16.mxu0 0
    %952 = vmatpush1.bf16.msra.mxu0 %v741
    %953 = vmatprep.subr.bf16.mxu0 0
    %954 = vmatpush1.bf16.msra.mxu0 %v742
    %955 = vmatprep.subr.bf16.mxu0 0
    %956 = vmatpush1.bf16.msra.mxu0 %v743
    %957 = vmatprep.subr.bf16.mxu0 0
    %958 = vmatpush1.bf16.msra.mxu0 %v744
    %959 = vmatprep.subr.bf16.mxu0 0
    %960 = vmatpush1.bf16.msra.mxu0 %v745
    %961 = vmatprep.subr.bf16.mxu0 0
    %962 = vmatpush1.bf16.msra.mxu0 %v746
    %963 = vmatprep.mubr.bf16.mxu0 %v418
    %964 = vmatmul.mubr.bf16.gmra.mrb[0].mxu0 %v416
    %v965 = vpop.f32.mrb[0].mxu0
    %v966 = vadd.f32 %v926, %v965
    %v967 = vpop.f32.mrb[0].mxu0
    %v968 = vpop.f32.mrb[0].mxu0
    %v969 = vpop.f32.mrb[0].mxu0
    %970 = vdwg.mxu0
    %vm971 = vcmp.gt.f32.partialorder %v966, 0.0
    %v972 = vmul.f32 %v966, 0.2
    %v973 = vsel %vm971, %v966, %v972
    %v974 = vpack.c.bf16 %v973, %v973
    %v975 = vld [vmem:[#allocation8] sm:$0xff]
    %v976 = vld [vmem:[#allocation8 + $0x8] sm:$0xff]
    %v977 = vld [vmem:[#allocation8 + $0x10] sm:$0xff]
    %v978 = vld [vmem:[#allocation8 + $0x18] sm:$0xff]
    %v979 = vld [vmem:[#allocation8 + $0x20] sm:$0xff]
    %v980 = vld [vmem:[#allocation8 + $0x28] sm:$0xff]
    %v981 = vld [vmem:[#allocation8 + $0x30] sm:$0xff]
    %v982 = vld [vmem:[#allocation8 + $0x38] sm:$0xff]
    %v983 = vld [vmem:[#allocation8 + $0x40] sm:$0xff]
    %v984 = vld [vmem:[#allocation8 + $0x48] sm:$0xff]
    %v985 = vld [vmem:[#allocation8 + $0x50] sm:$0xff]
    %v986 = vld [vmem:[#allocation8 + $0x58] sm:$0xff]
    %v987 = vld [vmem:[#allocation8 + $0x60] sm:$0xff]
    %v988 = vld [vmem:[#allocation8 + $0x68] sm:$0xff]
    %v989 = vld [vmem:[#allocation8 + $0x70] sm:$0xff]
    %v990 = vld [vmem:[#allocation8 + $0x78] sm:$0xff]
    %v991 = vld [vmem:[#allocation10] sm:$0x3]
    %v993 = vlaneseq
    %v994 = vshrl.u32 %v993, 7
    %v995 = vsub.s32 0, %v994
    %v996 = vrot.slane %v991, %v995
    %v997 = vlaneseq
    %v998 = vshrl.u32 %v997, 7
    %v999 = vsub.s32 1, %v998
    %v1000 = vrot.slane %v991, %v999
    %v1019 = vunpack.c.l.b16 %v975
    %v1020 = vunpack.c.h.b16 %v975
    %v1021 = vunpack.c.l.b16 %v976
    %v1022 = vunpack.c.h.b16 %v976
    %v1023 = vunpack.c.l.b16 %v977
    %v1024 = vunpack.c.h.b16 %v977
    %v1025 = vunpack.c.l.b16 %v978
    %v1026 = vunpack.c.h.b16 %v978
    %v1027 = vunpack.c.l.b16 %v979
    %v1028 = vunpack.c.h.b16 %v979
    %v1029 = vunpack.c.l.b16 %v980
    %v1030 = vunpack.c.h.b16 %v980
    %v1031 = vunpack.c.l.b16 %v981
    %v1032 = vunpack.c.h.b16 %v981
    %v1033 = vunpack.c.l.b16 %v982
    %v1034 = vunpack.c.h.b16 %v982
    %v1035 = vunpack.c.l.b16 %v983
    %v1036 = vunpack.c.h.b16 %v983
    %v1037 = vunpack.c.l.b16 %v984
    %v1038 = vunpack.c.h.b16 %v984
    %v1039 = vunpack.c.l.b16 %v985
    %v1040 = vunpack.c.h.b16 %v985
    %v1041 = vunpack.c.l.b16 %v986
    %v1042 = vunpack.c.h.b16 %v986
    %v1043 = vunpack.c.l.b16 %v987
    %v1044 = vunpack.c.h.b16 %v987
    %v1045 = vunpack.c.l.b16 %v988
    %v1046 = vunpack.c.h.b16 %v988
    %v1047 = vunpack.c.l.b16 %v989
    %v1048 = vunpack.c.h.b16 %v989
    %v1049 = vunpack.c.l.b16 %v990
    %v1050 = vunpack.c.h.b16 %v990
    %v1051 = vpack.c.b16 %v1021, %v1019
    %v1052 = vpack.c.b16 %v1022, %v1020
    %v1053 = vpack.c.b16 %v1025, %v1023
    %v1054 = vpack.c.b16 %v1026, %v1024
    %v1055 = vpack.c.b16 %v1029, %v1027
    %v1056 = vpack.c.b16 %v1030, %v1028
    %v1057 = vpack.c.b16 %v1033, %v1031
    %v1058 = vpack.c.b16 %v1034, %v1032
    %v1059 = vpack.c.b16 %v1037, %v1035
    %v1060 = vpack.c.b16 %v1038, %v1036
    %v1061 = vpack.c.b16 %v1041, %v1039
    %v1062 = vpack.c.b16 %v1042, %v1040
    %v1063 = vpack.c.b16 %v1045, %v1043
    %v1064 = vpack.c.b16 %v1046, %v1044
    %v1065 = vpack.c.b16 %v1049, %v1047
    %v1066 = vpack.c.b16 %v1050, %v1048
    %1083 = vmatprep.subr.bf16.mxu0 %v1052
    %1084 = vmatpush1.bf16.msra.mxu0 %v1051
    %1085 = vmatprep.subr.bf16.mxu0 %v1054
    %1086 = vmatpush1.bf16.msra.mxu0 %v1053
    %1087 = vmatprep.subr.bf16.mxu0 %v1056
    %1088 = vmatpush1.bf16.msra.mxu0 %v1055
    %1089 = vmatprep.subr.bf16.mxu0 %v1058
    %1090 = vmatpush1.bf16.msra.mxu0 %v1057
    %1091 = vmatprep.subr.bf16.mxu0 %v1060
    %1092 = vmatpush1.bf16.msra.mxu0 %v1059
    %1093 = vmatprep.subr.bf16.mxu0 %v1062
    %1094 = vmatpush1.bf16.msra.mxu0 %v1061
    %1095 = vmatprep.subr.bf16.mxu0 %v1064
    %1096 = vmatpush1.bf16.msra.mxu0 %v1063
    %1097 = vmatprep.subr.bf16.mxu0 %v1066
    %1098 = vmatpush1.bf16.msra.mxu0 %v1065
    %1099 = vmatprep.subr.bf16.mxu0 0
    %1100 = vmatpush1.bf16.msra.mxu0 0
    %1101 = vmatprep.subr.bf16.mxu0 0
    %1102 = vmatpush1.bf16.msra.mxu0 0
    %1103 = vmatprep.subr.bf16.mxu0 0
    %1104 = vmatpush1.bf16.msra.mxu0 0
    %1105 = vmatprep.subr.bf16.mxu0 0
    %1106 = vmatpush1.bf16.msra.mxu0 0
    %1107 = vmatprep.subr.bf16.mxu0 0
    %1108 = vmatpush1.bf16.msra.mxu0 0
    %1109 = vmatprep.subr.bf16.mxu0 0
    %1110 = vmatpush1.bf16.msra.mxu0 0
    %1111 = vmatprep.subr.bf16.mxu0 0
    %1112 = vmatpush1.bf16.msra.mxu0 0
    %1113 = vmatprep.subr.bf16.mxu0 0
    %1114 = vmatpush1.bf16.msra.mxu0 0
    %1115 = vmatprep.mubr.bf16.mxu0 0
    %1116 = vmatmul.mubr.bf16.gmra.mrb[0].mxu0 %v974
    %v1117 = vpop.f32.mrb[0].mxu0
    %v1118 = vadd.f32 %v996, %v1117
    %v1119 = vpop.f32.mrb[0].mxu0
    %v1120 = vadd.f32 %v1000, %v1119
    %v1121 = vpop.f32.mrb[0].mxu0
    %v1122 = vpop.f32.mrb[0].mxu0
    %1123 = vdwg.mxu0
    %vm1124 = vcmask 1041408
    %v1125 = vsel %vm1124, %v1118, 0.0
    %v1126 = vrot.slane %v1125, 4
    %v1127 = vadd.f32 %v1125, %v1126
    %v1128 = vrot.slane %v1127, 2
    %v1129 = vadd.f32 %v1127, %v1128
    %v1130 = vrot.slane %v1129, 1
    %v1131 = vadd.f32 %v1129, %v1130
    %v1132 = vsel %vm1124, %v1120, 0.0
    %v1133 = vrot.slane %v1132, 4
    %v1134 = vadd.f32 %v1132, %v1133
    %v1135 = vrot.slane %v1134, 2
    %v1136 = vadd.f32 %v1134, %v1135
    %v1137 = vrot.slane %v1136, 1
    %v1138 = vadd.f32 %v1136, %v1137
    %v1139 = vrcp.pop 2.0
    %v1140 = vmul.f32 %v1131, %v1139
    %v1141 = vmul.f32 %v1138, %v1139
    %v1142 = vsub.f32 %v1118, %v1140
    %v1143 = vsub.f32 %v1120, %v1141
    %v1144 = vmul.f32 %v1142, %v1142
    %v1145 = vmul.f32 %v1143, %v1143
    %v1146 = vsel %vm1124, %v1144, 0.0
    %v1147 = vrot.slane %v1146, 4
    %v1148 = vadd.f32 %v1146, %v1147
    %v1149 = vrot.slane %v1148, 2
    %v1150 = vadd.f32 %v1148, %v1149
    %v1151 = vrot.slane %v1150, 1
    %v1152 = vadd.f32 %v1150, %v1151
    %v1153 = vsel %vm1124, %v1145, 0.0
    %v1154 = vrot.slane %v1153, 4
    %v1155 = vadd.f32 %v1153, %v1154
    %v1156 = vrot.slane %v1155, 2
    %v1157 = vadd.f32 %v1155, %v1156
    %v1158 = vrot.slane %v1157, 1
    %v1159 = vadd.f32 %v1157, %v1158
    %v1160 = vmul.f32 %v1152, %v1139
    %v1161 = vmul.f32 %v1159, %v1139
    %v1162 = vadd.f32 %v1160, 0.8
    %v1163 = vadd.f32 %v1161, 0.8
    %v1164 = vrsqrt.pop %v1162
    %v1165 = vrsqrt.pop %v1163
    %v1166 = vmul.f32 %v1142, %v1164
    %v1167 = vmul.f32 %v1143, %v1165
    %v1168 = vld [vmem:[#allocation11] sm:$0x3]
    %v1170 = vlaneseq
    %v1171 = vshrl.u32 %v1170, 7
    %v1172 = vsub.s32 0, %v1171
    %v1173 = vrot.slane %v1168, %v1172
    %v1174 = vlaneseq
    %v1175 = vshrl.u32 %v1174, 7
    %v1176 = vsub.s32 1, %v1175
    %v1177 = vrot.slane %v1168, %v1176
    %v1180 = vmul.f32 %v1166, %v1173
    %v1181 = vmul.f32 %v1167, %v1177
    %v1182 = vld [vmem:[#allocation13] sm:$0x3]
    %v1184 = vlaneseq
    %v1185 = vshrl.u32 %v1184, 7
    %v1186 = vsub.s32 0, %v1185
    %v1187 = vrot.slane %v1182, %v1186
    %v1188 = vlaneseq
    %v1189 = vshrl.u32 %v1188, 7
    %v1190 = vsub.s32 1, %v1189
    %v1191 = vrot.slane %v1182, %v1190
    %v1194 = vadd.f32 %v1180, %v1187
    %v1195 = vadd.f32 %v1181, %v1191
    %vm1196 = vcmp.gt.f32.partialorder %v1194, 0.0
    %vm1197 = vcmp.gt.f32.partialorder %v1195, 0.0
    %v1198 = vmul.f32 %v1194, 0.2
    %v1199 = vmul.f32 %v1195, 0.2
    %v1200 = vsel %vm1196, %v1194, %v1198
    %v1201 = vsel %vm1197, %v1195, %v1199
    %v1202 = vpack.c.bf16 %v1200, %v1200
    %v1203 = vpack.c.bf16 %v1201, %v1201
    %v1204 = vld [vmem:[#allocation14] sm:$0xff]
    %v1205 = vld [vmem:[#allocation14 + $0x8] sm:$0xff]
    %v1206 = vld [vmem:[#allocation14 + $0x10] sm:$0xff]
    %v1207 = vld [vmem:[#allocation14 + $0x18] sm:$0xff]
    %v1208 = vld [vmem:[#allocation14 + $0x20] sm:$0xff]
    %v1209 = vld [vmem:[#allocation14 + $0x28] sm:$0xff]
    %v1210 = vld [vmem:[#allocation14 + $0x30] sm:$0xff]
    %v1211 = vld [vmem:[#allocation14 + $0x38] sm:$0xff]
    %v1212 = vld [vmem:[#allocation14 + $0x40] sm:$0xff]
    %v1213 = vld [vmem:[#allocation14 + $0x48] sm:$0xff]
    %v1214 = vld [vmem:[#allocation14 + $0x50] sm:$0xff]
    %v1215 = vld [vmem:[#allocation14 + $0x58] sm:$0xff]
    %v1216 = vld [vmem:[#allocation14 + $0x60] sm:$0xff]
    %v1217 = vld [vmem:[#allocation14 + $0x68] sm:$0xff]
    %v1218 = vld [vmem:[#allocation14 + $0x70] sm:$0xff]
    %v1219 = vld [vmem:[#allocation14 + $0x78] sm:$0xff]
    %v1220 = vld [vmem:[#allocation14 + $0x80] sm:$0xff]
    %v1221 = vld [vmem:[#allocation14 + $0x88] sm:$0xff]
    %v1222 = vld [vmem:[#allocation14 + $0x90] sm:$0xff]
    %v1223 = vld [vmem:[#allocation14 + $0x98] sm:$0xff]
    %v1224 = vld [vmem:[#allocation14 + $0xa0] sm:$0xff]
    %v1225 = vld [vmem:[#allocation14 + $0xa8] sm:$0xff]
    %v1226 = vld [vmem:[#allocation14 + $0xb0] sm:$0xff]
    %v1227 = vld [vmem:[#allocation14 + $0xb8] sm:$0xff]
    %v1228 = vld [vmem:[#allocation14 + $0xc0] sm:$0xff]
    %v1229 = vld [vmem:[#allocation14 + $0xc8] sm:$0xff]
    %v1230 = vld [vmem:[#allocation14 + $0xd0] sm:$0xff]
    %v1231 = vld [vmem:[#allocation14 + $0xd8] sm:$0xff]
    %v1232 = vld [vmem:[#allocation14 + $0xe0] sm:$0xff]
    %v1233 = vld [vmem:[#allocation14 + $0xe8] sm:$0xff]
    %v1234 = vld [vmem:[#allocation14 + $0xf0] sm:$0xff]
    %v1235 = vld [vmem:[#allocation14 + $0xf8] sm:$0xff]
    %v1236 = vld [vmem:[#allocation14 + $0x100] sm:$0xff]
    %v1237 = vld [vmem:[#allocation14 + $0x108] sm:$0xff]
    %v1238 = vld [vmem:[#allocation14 + $0x110] sm:$0xff]
    %v1239 = vld [vmem:[#allocation14 + $0x118] sm:$0xff]
    %v1240 = vld [vmem:[#allocation14 + $0x120] sm:$0xff]
    %v1241 = vld [vmem:[#allocation14 + $0x128] sm:$0xff]
    %v1242 = vld [vmem:[#allocation14 + $0x130] sm:$0xff]
    %v1243 = vld [vmem:[#allocation14 + $0x138] sm:$0xff]
    %v1244 = vld [vmem:[#allocation14 + $0x140] sm:$0xff]
    %v1245 = vld [vmem:[#allocation14 + $0x148] sm:$0xff]
    %v1246 = vld [vmem:[#allocation14 + $0x150] sm:$0xff]
    %v1247 = vld [vmem:[#allocation14 + $0x158] sm:$0xff]
    %v1248 = vld [vmem:[#allocation14 + $0x160] sm:$0xff]
    %v1249 = vld [vmem:[#allocation14 + $0x168] sm:$0xff]
    %v1250 = vld [vmem:[#allocation14 + $0x170] sm:$0xff]
    %v1251 = vld [vmem:[#allocation14 + $0x178] sm:$0xff]
    %v1252 = vld [vmem:[#allocation14 + $0x180] sm:$0xff]
    %v1253 = vld [vmem:[#allocation14 + $0x188] sm:$0xff]
    %v1254 = vld [vmem:[#allocation14 + $0x190] sm:$0xff]
    %v1255 = vld [vmem:[#allocation14 + $0x198] sm:$0xff]
    %v1256 = vld [vmem:[#allocation14 + $0x1a0] sm:$0xff]
    %v1257 = vld [vmem:[#allocation14 + $0x1a8] sm:$0xff]
    %v1258 = vld [vmem:[#allocation14 + $0x1b0] sm:$0xff]
    %v1259 = vld [vmem:[#allocation14 + $0x1b8] sm:$0xff]
    %v1260 = vld [vmem:[#allocation14 + $0x1c0] sm:$0xff]
    %v1261 = vld [vmem:[#allocation14 + $0x1c8] sm:$0xff]
    %v1262 = vld [vmem:[#allocation14 + $0x1d0] sm:$0xff]
    %v1263 = vld [vmem:[#allocation14 + $0x1d8] sm:$0xff]
    %v1264 = vld [vmem:[#allocation14 + $0x1e0] sm:$0xff]
    %v1265 = vld [vmem:[#allocation14 + $0x1e8] sm:$0xff]
    %v1266 = vld [vmem:[#allocation14 + $0x1f0] sm:$0xff]
    %v1267 = vld [vmem:[#allocation14 + $0x1f8] sm:$0xff]
    %v1268 = vld [vmem:[#allocation16] sm:$0xf]
    %v1270 = vlaneseq
    %v1271 = vshrl.u32 %v1270, 7
    %v1272 = vsub.s32 0, %v1271
    %v1273 = vrot.slane %v1268, %v1272
    %v1274 = vlaneseq
    %v1275 = vshrl.u32 %v1274, 7
    %v1276 = vsub.s32 1, %v1275
    %v1277 = vrot.slane %v1268, %v1276
    %v1278 = vlaneseq
    %v1279 = vshrl.u32 %v1278, 7
    %v1280 = vsub.s32 2, %v1279
    %v1281 = vrot.slane %v1268, %v1280
    %v1282 = vlaneseq
    %v1283 = vshrl.u32 %v1282, 7
    %v1284 = vsub.s32 3, %v1283
    %v1285 = vrot.slane %v1268, %v1284
    %v1354 = vunpack.c.l.b16 %v1204
    %v1355 = vunpack.c.h.b16 %v1204
    %v1356 = vunpack.c.l.b16 %v1205
    %v1357 = vunpack.c.h.b16 %v1205
    %v1358 = vunpack.c.l.b16 %v1206
    %v1359 = vunpack.c.h.b16 %v1206
    %v1360 = vunpack.c.l.b16 %v1207
    %v1361 = vunpack.c.h.b16 %v1207
    %v1362 = vunpack.c.l.b16 %v1208
    %v1363 = vunpack.c.h.b16 %v1208
    %v1364 = vunpack.c.l.b16 %v1209
    %v1365 = vunpack.c.h.b16 %v1209
    %v1366 = vunpack.c.l.b16 %v1210
    %v1367 = vunpack.c.h.b16 %v1210
    %v1368 = vunpack.c.l.b16 %v1211
    %v1369 = vunpack.c.h.b16 %v1211
    %v1370 = vunpack.c.l.b16 %v1212
    %v1371 = vunpack.c.h.b16 %v1212
    %v1372 = vunpack.c.l.b16 %v1213
    %v1373 = vunpack.c.h.b16 %v1213
    %v1374 = vunpack.c.l.b16 %v1214
    %v1375 = vunpack.c.h.b16 %v1214
    %v1376 = vunpack.c.l.b16 %v1215
    %v1377 = vunpack.c.h.b16 %v1215
    %v1378 = vunpack.c.l.b16 %v1216
    %v1379 = vunpack.c.h.b16 %v1216
    %v1380 = vunpack.c.l.b16 %v1217
    %v1381 = vunpack.c.h.b16 %v1217
    %v1382 = vunpack.c.l.b16 %v1218
    %v1383 = vunpack.c.h.b16 %v1218
    %v1384 = vunpack.c.l.b16 %v1219
    %v1385 = vunpack.c.h.b16 %v1219
    %v1386 = vunpack.c.l.b16 %v1220
    %v1387 = vunpack.c.h.b16 %v1220
    %v1388 = vunpack.c.l.b16 %v1221
    %v1389 = vunpack.c.h.b16 %v1221
    %v1390 = vunpack.c.l.b16 %v1222
    %v1391 = vunpack.c.h.b16 %v1222
    %v1392 = vunpack.c.l.b16 %v1223
    %v1393 = vunpack.c.h.b16 %v1223
    %v1394 = vunpack.c.l.b16 %v1224
    %v1395 = vunpack.c.h.b16 %v1224
    %v1396 = vunpack.c.l.b16 %v1225
    %v1397 = vunpack.c.h.b16 %v1225
    %v1398 = vunpack.c.l.b16 %v1226
    %v1399 = vunpack.c.h.b16 %v1226
    %v1400 = vunpack.c.l.b16 %v1227
    %v1401 = vunpack.c.h.b16 %v1227
    %v1402 = vunpack.c.l.b16 %v1228
    %v1403 = vunpack.c.h.b16 %v1228
    %v1404 = vunpack.c.l.b16 %v1229
    %v1405 = vunpack.c.h.b16 %v1229
    %v1406 = vunpack.c.l.b16 %v1230
    %v1407 = vunpack.c.h.b16 %v1230
    %v1408 = vunpack.c.l.b16 %v1231
    %v1409 = vunpack.c.h.b16 %v1231
    %v1410 = vunpack.c.l.b16 %v1232
    %v1411 = vunpack.c.h.b16 %v1232
    %v1412 = vunpack.c.l.b16 %v1233
    %v1413 = vunpack.c.h.b16 %v1233
    %v1414 = vunpack.c.l.b16 %v1234
    %v1415 = vunpack.c.h.b16 %v1234
    %v1416 = vunpack.c.l.b16 %v1235
    %v1417 = vunpack.c.h.b16 %v1235
    %v1418 = vunpack.c.l.b16 %v1236
    %v1419 = vunpack.c.h.b16 %v1236
    %v1420 = vunpack.c.l.b16 %v1237
    %v1421 = vunpack.c.h.b16 %v1237
    %v1422 = vunpack.c.l.b16 %v1238
    %v1423 = vunpack.c.h.b16 %v1238
    %v1424 = vunpack.c.l.b16 %v1239
    %v1425 = vunpack.c.h.b16 %v1239
    %v1426 = vunpack.c.l.b16 %v1240
    %v1427 = vunpack.c.h.b16 %v1240
    %v1428 = vunpack.c.l.b16 %v1241
    %v1429 = vunpack.c.h.b16 %v1241
    %v1430 = vunpack.c.l.b16 %v1242
    %v1431 = vunpack.c.h.b16 %v1242
    %v1432 = vunpack.c.l.b16 %v1243
    %v1433 = vunpack.c.h.b16 %v1243
    %v1434 = vunpack.c.l.b16 %v1244
    %v1435 = vunpack.c.h.b16 %v1244
    %v1436 = vunpack.c.l.b16 %v1245
    %v1437 = vunpack.c.h.b16 %v1245
    %v1438 = vunpack.c.l.b16 %v1246
    %v1439 = vunpack.c.h.b16 %v1246
    %v1440 = vunpack.c.l.b16 %v1247
    %v1441 = vunpack.c.h.b16 %v1247
    %v1442 = vunpack.c.l.b16 %v1248
    %v1443 = vunpack.c.h.b16 %v1248
    %v1444 = vunpack.c.l.b16 %v1249
    %v1445 = vunpack.c.h.b16 %v1249
    %v1446 = vunpack.c.l.b16 %v1250
    %v1447 = vunpack.c.h.b16 %v1250
    %v1448 = vunpack.c.l.b16 %v1251
    %v1449 = vunpack.c.h.b16 %v1251
    %v1450 = vunpack.c.l.b16 %v1252
    %v1451 = vunpack.c.h.b16 %v1252
    %v1452 = vunpack.c.l.b16 %v1253
    %v1453 = vunpack.c.h.b16 %v1253
    %v1454 = vunpack.c.l.b16 %v1254
    %v1455 = vunpack.c.h.b16 %v1254
    %v1456 = vunpack.c.l.b16 %v1255
    %v1457 = vunpack.c.h.b16 %v1255
    %v1458 = vunpack.c.l.b16 %v1256
    %v1459 = vunpack.c.h.b16 %v1256
    %v1460 = vunpack.c.l.b16 %v1257
    %v1461 = vunpack.c.h.b16 %v1257
    %v1462 = vunpack.c.l.b16 %v1258
    %v1463 = vunpack.c.h.b16 %v1258
    %v1464 = vunpack.c.l.b16 %v1259
    %v1465 = vunpack.c.h.b16 %v1259
    %v1466 = vunpack.c.l.b16 %v1260
    %v1467 = vunpack.c.h.b16 %v1260
    %v1468 = vunpack.c.l.b16 %v1261
    %v1469 = vunpack.c.h.b16 %v1261
    %v1470 = vunpack.c.l.b16 %v1262
    %v1471 = vunpack.c.h.b16 %v1262
    %v1472 = vunpack.c.l.b16 %v1263
    %v1473 = vunpack.c.h.b16 %v1263
    %v1474 = vunpack.c.l.b16 %v1264
    %v1475 = vunpack.c.h.b16 %v1264
    %v1476 = vunpack.c.l.b16 %v1265
    %v1477 = vunpack.c.h.b16 %v1265
    %v1478 = vunpack.c.l.b16 %v1266
    %v1479 = vunpack.c.h.b16 %v1266
    %v1480 = vunpack.c.l.b16 %v1267
    %v1481 = vunpack.c.h.b16 %v1267
    %v1482 = vpack.c.b16 %v1358, %v1354
    %v1483 = vpack.c.b16 %v1359, %v1355
    %v1484 = vpack.c.b16 %v1360, %v1356
    %v1485 = vpack.c.b16 %v1361, %v1357
    %v1486 = vpack.c.b16 %v1366, %v1362
    %v1487 = vpack.c.b16 %v1367, %v1363
    %v1488 = vpack.c.b16 %v1368, %v1364
    %v1489 = vpack.c.b16 %v1369, %v1365
    %v1490 = vpack.c.b16 %v1374, %v1370
    %v1491 = vpack.c.b16 %v1375, %v1371
    %v1492 = vpack.c.b16 %v1376, %v1372
    %v1493 = vpack.c.b16 %v1377, %v1373
    %v1494 = vpack.c.b16 %v1382, %v1378
    %v1495 = vpack.c.b16 %v1383, %v1379
    %v1496 = vpack.c.b16 %v1384, %v1380
    %v1497 = vpack.c.b16 %v1385, %v1381
    %v1498 = vpack.c.b16 %v1390, %v1386
    %v1499 = vpack.c.b16 %v1391, %v1387
    %v1500 = vpack.c.b16 %v1392, %v1388
    %v1501 = vpack.c.b16 %v1393, %v1389
    %v1502 = vpack.c.b16 %v1398, %v1394
    %v1503 = vpack.c.b16 %v1399, %v1395
    %v1504 = vpack.c.b16 %v1400, %v1396
    %v1505 = vpack.c.b16 %v1401, %v1397
    %v1506 = vpack.c.b16 %v1406, %v1402
    %v1507 = vpack.c.b16 %v1407, %v1403
    %v1508 = vpack.c.b16 %v1408, %v1404
    %v1509 = vpack.c.b16 %v1409, %v1405
    %v1510 = vpack.c.b16 %v1414, %v1410
    %v1511 = vpack.c.b16 %v1415, %v1411
    %v1512 = vpack.c.b16 %v1416, %v1412
    %v1513 = vpack.c.b16 %v1417, %v1413
    %v1514 = vpack.c.b16 %v1422, %v1418
    %v1515 = vpack.c.b16 %v1423, %v1419
    %v1516 = vpack.c.b16 %v1424, %v1420
    %v1517 = vpack.c.b16 %v1425, %v1421
    %v1518 = vpack.c.b16 %v1430, %v1426
    %v1519 = vpack.c.b16 %v1431, %v1427
    %v1520 = vpack.c.b16 %v1432, %v1428
    %v1521 = vpack.c.b16 %v1433, %v1429
    %v1522 = vpack.c.b16 %v1438, %v1434
    %v1523 = vpack.c.b16 %v1439, %v1435
    %v1524 = vpack.c.b16 %v1440, %v1436
    %v1525 = vpack.c.b16 %v1441, %v1437
    %v1526 = vpack.c.b16 %v1446, %v1442
    %v1527 = vpack.c.b16 %v1447, %v1443
    %v1528 = vpack.c.b16 %v1448, %v1444
    %v1529 = vpack.c.b16 %v1449, %v1445
    %v1530 = vpack.c.b16 %v1454, %v1450
    %v1531 = vpack.c.b16 %v1455, %v1451
    %v1532 = vpack.c.b16 %v1456, %v1452
    %v1533 = vpack.c.b16 %v1457, %v1453
    %v1534 = vpack.c.b16 %v1462, %v1458
    %v1535 = vpack.c.b16 %v1463, %v1459
    %v1536 = vpack.c.b16 %v1464, %v1460
    %v1537 = vpack.c.b16 %v1465, %v1461
    %v1538 = vpack.c.b16 %v1470, %v1466
    %v1539 = vpack.c.b16 %v1471, %v1467
    %v1540 = vpack.c.b16 %v1472, %v1468
    %v1541 = vpack.c.b16 %v1473, %v1469
    %v1542 = vpack.c.b16 %v1478, %v1474
    %v1543 = vpack.c.b16 %v1479, %v1475
    %v1544 = vpack.c.b16 %v1480, %v1476
    %v1545 = vpack.c.b16 %v1481, %v1477
    %1610 = vmatprep.subr.bf16.mxu0 %v1483
    %1611 = vmatpush1.bf16.msra.mxu0 %v1482
    %1612 = vmatprep.subr.bf16.mxu0 %v1487
    %1613 = vmatpush1.bf16.msra.mxu0 %v1486
    %1614 = vmatprep.subr.bf16.mxu0 %v1491
    %1615 = vmatpush1.bf16.msra.mxu0 %v1490
    %1616 = vmatprep.subr.bf16.mxu0 %v1495
    %1617 = vmatpush1.bf16.msra.mxu0 %v1494
    %1618 = vmatprep.subr.bf16.mxu0 %v1499
    %1619 = vmatpush1.bf16.msra.mxu0 %v1498
    %1620 = vmatprep.subr.bf16.mxu0 %v1503
    %1621 = vmatpush1.bf16.msra.mxu0 %v1502
    %1622 = vmatprep.subr.bf16.mxu0 %v1507
    %1623 = vmatpush1.bf16.msra.mxu0 %v1506
    %1624 = vmatprep.subr.bf16.mxu0 %v1511
    %1625 = vmatpush1.bf16.msra.mxu0 %v1510
    %1626 = vmatprep.subr.bf16.mxu0 %v1515
    %1627 = vmatpush1.bf16.msra.mxu0 %v1514
    %1628 = vmatprep.subr.bf16.mxu0 %v1519
    %1629 = vmatpush1.bf16.msra.mxu0 %v1518
    %1630 = vmatprep.subr.bf16.mxu0 %v1523
    %1631 = vmatpush1.bf16.msra.mxu0 %v1522
    %1632 = vmatprep.subr.bf16.mxu0 %v1527
    %1633 = vmatpush1.bf16.msra.mxu0 %v1526
    %1634 = vmatprep.subr.bf16.mxu0 %v1531
    %1635 = vmatpush1.bf16.msra.mxu0 %v1530
    %1636 = vmatprep.subr.bf16.mxu0 %v1535
    %1637 = vmatpush1.bf16.msra.mxu0 %v1534
    %1638 = vmatprep.subr.bf16.mxu0 %v1539
    %1639 = vmatpush1.bf16.msra.mxu0 %v1538
    %1640 = vmatprep.subr.bf16.mxu0 %v1543
    %1641 = vmatpush1.bf16.msra.mxu0 %v1542
    %1642 = vmatprep.mubr.bf16.mxu0 %v1203
    %1643 = vmatmul.mubr.bf16.gmra.mrb[0].mxu0 %v1202
    %v1644 = vpop.f32.mrb[0].mxu0
    %v1645 = vadd.f32 %v1273, %v1644
    %v1646 = vpop.f32.mrb[0].mxu0
    %v1647 = vadd.f32 %v1277, %v1646
    %v1648 = vpop.f32.mrb[0].mxu0
    %v1649 = vpop.f32.mrb[0].mxu0
    %1650 = vdwg.mxu0
    %1651 = vmatprep.subr.bf16.mxu0 %v1485
    %1652 = vmatpush1.bf16.msra.mxu0 %v1484
    %1653 = vmatprep.subr.bf16.mxu0 %v1489
    %1654 = vmatpush1.bf16.msra.mxu0 %v1488
    %1655 = vmatprep.subr.bf16.mxu0 %v1493
    %1656 = vmatpush1.bf16.msra.mxu0 %v1492
    %1657 = vmatprep.subr.bf16.mxu0 %v1497
    %1658 = vmatpush1.bf16.msra.mxu0 %v1496
    %1659 = vmatprep.subr.bf16.mxu0 %v1501
    %1660 = vmatpush1.bf16.msra.mxu0 %v1500
    %1661 = vmatprep.subr.bf16.mxu0 %v1505
    %1662 = vmatpush1.bf16.msra.mxu0 %v1504
    %1663 = vmatprep.subr.bf16.mxu0 %v1509
    %1664 = vmatpush1.bf16.msra.mxu0 %v1508
    %1665 = vmatprep.subr.bf16.mxu0 %v1513
    %1666 = vmatpush1.bf16.msra.mxu0 %v1512
    %1667 = vmatprep.subr.bf16.mxu0 %v1517
    %1668 = vmatpush1.bf16.msra.mxu0 %v1516
    %1669 = vmatprep.subr.bf16.mxu0 %v1521
    %1670 = vmatpush1.bf16.msra.mxu0 %v1520
    %1671 = vmatprep.subr.bf16.mxu0 %v1525
    %1672 = vmatpush1.bf16.msra.mxu0 %v1524
    %1673 = vmatprep.subr.bf16.mxu0 %v1529
    %1674 = vmatpush1.bf16.msra.mxu0 %v1528
    %1675 = vmatprep.subr.bf16.mxu0 %v1533
    %1676 = vmatpush1.bf16.msra.mxu0 %v1532
    %1677 = vmatprep.subr.bf16.mxu0 %v1537
    %1678 = vmatpush1.bf16.msra.mxu0 %v1536
    %1679 = vmatprep.subr.bf16.mxu0 %v1541
    %1680 = vmatpush1.bf16.msra.mxu0 %v1540
    %1681 = vmatprep.subr.bf16.mxu0 %v1545
    %1682 = vmatpush1.bf16.msra.mxu0 %v1544
    %1683 = vmatprep.mubr.bf16.mxu0 %v1203
    %1684 = vmatmul.mubr.bf16.gmra.mrb[0].mxu0 %v1202
    %v1685 = vpop.f32.mrb[0].mxu0
    %v1686 = vadd.f32 %v1281, %v1685
    %v1687 = vpop.f32.mrb[0].mxu0
    %v1688 = vadd.f32 %v1285, %v1687
    %v1689 = vpop.f32.mrb[0].mxu0
    %v1690 = vpop.f32.mrb[0].mxu0
    %1691 = vdwg.mxu0
    %v1692 = vsel %vm1124, %v1645, 0.0
    %v1693 = vrot.slane %v1692, 4
    %v1694 = vadd.f32 %v1692, %v1693
    %v1695 = vrot.slane %v1694, 2
    %v1696 = vadd.f32 %v1694, %v1695
    %v1697 = vrot.slane %v1696, 1
    %v1698 = vadd.f32 %v1696, %v1697
    %v1699 = vsel %vm1124, %v1647, 0.0
    %v1700 = vrot.slane %v1699, 4
    %v1701 = vadd.f32 %v1699, %v1700
    %v1702 = vrot.slane %v1701, 2
    %v1703 = vadd.f32 %v1701, %v1702
    %v1704 = vrot.slane %v1703, 1
    %v1705 = vadd.f32 %v1703, %v1704
    %v1706 = vsel %vm1124, %v1686, 0.0
    %v1707 = vrot.slane %v1706, 4
    %v1708 = vadd.f32 %v1706, %v1707
    %v1709 = vrot.slane %v1708, 2
    %v1710 = vadd.f32 %v1708, %v1709
    %v1711 = vrot.slane %v1710, 1
    %v1712 = vadd.f32 %v1710, %v1711
    %v1713 = vsel %vm1124, %v1688, 0.0
    %v1714 = vrot.slane %v1713, 4
    %v1715 = vadd.f32 %v1713, %v1714
    %v1716 = vrot.slane %v1715, 2
    %v1717 = vadd.f32 %v1715, %v1716
    %v1718 = vrot.slane %v1717, 1
    %v1719 = vadd.f32 %v1717, %v1718
    %v1720 = vmul.f32 %v1698, %v1139
    %v1721 = vmul.f32 %v1705, %v1139
    %v1722 = vmul.f32 %v1712, %v1139
    %v1723 = vmul.f32 %v1719, %v1139
    %v1724 = vsub.f32 %v1645, %v1720
    %v1725 = vsub.f32 %v1647, %v1721
    %v1726 = vsub.f32 %v1686, %v1722
    %v1727 = vsub.f32 %v1688, %v1723
    %v1728 = vmul.f32 %v1724, %v1724
    %v1729 = vmul.f32 %v1725, %v1725
    %v1730 = vmul.f32 %v1726, %v1726
    %v1731 = vmul.f32 %v1727, %v1727
    %v1732 = vsel %vm1124, %v1728, 0.0
    %v1733 = vrot.slane %v1732, 4
    %v1734 = vadd.f32 %v1732, %v1733
    %v1735 = vrot.slane %v1734, 2
    %v1736 = vadd.f32 %v1734, %v1735
    %v1737 = vrot.slane %v1736, 1
    %v1738 = vadd.f32 %v1736, %v1737
    %v1739 = vsel %vm1124, %v1729, 0.0
    %v1740 = vrot.slane %v1739, 4
    %v1741 = vadd.f32 %v1739, %v1740
    %v1742 = vrot.slane %v1741, 2
    %v1743 = vadd.f32 %v1741, %v1742
    %v1744 = vrot.slane %v1743, 1
    %v1745 = vadd.f32 %v1743, %v1744
    %v1746 = vsel %vm1124, %v1730, 0.0
    %v1747 = vrot.slane %v1746, 4
    %v1748 = vadd.f32 %v1746, %v1747
    %v1749 = vrot.slane %v1748, 2
    %v1750 = vadd.f32 %v1748, %v1749
    %v1751 = vrot.slane %v1750, 1
    %v1752 = vadd.f32 %v1750, %v1751
    %v1753 = vsel %vm1124, %v1731, 0.0
    %v1754 = vrot.slane %v1753, 4
    %v1755 = vadd.f32 %v1753, %v1754
    %v1756 = vrot.slane %v1755, 2
    %v1757 = vadd.f32 %v1755, %v1756
    %v1758 = vrot.slane %v1757, 1
    %v1759 = vadd.f32 %v1757, %v1758
    %v1760 = vmul.f32 %v1738, %v1139
    %v1761 = vmul.f32 %v1745, %v1139
    %v1762 = vmul.f32 %v1752, %v1139
    %v1763 = vmul.f32 %v1759, %v1139
    %v1764 = vadd.f32 %v1760, 0.8
    %v1765 = vadd.f32 %v1761, 0.8
    %v1766 = vadd.f32 %v1762, 0.8
    %v1767 = vadd.f32 %v1763, 0.8
    %v1768 = vrsqrt.pop %v1764
    %v1769 = vrsqrt.pop %v1765
    %v1770 = vrsqrt.pop %v1766
    %v1771 = vrsqrt.pop %v1767
    %v1772 = vmul.f32 %v1724, %v1768
    %v1773 = vmul.f32 %v1725, %v1769
    %v1774 = vmul.f32 %v1726, %v1770
    %v1775 = vmul.f32 %v1727, %v1771
    %v1776 = vld [vmem:[#allocation17] sm:$0xf]
    %v1778 = vlaneseq
    %v1779 = vshrl.u32 %v1778, 7
    %v1780 = vsub.s32 0, %v1779
    %v1781 = vrot.slane %v1776, %v1780
    %v1782 = vlaneseq
    %v1783 = vshrl.u32 %v1782, 7
    %v1784 = vsub.s32 1, %v1783
    %v1785 = vrot.slane %v1776, %v1784
    %v1786 = vlaneseq
    %v1787 = vshrl.u32 %v1786, 7
    %v1788 = vsub.s32 2, %v1787
    %v1789 = vrot.slane %v1776, %v1788
    %v1790 = vlaneseq
    %v1791 = vshrl.u32 %v1790, 7
    %v1792 = vsub.s32 3, %v1791
    %v1793 = vrot.slane %v1776, %v1792
    %v1798 = vmul.f32 %v1772, %v1781
    %v1799 = vmul.f32 %v1773, %v1785
    %v1800 = vmul.f32 %v1774, %v1789
    %v1801 = vmul.f32 %v1775, %v1793
    %v1802 = vld [vmem:[#allocation19] sm:$0xf]
    %v1804 = vlaneseq
    %v1805 = vshrl.u32 %v1804, 7
    %v1806 = vsub.s32 0, %v1805
    %v1807 = vrot.slane %v1802, %v1806
    %v1808 = vlaneseq
    %v1809 = vshrl.u32 %v1808, 7
    %v1810 = vsub.s32 1, %v1809
    %v1811 = vrot.slane %v1802, %v1810
    %v1812 = vlaneseq
    %v1813 = vshrl.u32 %v1812, 7
    %v1814 = vsub.s32 2, %v1813
    %v1815 = vrot.slane %v1802, %v1814
    %v1816 = vlaneseq
    %v1817 = vshrl.u32 %v1816, 7
    %v1818 = vsub.s32 3, %v1817
    %v1819 = vrot.slane %v1802, %v1818
    %v1824 = vadd.f32 %v1798, %v1807
    %v1825 = vadd.f32 %v1799, %v1811
    %v1826 = vadd.f32 %v1800, %v1815
    %v1827 = vadd.f32 %v1801, %v1819
    %vm1828 = vcmp.gt.f32.partialorder %v1824, 0.0
    %vm1829 = vcmp.gt.f32.partialorder %v1825, 0.0
    %vm1830 = vcmp.gt.f32.partialorder %v1826, 0.0
    %vm1831 = vcmp.gt.f32.partialorder %v1827, 0.0
    %v1832 = vmul.f32 %v1824, 0.2
    %v1833 = vmul.f32 %v1825, 0.2
    %v1834 = vmul.f32 %v1826, 0.2
    %v1835 = vmul.f32 %v1827, 0.2
    %v1836 = vsel %vm1828, %v1824, %v1832
    %v1837 = vsel %vm1829, %v1825, %v1833
    %v1838 = vsel %vm1830, %v1826, %v1834
    %v1839 = vsel %vm1831, %v1827, %v1835
    %v1840 = vpack.c.bf16 %v1836, %v1836
    %v1841 = vpack.c.bf16 %v1837, %v1837
    %v1842 = vpack.c.bf16 %v1838, %v1838
    %v1843 = vpack.c.bf16 %v1839, %v1839
    %v1844 = vld [vmem:[#allocation20] sm:$0xff]
    %v1845 = vld [vmem:[#allocation20 + $0x8] sm:$0xff]
    %v1846 = vld [vmem:[#allocation20 + $0x10] sm:$0xff]
    %v1847 = vld [vmem:[#allocation20 + $0x18] sm:$0xff]
    %v1848 = vld [vmem:[#allocation20 + $0x20] sm:$0xff]
    %v1849 = vld [vmem:[#allocation20 + $0x28] sm:$0xff]
    %v1850 = vld [vmem:[#allocation20 + $0x30] sm:$0xff]
    %v1851 = vld [vmem:[#allocation20 + $0x38] sm:$0xff]
    %v1852 = vld [vmem:[#allocation20 + $0x40] sm:$0xff]
    %v1853 = vld [vmem:[#allocation20 + $0x48] sm:$0xff]
    %v1854 = vld [vmem:[#allocation20 + $0x50] sm:$0xff]
    %v1855 = vld [vmem:[#allocation20 + $0x58] sm:$0xff]
    %v1856 = vld [vmem:[#allocation20 + $0x60] sm:$0xff]
    %v1857 = vld [vmem:[#allocation20 + $0x68] sm:$0xff]
    %v1858 = vld [vmem:[#allocation20 + $0x70] sm:$0xff]
    %v1859 = vld [vmem:[#allocation20 + $0x78] sm:$0xff]
    %v1860 = vld [vmem:[#allocation20 + $0x80] sm:$0xff]
    %v1861 = vld [vmem:[#allocation20 + $0x88] sm:$0xff]
    %v1862 = vld [vmem:[#allocation20 + $0x90] sm:$0xff]
    %v1863 = vld [vmem:[#allocation20 + $0x98] sm:$0xff]
    %v1864 = vld [vmem:[#allocation20 + $0xa0] sm:$0xff]
    %v1865 = vld [vmem:[#allocation20 + $0xa8] sm:$0xff]
    %v1866 = vld [vmem:[#allocation20 + $0xb0] sm:$0xff]
    %v1867 = vld [vmem:[#allocation20 + $0xb8] sm:$0xff]
    %v1868 = vld [vmem:[#allocation20 + $0xc0] sm:$0xff]
    %v1869 = vld [vmem:[#allocation20 + $0xc8] sm:$0xff]
    %v1870 = vld [vmem:[#allocation20 + $0xd0] sm:$0xff]
    %v1871 = vld [vmem:[#allocation20 + $0xd8] sm:$0xff]
    %v1872 = vld [vmem:[#allocation20 + $0xe0] sm:$0xff]
    %v1873 = vld [vmem:[#allocation20 + $0xe8] sm:$0xff]
    %v1874 = vld [vmem:[#allocation20 + $0xf0] sm:$0xff]
    %v1875 = vld [vmem:[#allocation20 + $0xf8] sm:$0xff]
    %v1876 = vld [vmem:[#allocation20 + $0x100] sm:$0xff]
    %v1877 = vld [vmem:[#allocation20 + $0x108] sm:$0xff]
    %v1878 = vld [vmem:[#allocation20 + $0x110] sm:$0xff]
    %v1879 = vld [vmem:[#allocation20 + $0x118] sm:$0xff]
    %v1880 = vld [vmem:[#allocation20 + $0x120] sm:$0xff]
    %v1881 = vld [vmem:[#allocation20 + $0x128] sm:$0xff]
    %v1882 = vld [vmem:[#allocation20 + $0x130] sm:$0xff]
    %v1883 = vld [vmem:[#allocation20 + $0x138] sm:$0xff]
    %v1884 = vld [vmem:[#allocation20 + $0x140] sm:$0xff]
    %v1885 = vld [vmem:[#allocation20 + $0x148] sm:$0xff]
    %v1886 = vld [vmem:[#allocation20 + $0x150] sm:$0xff]
    %v1887 = vld [vmem:[#allocation20 + $0x158] sm:$0xff]
    %v1888 = vld [vmem:[#allocation20 + $0x160] sm:$0xff]
    %v1889 = vld [vmem:[#allocation20 + $0x168] sm:$0xff]
    %v1890 = vld [vmem:[#allocation20 + $0x170] sm:$0xff]
    %v1891 = vld [vmem:[#allocation20 + $0x178] sm:$0xff]
    %v1892 = vld [vmem:[#allocation20 + $0x180] sm:$0xff]
    %v1893 = vld [vmem:[#allocation20 + $0x188] sm:$0xff]
    %v1894 = vld [vmem:[#allocation20 + $0x190] sm:$0xff]
    %v1895 = vld [vmem:[#allocation20 + $0x198] sm:$0xff]
    %v1896 = vld [vmem:[#allocation20 + $0x1a0] sm:$0xff]
    %v1897 = vld [vmem:[#allocation20 + $0x1a8] sm:$0xff]
    %v1898 = vld [vmem:[#allocation20 + $0x1b0] sm:$0xff]
    %v1899 = vld [vmem:[#allocation20 + $0x1b8] sm:$0xff]
    %v1900 = vld [vmem:[#allocation20 + $0x1c0] sm:$0xff]
    %v1901 = vld [vmem:[#allocation20 + $0x1c8] sm:$0xff]
    %v1902 = vld [vmem:[#allocation20 + $0x1d0] sm:$0xff]
    %v1903 = vld [vmem:[#allocation20 + $0x1d8] sm:$0xff]
    %v1904 = vld [vmem:[#allocation20 + $0x1e0] sm:$0xff]
    %v1905 = vld [vmem:[#allocation20 + $0x1e8] sm:$0xff]
    %v1906 = vld [vmem:[#allocation20 + $0x1f0] sm:$0xff]
    %v1907 = vld [vmem:[#allocation20 + $0x1f8] sm:$0xff]
    %v1908 = vld [vmem:[#allocation20 + $0x200] sm:$0xff]
    %v1909 = vld [vmem:[#allocation20 + $0x208] sm:$0xff]
    %v1910 = vld [vmem:[#allocation20 + $0x210] sm:$0xff]
    %v1911 = vld [vmem:[#allocation20 + $0x218] sm:$0xff]
    %v1912 = vld [vmem:[#allocation20 + $0x220] sm:$0xff]
    %v1913 = vld [vmem:[#allocation20 + $0x228] sm:$0xff]
    %v1914 = vld [vmem:[#allocation20 + $0x230] sm:$0xff]
    %v1915 = vld [vmem:[#allocation20 + $0x238] sm:$0xff]
    %v1916 = vld [vmem:[#allocation20 + $0x240] sm:$0xff]
    %v1917 = vld [vmem:[#allocation20 + $0x248] sm:$0xff]
    %v1918 = vld [vmem:[#allocation20 + $0x250] sm:$0xff]
    %v1919 = vld [vmem:[#allocation20 + $0x258] sm:$0xff]
    %v1920 = vld [vmem:[#allocation20 + $0x260] sm:$0xff]
    %v1921 = vld [vmem:[#allocation20 + $0x268] sm:$0xff]
    %v1922 = vld [vmem:[#allocation20 + $0x270] sm:$0xff]
    %v1923 = vld [vmem:[#allocation20 + $0x278] sm:$0xff]
    %v1924 = vld [vmem:[#allocation20 + $0x280] sm:$0xff]
    %v1925 = vld [vmem:[#allocation20 + $0x288] sm:$0xff]
    %v1926 = vld [vmem:[#allocation20 + $0x290] sm:$0xff]
    %v1927 = vld [vmem:[#allocation20 + $0x298] sm:$0xff]
    %v1928 = vld [vmem:[#allocation20 + $0x2a0] sm:$0xff]
    %v1929 = vld [vmem:[#allocation20 + $0x2a8] sm:$0xff]
    %v1930 = vld [vmem:[#allocation20 + $0x2b0] sm:$0xff]
    %v1931 = vld [vmem:[#allocation20 + $0x2b8] sm:$0xff]
    %v1932 = vld [vmem:[#allocation20 + $0x2c0] sm:$0xff]
    %v1933 = vld [vmem:[#allocation20 + $0x2c8] sm:$0xff]
    %v1934 = vld [vmem:[#allocation20 + $0x2d0] sm:$0xff]
    %v1935 = vld [vmem:[#allocation20 + $0x2d8] sm:$0xff]
    %v1936 = vld [vmem:[#allocation20 + $0x2e0] sm:$0xff]
    %v1937 = vld [vmem:[#allocation20 + $0x2e8] sm:$0xff]
    %v1938 = vld [vmem:[#allocation20 + $0x2f0] sm:$0xff]
    %v1939 = vld [vmem:[#allocation20 + $0x2f8] sm:$0xff]
    %v1940 = vld [vmem:[#allocation20 + $0x300] sm:$0xff]
    %v1941 = vld [vmem:[#allocation20 + $0x308] sm:$0xff]
    %v1942 = vld [vmem:[#allocation20 + $0x310] sm:$0xff]
    %v1943 = vld [vmem:[#allocation20 + $0x318] sm:$0xff]
    %v1944 = vld [vmem:[#allocation20 + $0x320] sm:$0xff]
    %v1945 = vld [vmem:[#allocation20 + $0x328] sm:$0xff]
    %v1946 = vld [vmem:[#allocation20 + $0x330] sm:$0xff]
    %v1947 = vld [vmem:[#allocation20 + $0x338] sm:$0xff]
    %v1948 = vld [vmem:[#allocation20 + $0x340] sm:$0xff]
    %v1949 = vld [vmem:[#allocation20 + $0x348] sm:$0xff]
    %v1950 = vld [vmem:[#allocation20 + $0x350] sm:$0xff]
    %v1951 = vld [vmem:[#allocation20 + $0x358] sm:$0xff]
    %v1952 = vld [vmem:[#allocation20 + $0x360] sm:$0xff]
    %v1953 = vld [vmem:[#allocation20 + $0x368] sm:$0xff]
    %v1954 = vld [vmem:[#allocation20 + $0x370] sm:$0xff]
    %v1955 = vld [vmem:[#allocation20 + $0x378] sm:$0xff]
    %v1956 = vld [vmem:[#allocation20 + $0x380] sm:$0xff]
    %v1957 = vld [vmem:[#allocation20 + $0x388] sm:$0xff]
    %v1958 = vld [vmem:[#allocation20 + $0x390] sm:$0xff]
    %v1959 = vld [vmem:[#allocation20 + $0x398] sm:$0xff]
    %v1960 = vld [vmem:[#allocation20 + $0x3a0] sm:$0xff]
    %v1961 = vld [vmem:[#allocation20 + $0x3a8] sm:$0xff]
    %v1962 = vld [vmem:[#allocation20 + $0x3b0] sm:$0xff]
    %v1963 = vld [vmem:[#allocation20 + $0x3b8] sm:$0xff]
    %v1964 = vld [vmem:[#allocation20 + $0x3c0] sm:$0xff]
    %v1965 = vld [vmem:[#allocation20 + $0x3c8] sm:$0xff]
    %v1966 = vld [vmem:[#allocation20 + $0x3d0] sm:$0xff]
    %v1967 = vld [vmem:[#allocation20 + $0x3d8] sm:$0xff]
    %v1968 = vld [vmem:[#allocation20 + $0x3e0] sm:$0xff]
    %v1969 = vld [vmem:[#allocation20 + $0x3e8] sm:$0xff]
    %v1970 = vld [vmem:[#allocation20 + $0x3f0] sm:$0xff]
    %v1971 = vld [vmem:[#allocation20 + $0x3f8] sm:$0xff]
    %v1972 = vld [vmem:[#allocation20 + $0x400] sm:$0xff]
    %v1973 = vld [vmem:[#allocation20 + $0x408] sm:$0xff]
    %v1974 = vld [vmem:[#allocation20 + $0x410] sm:$0xff]
    %v1975 = vld [vmem:[#allocation20 + $0x418] sm:$0xff]
    %v1976 = vld [vmem:[#allocation20 + $0x420] sm:$0xff]
    %v1977 = vld [vmem:[#allocation20 + $0x428] sm:$0xff]
    %v1978 = vld [vmem:[#allocation20 + $0x430] sm:$0xff]
    %v1979 = vld [vmem:[#allocation20 + $0x438] sm:$0xff]
    %v1980 = vld [vmem:[#allocation20 + $0x440] sm:$0xff]
    %v1981 = vld [vmem:[#allocation20 + $0x448] sm:$0xff]
    %v1982 = vld [vmem:[#allocation20 + $0x450] sm:$0xff]
    %v1983 = vld [vmem:[#allocation20 + $0x458] sm:$0xff]
    %v1984 = vld [vmem:[#allocation20 + $0x460] sm:$0xff]
    %v1985 = vld [vmem:[#allocation20 + $0x468] sm:$0xff]
    %v1986 = vld [vmem:[#allocation20 + $0x470] sm:$0xff]
    %v1987 = vld [vmem:[#allocation20 + $0x478] sm:$0xff]
    %v1988 = vld [vmem:[#allocation20 + $0x480] sm:$0xff]
    %v1989 = vld [vmem:[#allocation20 + $0x488] sm:$0xff]
    %v1990 = vld [vmem:[#allocation20 + $0x490] sm:$0xff]
    %v1991 = vld [vmem:[#allocation20 + $0x498] sm:$0xff]
    %v1992 = vld [vmem:[#allocation20 + $0x4a0] sm:$0xff]
    %v1993 = vld [vmem:[#allocation20 + $0x4a8] sm:$0xff]
    %v1994 = vld [vmem:[#allocation20 + $0x4b0] sm:$0xff]
    %v1995 = vld [vmem:[#allocation20 + $0x4b8] sm:$0xff]
    %v1996 = vld [vmem:[#allocation20 + $0x4c0] sm:$0xff]
    %v1997 = vld [vmem:[#allocation20 + $0x4c8] sm:$0xff]
    %v1998 = vld [vmem:[#allocation20 + $0x4d0] sm:$0xff]
    %v1999 = vld [vmem:[#allocation20 + $0x4d8] sm:$0xff]
    %v2000 = vld [vmem:[#allocation20 + $0x4e0] sm:$0xff]
    %v2001 = vld [vmem:[#allocation20 + $0x4e8] sm:$0xff]
    %v2002 = vld [vmem:[#allocation20 + $0x4f0] sm:$0xff]
    %v2003 = vld [vmem:[#allocation20 + $0x4f8] sm:$0xff]
    %v2004 = vld [vmem:[#allocation20 + $0x500] sm:$0xff]
    %v2005 = vld [vmem:[#allocation20 + $0x508] sm:$0xff]
    %v2006 = vld [vmem:[#allocation20 + $0x510] sm:$0xff]
    %v2007 = vld [vmem:[#allocation20 + $0x518] sm:$0xff]
    %v2008 = vld [vmem:[#allocation20 + $0x520] sm:$0xff]
    %v2009 = vld [vmem:[#allocation20 + $0x528] sm:$0xff]
    %v2010 = vld [vmem:[#allocation20 + $0x530] sm:$0xff]
    %v2011 = vld [vmem:[#allocation20 + $0x538] sm:$0xff]
    %v2012 = vld [vmem:[#allocation20 + $0x540] sm:$0xff]
    %v2013 = vld [vmem:[#allocation20 + $0x548] sm:$0xff]
    %v2014 = vld [vmem:[#allocation20 + $0x550] sm:$0xff]
    %v2015 = vld [vmem:[#allocation20 + $0x558] sm:$0xff]
    %v2016 = vld [vmem:[#allocation20 + $0x560] sm:$0xff]
    %v2017 = vld [vmem:[#allocation20 + $0x568] sm:$0xff]
    %v2018 = vld [vmem:[#allocation20 + $0x570] sm:$0xff]
    %v2019 = vld [vmem:[#allocation20 + $0x578] sm:$0xff]
    %v2020 = vld [vmem:[#allocation20 + $0x580] sm:$0xff]
    %v2021 = vld [vmem:[#allocation20 + $0x588] sm:$0xff]
    %v2022 = vld [vmem:[#allocation20 + $0x590] sm:$0xff]
    %v2023 = vld [vmem:[#allocation20 + $0x598] sm:$0xff]
    %v2024 = vld [vmem:[#allocation20 + $0x5a0] sm:$0xff]
    %v2025 = vld [vmem:[#allocation20 + $0x5a8] sm:$0xff]
    %v2026 = vld [vmem:[#allocation20 + $0x5b0] sm:$0xff]
    %v2027 = vld [vmem:[#allocation20 + $0x5b8] sm:$0xff]
    %v2028 = vld [vmem:[#allocation20 + $0x5c0] sm:$0xff]
    %v2029 = vld [vmem:[#allocation20 + $0x5c8] sm:$0xff]
    %v2030 = vld [vmem:[#allocation20 + $0x5d0] sm:$0xff]
    %v2031 = vld [vmem:[#allocation20 + $0x5d8] sm:$0xff]
    %v2032 = vld [vmem:[#allocation20 + $0x5e0] sm:$0xff]
    %v2033 = vld [vmem:[#allocation20 + $0x5e8] sm:$0xff]
    %v2034 = vld [vmem:[#allocation20 + $0x5f0] sm:$0xff]
    %v2035 = vld [vmem:[#allocation20 + $0x5f8] sm:$0xff]
    %v2036 = vld [vmem:[#allocation20 + $0x600] sm:$0xff]
    %v2037 = vld [vmem:[#allocation20 + $0x608] sm:$0xff]
    %v2038 = vld [vmem:[#allocation20 + $0x610] sm:$0xff]
    %v2039 = vld [vmem:[#allocation20 + $0x618] sm:$0xff]
    %v2040 = vld [vmem:[#allocation20 + $0x620] sm:$0xff]
    %v2041 = vld [vmem:[#allocation20 + $0x628] sm:$0xff]
    %v2042 = vld [vmem:[#allocation20 + $0x630] sm:$0xff]
    %v2043 = vld [vmem:[#allocation20 + $0x638] sm:$0xff]
    %v2044 = vld [vmem:[#allocation20 + $0x640] sm:$0xff]
    %v2045 = vld [vmem:[#allocation20 + $0x648] sm:$0xff]
    %v2046 = vld [vmem:[#allocation20 + $0x650] sm:$0xff]
    %v2047 = vld [vmem:[#allocation20 + $0x658] sm:$0xff]
    %v2048 = vld [vmem:[#allocation20 + $0x660] sm:$0xff]
    %v2049 = vld [vmem:[#allocation20 + $0x668] sm:$0xff]
    %v2050 = vld [vmem:[#allocation20 + $0x670] sm:$0xff]
    %v2051 = vld [vmem:[#allocation20 + $0x678] sm:$0xff]
    %v2052 = vld [vmem:[#allocation20 + $0x680] sm:$0xff]
    %v2053 = vld [vmem:[#allocation20 + $0x688] sm:$0xff]
    %v2054 = vld [vmem:[#allocation20 + $0x690] sm:$0xff]
    %v2055 = vld [vmem:[#allocation20 + $0x698] sm:$0xff]
    %v2056 = vld [vmem:[#allocation20 + $0x6a0] sm:$0xff]
    %v2057 = vld [vmem:[#allocation20 + $0x6a8] sm:$0xff]
    %v2058 = vld [vmem:[#allocation20 + $0x6b0] sm:$0xff]
    %v2059 = vld [vmem:[#allocation20 + $0x6b8] sm:$0xff]
    %v2060 = vld [vmem:[#allocation20 + $0x6c0] sm:$0xff]
    %v2061 = vld [vmem:[#allocation20 + $0x6c8] sm:$0xff]
    %v2062 = vld [vmem:[#allocation20 + $0x6d0] sm:$0xff]
    %v2063 = vld [vmem:[#allocation20 + $0x6d8] sm:$0xff]
    %v2064 = vld [vmem:[#allocation20 + $0x6e0] sm:$0xff]
    %v2065 = vld [vmem:[#allocation20 + $0x6e8] sm:$0xff]
    %v2066 = vld [vmem:[#allocation20 + $0x6f0] sm:$0xff]
    %v2067 = vld [vmem:[#allocation20 + $0x6f8] sm:$0xff]
    %v2068 = vld [vmem:[#allocation20 + $0x700] sm:$0xff]
    %v2069 = vld [vmem:[#allocation20 + $0x708] sm:$0xff]
    %v2070 = vld [vmem:[#allocation20 + $0x710] sm:$0xff]
    %v2071 = vld [vmem:[#allocation20 + $0x718] sm:$0xff]
    %v2072 = vld [vmem:[#allocation20 + $0x720] sm:$0xff]
    %v2073 = vld [vmem:[#allocation20 + $0x728] sm:$0xff]
    %v2074 = vld [vmem:[#allocation20 + $0x730] sm:$0xff]
    %v2075 = vld [vmem:[#allocation20 + $0x738] sm:$0xff]
    %v2076 = vld [vmem:[#allocation20 + $0x740] sm:$0xff]
    %v2077 = vld [vmem:[#allocation20 + $0x748] sm:$0xff]
    %v2078 = vld [vmem:[#allocation20 + $0x750] sm:$0xff]
    %v2079 = vld [vmem:[#allocation20 + $0x758] sm:$0xff]
    %v2080 = vld [vmem:[#allocation20 + $0x760] sm:$0xff]
    %v2081 = vld [vmem:[#allocation20 + $0x768] sm:$0xff]
    %v2082 = vld [vmem:[#allocation20 + $0x770] sm:$0xff]
    %v2083 = vld [vmem:[#allocation20 + $0x778] sm:$0xff]
    %v2084 = vld [vmem:[#allocation20 + $0x780] sm:$0xff]
    %v2085 = vld [vmem:[#allocation20 + $0x788] sm:$0xff]
    %v2086 = vld [vmem:[#allocation20 + $0x790] sm:$0xff]
    %v2087 = vld [vmem:[#allocation20 + $0x798] sm:$0xff]
    %v2088 = vld [vmem:[#allocation20 + $0x7a0] sm:$0xff]
    %v2089 = vld [vmem:[#allocation20 + $0x7a8] sm:$0xff]
    %v2090 = vld [vmem:[#allocation20 + $0x7b0] sm:$0xff]
    %v2091 = vld [vmem:[#allocation20 + $0x7b8] sm:$0xff]
    %v2092 = vld [vmem:[#allocation20 + $0x7c0] sm:$0xff]
    %v2093 = vld [vmem:[#allocation20 + $0x7c8] sm:$0xff]
    %v2094 = vld [vmem:[#allocation20 + $0x7d0] sm:$0xff]
    %v2095 = vld [vmem:[#allocation20 + $0x7d8] sm:$0xff]
    %v2096 = vld [vmem:[#allocation20 + $0x7e0] sm:$0xff]
    %v2097 = vld [vmem:[#allocation20 + $0x7e8] sm:$0xff]
    %v2098 = vld [vmem:[#allocation20 + $0x7f0] sm:$0xff]
    %v2099 = vld [vmem:[#allocation20 + $0x7f8] sm:$0xff]
    %v2100 = vld [vmem:[#allocation22] sm:$0xff]
    %v2102 = vlaneseq
    %v2103 = vshrl.u32 %v2102, 7
    %v2104 = vsub.s32 0, %v2103
    %v2105 = vrot.slane %v2100, %v2104
    %v2106 = vlaneseq
    %v2107 = vshrl.u32 %v2106, 7
    %v2108 = vsub.s32 1, %v2107
    %v2109 = vrot.slane %v2100, %v2108
    %v2110 = vlaneseq
    %v2111 = vshrl.u32 %v2110, 7
    %v2112 = vsub.s32 2, %v2111
    %v2113 = vrot.slane %v2100, %v2112
    %v2114 = vlaneseq
    %v2115 = vshrl.u32 %v2114, 7
    %v2116 = vsub.s32 3, %v2115
    %v2117 = vrot.slane %v2100, %v2116
    %v2118 = vlaneseq
    %v2119 = vshrl.u32 %v2118, 7
    %v2120 = vsub.s32 4, %v2119
    %v2121 = vrot.slane %v2100, %v2120
    %v2122 = vlaneseq
    %v2123 = vshrl.u32 %v2122, 7
    %v2124 = vsub.s32 5, %v2123
    %v2125 = vrot.slane %v2100, %v2124
    %v2126 = vlaneseq
    %v2127 = vshrl.u32 %v2126, 7
    %v2128 = vsub.s32 6, %v2127
    %v2129 = vrot.slane %v2100, %v2128
    %v2130 = vlaneseq
    %v2131 = vshrl.u32 %v2130, 7
    %v2132 = vsub.s32 7, %v2131
    %v2133 = vrot.slane %v2100, %v2132
    %v2398 = vunpack.c.l.b16 %v1844
    %v2399 = vunpack.c.h.b16 %v1844
    %v2400 = vunpack.c.l.b16 %v1845
    %v2401 = vunpack.c.h.b16 %v1845
    %v2402 = vunpack.c.l.b16 %v1846
    %v2403 = vunpack.c.h.b16 %v1846
    %v2404 = vunpack.c.l.b16 %v1847
    %v2405 = vunpack.c.h.b16 %v1847
    %v2406 = vunpack.c.l.b16 %v1848
    %v2407 = vunpack.c.h.b16 %v1848
    %v2408 = vunpack.c.l.b16 %v1849
    %v2409 = vunpack.c.h.b16 %v1849
    %v2410 = vunpack.c.l.b16 %v1850
    %v2411 = vunpack.c.h.b16 %v1850
    %v2412 = vunpack.c.l.b16 %v1851
    %v2413 = vunpack.c.h.b16 %v1851
    %v2414 = vunpack.c.l.b16 %v1852
    %v2415 = vunpack.c.h.b16 %v1852
    %v2416 = vunpack.c.l.b16 %v1853
    %v2417 = vunpack.c.h.b16 %v1853
    %v2418 = vunpack.c.l.b16 %v1854
    %v2419 = vunpack.c.h.b16 %v1854
    %v2420 = vunpack.c.l.b16 %v1855
    %v2421 = vunpack.c.h.b16 %v1855
    %v2422 = vunpack.c.l.b16 %v1856
    %v2423 = vunpack.c.h.b16 %v1856
    %v2424 = vunpack.c.l.b16 %v1857
    %v2425 = vunpack.c.h.b16 %v1857
    %v2426 = vunpack.c.l.b16 %v1858
    %v2427 = vunpack.c.h.b16 %v1858
    %v2428 = vunpack.c.l.b16 %v1859
    %v2429 = vunpack.c.h.b16 %v1859
    %v2430 = vunpack.c.l.b16 %v1860
    %v2431 = vunpack.c.h.b16 %v1860
    %v2432 = vunpack.c.l.b16 %v1861
    %v2433 = vunpack.c.h.b16 %v1861
    %v2434 = vunpack.c.l.b16 %v1862
    %v2435 = vunpack.c.h.b16 %v1862
    %v2436 = vunpack.c.l.b16 %v1863
    %v2437 = vunpack.c.h.b16 %v1863
    %v2438 = vunpack.c.l.b16 %v1864
    %v2439 = vunpack.c.h.b16 %v1864
    %v2440 = vunpack.c.l.b16 %v1865
    %v2441 = vunpack.c.h.b16 %v1865
    %v2442 = vunpack.c.l.b16 %v1866
    %v2443 = vunpack.c.h.b16 %v1866
    %v2444 = vunpack.c.l.b16 %v1867
    %v2445 = vunpack.c.h.b16 %v1867
    %v2446 = vunpack.c.l.b16 %v1868
    %v2447 = vunpack.c.h.b16 %v1868
    %v2448 = vunpack.c.l.b16 %v1869
    %v2449 = vunpack.c.h.b16 %v1869
    %v2450 = vunpack.c.l.b16 %v1870
    %v2451 = vunpack.c.h.b16 %v1870
    %v2452 = vunpack.c.l.b16 %v1871
    %v2453 = vunpack.c.h.b16 %v1871
    %v2454 = vunpack.c.l.b16 %v1872
    %v2455 = vunpack.c.h.b16 %v1872
    %v2456 = vunpack.c.l.b16 %v1873
    %v2457 = vunpack.c.h.b16 %v1873
    %v2458 = vunpack.c.l.b16 %v1874
    %v2459 = vunpack.c.h.b16 %v1874
    %v2460 = vunpack.c.l.b16 %v1875
    %v2461 = vunpack.c.h.b16 %v1875
    %v2462 = vunpack.c.l.b16 %v1876
    %v2463 = vunpack.c.h.b16 %v1876
    %v2464 = vunpack.c.l.b16 %v1877
    %v2465 = vunpack.c.h.b16 %v1877
    %v2466 = vunpack.c.l.b16 %v1878
    %v2467 = vunpack.c.h.b16 %v1878
    %v2468 = vunpack.c.l.b16 %v1879
    %v2469 = vunpack.c.h.b16 %v1879
    %v2470 = vunpack.c.l.b16 %v1880
    %v2471 = vunpack.c.h.b16 %v1880
    %v2472 = vunpack.c.l.b16 %v1881
    %v2473 = vunpack.c.h.b16 %v1881
    %v2474 = vunpack.c.l.b16 %v1882
    %v2475 = vunpack.c.h.b16 %v1882
    %v2476 = vunpack.c.l.b16 %v1883
    %v2477 = vunpack.c.h.b16 %v1883
    %v2478 = vunpack.c.l.b16 %v1884
    %v2479 = vunpack.c.h.b16 %v1884
    %v2480 = vunpack.c.l.b16 %v1885
    %v2481 = vunpack.c.h.b16 %v1885
    %v2482 = vunpack.c.l.b16 %v1886
    %v2483 = vunpack.c.h.b16 %v1886
    %v2484 = vunpack.c.l.b16 %v1887
    %v2485 = vunpack.c.h.b16 %v1887
    %v2486 = vunpack.c.l.b16 %v1888
    %v2487 = vunpack.c.h.b16 %v1888
    %v2488 = vunpack.c.l.b16 %v1889
    %v2489 = vunpack.c.h.b16 %v1889
    %v2490 = vunpack.c.l.b16 %v1890
    %v2491 = vunpack.c.h.b16 %v1890
    %v2492 = vunpack.c.l.b16 %v1891
    %v2493 = vunpack.c.h.b16 %v1891
    %v2494 = vunpack.c.l.b16 %v1892
    %v2495 = vunpack.c.h.b16 %v1892
    %v2496 = vunpack.c.l.b16 %v1893
    %v2497 = vunpack.c.h.b16 %v1893
    %v2498 = vunpack.c.l.b16 %v1894
    %v2499 = vunpack.c.h.b16 %v1894
    %v2500 = vunpack.c.l.b16 %v1895
    %v2501 = vunpack.c.h.b16 %v1895
    %v2502 = vunpack.c.l.b16 %v1896
    %v2503 = vunpack.c.h.b16 %v1896
    %v2504 = vunpack.c.l.b16 %v1897
    %v2505 = vunpack.c.h.b16 %v1897
    %v2506 = vunpack.c.l.b16 %v1898
    %v2507 = vunpack.c.h.b16 %v1898
    %v2508 = vunpack.c.l.b16 %v1899
    %v2509 = vunpack.c.h.b16 %v1899
    %v2510 = vunpack.c.l.b16 %v1900
    %v2511 = vunpack.c.h.b16 %v1900
    %v2512 = vunpack.c.l.b16 %v1901
    %v2513 = vunpack.c.h.b16 %v1901
    %v2514 = vunpack.c.l.b16 %v1902
    %v2515 = vunpack.c.h.b16 %v1902
    %v2516 = vunpack.c.l.b16 %v1903
    %v2517 = vunpack.c.h.b16 %v1903
    %v2518 = vunpack.c.l.b16 %v1904
    %v2519 = vunpack.c.h.b16 %v1904
    %v2520 = vunpack.c.l.b16 %v1905
    %v2521 = vunpack.c.h.b16 %v1905
    %v2522 = vunpack.c.l.b16 %v1906
    %v2523 = vunpack.c.h.b16 %v1906
    %v2524 = vunpack.c.l.b16 %v1907
    %v2525 = vunpack.c.h.b16 %v1907
    %v2526 = vunpack.c.l.b16 %v1908
    %v2527 = vunpack.c.h.b16 %v1908
    %v2528 = vunpack.c.l.b16 %v1909
    %v2529 = vunpack.c.h.b16 %v1909
    %v2530 = vunpack.c.l.b16 %v1910
    %v2531 = vunpack.c.h.b16 %v1910
    %v2532 = vunpack.c.l.b16 %v1911
    %v2533 = vunpack.c.h.b16 %v1911
    %v2534 = vunpack.c.l.b16 %v1912
    %v2535 = vunpack.c.h.b16 %v1912
    %v2536 = vunpack.c.l.b16 %v1913
    %v2537 = vunpack.c.h.b16 %v1913
    %v2538 = vunpack.c.l.b16 %v1914
    %v2539 = vunpack.c.h.b16 %v1914
    %v2540 = vunpack.c.l.b16 %v1915
    %v2541 = vunpack.c.h.b16 %v1915
    %v2542 = vunpack.c.l.b16 %v1916
    %v2543 = vunpack.c.h.b16 %v1916
    %v2544 = vunpack.c.l.b16 %v1917
    %v2545 = vunpack.c.h.b16 %v1917
    %v2546 = vunpack.c.l.b16 %v1918
    %v2547 = vunpack.c.h.b16 %v1918
    %v2548 = vunpack.c.l.b16 %v1919
    %v2549 = vunpack.c.h.b16 %v1919
    %v2550 = vunpack.c.l.b16 %v1920
    %v2551 = vunpack.c.h.b16 %v1920
    %v2552 = vunpack.c.l.b16 %v1921
    %v2553 = vunpack.c.h.b16 %v1921
    %v2554 = vunpack.c.l.b16 %v1922
    %v2555 = vunpack.c.h.b16 %v1922
    %v2556 = vunpack.c.l.b16 %v1923
    %v2557 = vunpack.c.h.b16 %v1923
    %v2558 = vunpack.c.l.b16 %v1924
    %v2559 = vunpack.c.h.b16 %v1924
    %v2560 = vunpack.c.l.b16 %v1925
    %v2561 = vunpack.c.h.b16 %v1925
    %v2562 = vunpack.c.l.b16 %v1926
    %v2563 = vunpack.c.h.b16 %v1926
    %v2564 = vunpack.c.l.b16 %v1927
    %v2565 = vunpack.c.h.b16 %v1927
    %v2566 = vunpack.c.l.b16 %v1928
    %v2567 = vunpack.c.h.b16 %v1928
    %v2568 = vunpack.c.l.b16 %v1929
    %v2569 = vunpack.c.h.b16 %v1929
    %v2570 = vunpack.c.l.b16 %v1930
    %v2571 = vunpack.c.h.b16 %v1930
    %v2572 = vunpack.c.l.b16 %v1931
    %v2573 = vunpack.c.h.b16 %v1931
    %v2574 = vunpack.c.l.b16 %v1932
    %v2575 = vunpack.c.h.b16 %v1932
    %v2576 = vunpack.c.l.b16 %v1933
    %v2577 = vunpack.c.h.b16 %v1933
    %v2578 = vunpack.c.l.b16 %v1934
    %v2579 = vunpack.c.h.b16 %v1934
    %v2580 = vunpack.c.l.b16 %v1935
    %v2581 = vunpack.c.h.b16 %v1935
    %v2582 = vunpack.c.l.b16 %v1936
    %v2583 = vunpack.c.h.b16 %v1936
    %v2584 = vunpack.c.l.b16 %v1937
    %v2585 = vunpack.c.h.b16 %v1937
    %v2586 = vunpack.c.l.b16 %v1938
    %v2587 = vunpack.c.h.b16 %v1938
    %v2588 = vunpack.c.l.b16 %v1939
    %v2589 = vunpack.c.h.b16 %v1939
    %v2590 = vunpack.c.l.b16 %v1940
    %v2591 = vunpack.c.h.b16 %v1940
    %v2592 = vunpack.c.l.b16 %v1941
    %v2593 = vunpack.c.h.b16 %v1941
    %v2594 = vunpack.c.l.b16 %v1942
    %v2595 = vunpack.c.h.b16 %v1942
    %v2596 = vunpack.c.l.b16 %v1943
    %v2597 = vunpack.c.h.b16 %v1943
    %v2598 = vunpack.c.l.b16 %v1944
    %v2599 = vunpack.c.h.b16 %v1944
    %v2600 = vunpack.c.l.b16 %v1945
    %v2601 = vunpack.c.h.b16 %v1945
    %v2602 = vunpack.c.l.b16 %v1946
    %v2603 = vunpack.c.h.b16 %v1946
    %v2604 = vunpack.c.l.b16 %v1947
    %v2605 = vunpack.c.h.b16 %v1947
    %v2606 = vunpack.c.l.b16 %v1948
    %v2607 = vunpack.c.h.b16 %v1948
    %v2608 = vunpack.c.l.b16 %v1949
    %v2609 = vunpack.c.h.b16 %v1949
    %v2610 = vunpack.c.l.b16 %v1950
    %v2611 = vunpack.c.h.b16 %v1950
    %v2612 = vunpack.c.l.b16 %v1951
    %v2613 = vunpack.c.h.b16 %v1951
    %v2614 = vunpack.c.l.b16 %v1952
    %v2615 = vunpack.c.h.b16 %v1952
    %v2616 = vunpack.c.l.b16 %v1953
    %v2617 = vunpack.c.h.b16 %v1953
    %v2618 = vunpack.c.l.b16 %v1954
    %v2619 = vunpack.c.h.b16 %v1954
    %v2620 = vunpack.c.l.b16 %v1955
    %v2621 = vunpack.c.h.b16 %v1955
    %v2622 = vunpack.c.l.b16 %v1956
    %v2623 = vunpack.c.h.b16 %v1956
    %v2624 = vunpack.c.l.b16 %v1957
    %v2625 = vunpack.c.h.b16 %v1957
    %v2626 = vunpack.c.l.b16 %v1958
    %v2627 = vunpack.c.h.b16 %v1958
    %v2628 = vunpack.c.l.b16 %v1959
    %v2629 = vunpack.c.h.b16 %v1959
    %v2630 = vunpack.c.l.b16 %v1960
    %v2631 = vunpack.c.h.b16 %v1960
    %v2632 = vunpack.c.l.b16 %v1961
    %v2633 = vunpack.c.h.b16 %v1961
    %v2634 = vunpack.c.l.b16 %v1962
    %v2635 = vunpack.c.h.b16 %v1962
    %v2636 = vunpack.c.l.b16 %v1963
    %v2637 = vunpack.c.h.b16 %v1963
    %v2638 = vunpack.c.l.b16 %v1964
    %v2639 = vunpack.c.h.b16 %v1964
    %v2640 = vunpack.c.l.b16 %v1965
    %v2641 = vunpack.c.h.b16 %v1965
    %v2642 = vunpack.c.l.b16 %v1966
    %v2643 = vunpack.c.h.b16 %v1966
    %v2644 = vunpack.c.l.b16 %v1967
    %v2645 = vunpack.c.h.b16 %v1967
    %v2646 = vunpack.c.l.b16 %v1968
    %v2647 = vunpack.c.h.b16 %v1968
    %v2648 = vunpack.c.l.b16 %v1969
    %v2649 = vunpack.c.h.b16 %v1969
    %v2650 = vunpack.c.l.b16 %v1970
    %v2651 = vunpack.c.h.b16 %v1970
    %v2652 = vunpack.c.l.b16 %v1971
    %v2653 = vunpack.c.h.b16 %v1971
    %v2654 = vunpack.c.l.b16 %v1972
    %v2655 = vunpack.c.h.b16 %v1972
    %v2656 = vunpack.c.l.b16 %v1973
    %v2657 = vunpack.c.h.b16 %v1973
    %v2658 = vunpack.c.l.b16 %v1974
    %v2659 = vunpack.c.h.b16 %v1974
    %v2660 = vunpack.c.l.b16 %v1975
    %v2661 = vunpack.c.h.b16 %v1975
    %v2662 = vunpack.c.l.b16 %v1976
    %v2663 = vunpack.c.h.b16 %v1976
    %v2664 = vunpack.c.l.b16 %v1977
    %v2665 = vunpack.c.h.b16 %v1977
    %v2666 = vunpack.c.l.b16 %v1978
    %v2667 = vunpack.c.h.b16 %v1978
    %v2668 = vunpack.c.l.b16 %v1979
    %v2669 = vunpack.c.h.b16 %v1979
    %v2670 = vunpack.c.l.b16 %v1980
    %v2671 = vunpack.c.h.b16 %v1980
    %v2672 = vunpack.c.l.b16 %v1981
    %v2673 = vunpack.c.h.b16 %v1981
    %v2674 = vunpack.c.l.b16 %v1982
    %v2675 = vunpack.c.h.b16 %v1982
    %v2676 = vunpack.c.l.b16 %v1983
    %v2677 = vunpack.c.h.b16 %v1983
    %v2678 = vunpack.c.l.b16 %v1984
    %v2679 = vunpack.c.h.b16 %v1984
    %v2680 = vunpack.c.l.b16 %v1985
    %v2681 = vunpack.c.h.b16 %v1985
    %v2682 = vunpack.c.l.b16 %v1986
    %v2683 = vunpack.c.h.b16 %v1986
    %v2684 = vunpack.c.l.b16 %v1987
    %v2685 = vunpack.c.h.b16 %v1987
    %v2686 = vunpack.c.l.b16 %v1988
    %v2687 = vunpack.c.h.b16 %v1988
    %v2688 = vunpack.c.l.b16 %v1989
    %v2689 = vunpack.c.h.b16 %v1989
    %v2690 = vunpack.c.l.b16 %v1990
    %v2691 = vunpack.c.h.b16 %v1990
    %v2692 = vunpack.c.l.b16 %v1991
    %v2693 = vunpack.c.h.b16 %v1991
    %v2694 = vunpack.c.l.b16 %v1992
    %v2695 = vunpack.c.h.b16 %v1992
    %v2696 = vunpack.c.l.b16 %v1993
    %v2697 = vunpack.c.h.b16 %v1993
    %v2698 = vunpack.c.l.b16 %v1994
    %v2699 = vunpack.c.h.b16 %v1994
    %v2700 = vunpack.c.l.b16 %v1995
    %v2701 = vunpack.c.h.b16 %v1995
    %v2702 = vunpack.c.l.b16 %v1996
    %v2703 = vunpack.c.h.b16 %v1996
    %v2704 = vunpack.c.l.b16 %v1997
    %v2705 = vunpack.c.h.b16 %v1997
    %v2706 = vunpack.c.l.b16 %v1998
    %v2707 = vunpack.c.h.b16 %v1998
    %v2708 = vunpack.c.l.b16 %v1999
    %v2709 = vunpack.c.h.b16 %v1999
    %v2710 = vunpack.c.l.b16 %v2000
    %v2711 = vunpack.c.h.b16 %v2000
    %v2712 = vunpack.c.l.b16 %v2001
    %v2713 = vunpack.c.h.b16 %v2001
    %v2714 = vunpack.c.l.b16 %v2002
    %v2715 = vunpack.c.h.b16 %v2002
    %v2716 = vunpack.c.l.b16 %v2003
    %v2717 = vunpack.c.h.b16 %v2003
    %v2718 = vunpack.c.l.b16 %v2004
    %v2719 = vunpack.c.h.b16 %v2004
    %v2720 = vunpack.c.l.b16 %v2005
    %v2721 = vunpack.c.h.b16 %v2005
    %v2722 = vunpack.c.l.b16 %v2006
    %v2723 = vunpack.c.h.b16 %v2006
    %v2724 = vunpack.c.l.b16 %v2007
    %v2725 = vunpack.c.h.b16 %v2007
    %v2726 = vunpack.c.l.b16 %v2008
    %v2727 = vunpack.c.h.b16 %v2008
    %v2728 = vunpack.c.l.b16 %v2009
    %v2729 = vunpack.c.h.b16 %v2009
    %v2730 = vunpack.c.l.b16 %v2010
    %v2731 = vunpack.c.h.b16 %v2010
    %v2732 = vunpack.c.l.b16 %v2011
    %v2733 = vunpack.c.h.b16 %v2011
    %v2734 = vunpack.c.l.b16 %v2012
    %v2735 = vunpack.c.h.b16 %v2012
    %v2736 = vunpack.c.l.b16 %v2013
    %v2737 = vunpack.c.h.b16 %v2013
    %v2738 = vunpack.c.l.b16 %v2014
    %v2739 = vunpack.c.h.b16 %v2014
    %v2740 = vunpack.c.l.b16 %v2015
    %v2741 = vunpack.c.h.b16 %v2015
    %v2742 = vunpack.c.l.b16 %v2016
    %v2743 = vunpack.c.h.b16 %v2016
    %v2744 = vunpack.c.l.b16 %v2017
    %v2745 = vunpack.c.h.b16 %v2017
    %v2746 = vunpack.c.l.b16 %v2018
    %v2747 = vunpack.c.h.b16 %v2018
    %v2748 = vunpack.c.l.b16 %v2019
    %v2749 = vunpack.c.h.b16 %v2019
    %v2750 = vunpack.c.l.b16 %v2020
    %v2751 = vunpack.c.h.b16 %v2020
    %v2752 = vunpack.c.l.b16 %v2021
    %v2753 = vunpack.c.h.b16 %v2021
    %v2754 = vunpack.c.l.b16 %v2022
    %v2755 = vunpack.c.h.b16 %v2022
    %v2756 = vunpack.c.l.b16 %v2023
    %v2757 = vunpack.c.h.b16 %v2023
    %v2758 = vunpack.c.l.b16 %v2024
    %v2759 = vunpack.c.h.b16 %v2024
    %v2760 = vunpack.c.l.b16 %v2025
    %v2761 = vunpack.c.h.b16 %v2025
    %v2762 = vunpack.c.l.b16 %v2026
    %v2763 = vunpack.c.h.b16 %v2026
    %v2764 = vunpack.c.l.b16 %v2027
    %v2765 = vunpack.c.h.b16 %v2027
    %v2766 = vunpack.c.l.b16 %v2028
    %v2767 = vunpack.c.h.b16 %v2028
    %v2768 = vunpack.c.l.b16 %v2029
    %v2769 = vunpack.c.h.b16 %v2029
    %v2770 = vunpack.c.l.b16 %v2030
    %v2771 = vunpack.c.h.b16 %v2030
    %v2772 = vunpack.c.l.b16 %v2031
    %v2773 = vunpack.c.h.b16 %v2031
    %v2774 = vunpack.c.l.b16 %v2032
    %v2775 = vunpack.c.h.b16 %v2032
    %v2776 = vunpack.c.l.b16 %v2033
    %v2777 = vunpack.c.h.b16 %v2033
    %v2778 = vunpack.c.l.b16 %v2034
    %v2779 = vunpack.c.h.b16 %v2034
    %v2780 = vunpack.c.l.b16 %v2035
    %v2781 = vunpack.c.h.b16 %v2035
    %v2782 = vunpack.c.l.b16 %v2036
    %v2783 = vunpack.c.h.b16 %v2036
    %v2784 = vunpack.c.l.b16 %v2037
    %v2785 = vunpack.c.h.b16 %v2037
    %v2786 = vunpack.c.l.b16 %v2038
    %v2787 = vunpack.c.h.b16 %v2038
    %v2788 = vunpack.c.l.b16 %v2039
    %v2789 = vunpack.c.h.b16 %v2039
    %v2790 = vunpack.c.l.b16 %v2040
    %v2791 = vunpack.c.h.b16 %v2040
    %v2792 = vunpack.c.l.b16 %v2041
    %v2793 = vunpack.c.h.b16 %v2041
    %v2794 = vunpack.c.l.b16 %v2042
    %v2795 = vunpack.c.h.b16 %v2042
    %v2796 = vunpack.c.l.b16 %v2043
    %v2797 = vunpack.c.h.b16 %v2043
    %v2798 = vunpack.c.l.b16 %v2044
    %v2799 = vunpack.c.h.b16 %v2044
    %v2800 = vunpack.c.l.b16 %v2045
    %v2801 = vunpack.c.h.b16 %v2045
    %v2802 = vunpack.c.l.b16 %v2046
    %v2803 = vunpack.c.h.b16 %v2046
    %v2804 = vunpack.c.l.b16 %v2047
    %v2805 = vunpack.c.h.b16 %v2047
    %v2806 = vunpack.c.l.b16 %v2048
    %v2807 = vunpack.c.h.b16 %v2048
    %v2808 = vunpack.c.l.b16 %v2049
    %v2809 = vunpack.c.h.b16 %v2049
    %v2810 = vunpack.c.l.b16 %v2050
    %v2811 = vunpack.c.h.b16 %v2050
    %v2812 = vunpack.c.l.b16 %v2051
    %v2813 = vunpack.c.h.b16 %v2051
    %v2814 = vunpack.c.l.b16 %v2052
    %v2815 = vunpack.c.h.b16 %v2052
    %v2816 = vunpack.c.l.b16 %v2053
    %v2817 = vunpack.c.h.b16 %v2053
    %v2818 = vunpack.c.l.b16 %v2054
    %v2819 = vunpack.c.h.b16 %v2054
    %v2820 = vunpack.c.l.b16 %v2055
    %v2821 = vunpack.c.h.b16 %v2055
    %v2822 = vunpack.c.l.b16 %v2056
    %v2823 = vunpack.c.h.b16 %v2056
    %v2824 = vunpack.c.l.b16 %v2057
    %v2825 = vunpack.c.h.b16 %v2057
    %v2826 = vunpack.c.l.b16 %v2058
    %v2827 = vunpack.c.h.b16 %v2058
    %v2828 = vunpack.c.l.b16 %v2059
    %v2829 = vunpack.c.h.b16 %v2059
    %v2830 = vunpack.c.l.b16 %v2060
    %v2831 = vunpack.c.h.b16 %v2060
    %v2832 = vunpack.c.l.b16 %v2061
    %v2833 = vunpack.c.h.b16 %v2061
    %v2834 = vunpack.c.l.b16 %v2062
    %v2835 = vunpack.c.h.b16 %v2062
    %v2836 = vunpack.c.l.b16 %v2063
    %v2837 = vunpack.c.h.b16 %v2063
    %v2838 = vunpack.c.l.b16 %v2064
    %v2839 = vunpack.c.h.b16 %v2064
    %v2840 = vunpack.c.l.b16 %v2065
    %v2841 = vunpack.c.h.b16 %v2065
    %v2842 = vunpack.c.l.b16 %v2066
    %v2843 = vunpack.c.h.b16 %v2066
    %v2844 = vunpack.c.l.b16 %v2067
    %v2845 = vunpack.c.h.b16 %v2067
    %v2846 = vunpack.c.l.b16 %v2068
    %v2847 = vunpack.c.h.b16 %v2068
    %v2848 = vunpack.c.l.b16 %v2069
    %v2849 = vunpack.c.h.b16 %v2069
    %v2850 = vunpack.c.l.b16 %v2070
    %v2851 = vunpack.c.h.b16 %v2070
    %v2852 = vunpack.c.l.b16 %v2071
    %v2853 = vunpack.c.h.b16 %v2071
    %v2854 = vunpack.c.l.b16 %v2072
    %v2855 = vunpack.c.h.b16 %v2072
    %v2856 = vunpack.c.l.b16 %v2073
    %v2857 = vunpack.c.h.b16 %v2073
    %v2858 = vunpack.c.l.b16 %v2074
    %v2859 = vunpack.c.h.b16 %v2074
    %v2860 = vunpack.c.l.b16 %v2075
    %v2861 = vunpack.c.h.b16 %v2075
    %v2862 = vunpack.c.l.b16 %v2076
    %v2863 = vunpack.c.h.b16 %v2076
    %v2864 = vunpack.c.l.b16 %v2077
    %v2865 = vunpack.c.h.b16 %v2077
    %v2866 = vunpack.c.l.b16 %v2078
    %v2867 = vunpack.c.h.b16 %v2078
    %v2868 = vunpack.c.l.b16 %v2079
    %v2869 = vunpack.c.h.b16 %v2079
    %v2870 = vunpack.c.l.b16 %v2080
    %v2871 = vunpack.c.h.b16 %v2080
    %v2872 = vunpack.c.l.b16 %v2081
    %v2873 = vunpack.c.h.b16 %v2081
    %v2874 = vunpack.c.l.b16 %v2082
    %v2875 = vunpack.c.h.b16 %v2082
    %v2876 = vunpack.c.l.b16 %v2083
    %v2877 = vunpack.c.h.b16 %v2083
    %v2878 = vunpack.c.l.b16 %v2084
    %v2879 = vunpack.c.h.b16 %v2084
    %v2880 = vunpack.c.l.b16 %v2085
    %v2881 = vunpack.c.h.b16 %v2085
    %v2882 = vunpack.c.l.b16 %v2086
    %v2883 = vunpack.c.h.b16 %v2086
    %v2884 = vunpack.c.l.b16 %v2087
    %v2885 = vunpack.c.h.b16 %v2087
    %v2886 = vunpack.c.l.b16 %v2088
    %v2887 = vunpack.c.h.b16 %v2088
    %v2888 = vunpack.c.l.b16 %v2089
    %v2889 = vunpack.c.h.b16 %v2089
    %v2890 = vunpack.c.l.b16 %v2090
    %v2891 = vunpack.c.h.b16 %v2090
    %v2892 = vunpack.c.l.b16 %v2091
    %v2893 = vunpack.c.h.b16 %v2091
    %v2894 = vunpack.c.l.b16 %v2092
    %v2895 = vunpack.c.h.b16 %v2092
    %v2896 = vunpack.c.l.b16 %v2093
    %v2897 = vunpack.c.h.b16 %v2093
    %v2898 = vunpack.c.l.b16 %v2094
    %v2899 = vunpack.c.h.b16 %v2094
    %v2900 = vunpack.c.l.b16 %v2095
    %v2901 = vunpack.c.h.b16 %v2095
    %v2902 = vunpack.c.l.b16 %v2096
    %v2903 = vunpack.c.h.b16 %v2096
    %v2904 = vunpack.c.l.b16 %v2097
    %v2905 = vunpack.c.h.b16 %v2097
    %v2906 = vunpack.c.l.b16 %v2098
    %v2907 = vunpack.c.h.b16 %v2098
    %v2908 = vunpack.c.l.b16 %v2099
    %v2909 = vunpack.c.h.b16 %v2099
    %v2910 = vpack.c.b16 %v2406, %v2398
    %v2911 = vpack.c.b16 %v2407, %v2399
    %v2912 = vpack.c.b16 %v2408, %v2400
    %v2913 = vpack.c.b16 %v2409, %v2401
    %v2914 = vpack.c.b16 %v2410, %v2402
    %v2915 = vpack.c.b16 %v2411, %v2403
    %v2916 = vpack.c.b16 %v2412, %v2404
    %v2917 = vpack.c.b16 %v2413, %v2405
    %v2918 = vpack.c.b16 %v2422, %v2414
    %v2919 = vpack.c.b16 %v2423, %v2415
    %v2920 = vpack.c.b16 %v2424, %v2416
    %v2921 = vpack.c.b16 %v2425, %v2417
    %v2922 = vpack.c.b16 %v2426, %v2418
    %v2923 = vpack.c.b16 %v2427, %v2419
    %v2924 = vpack.c.b16 %v2428, %v2420
    %v2925 = vpack.c.b16 %v2429, %v2421
    %v2926 = vpack.c.b16 %v2438, %v2430
    %v2927 = vpack.c.b16 %v2439, %v2431
    %v2928 = vpack.c.b16 %v2440, %v2432
    %v2929 = vpack.c.b16 %v2441, %v2433
    %v2930 = vpack.c.b16 %v2442, %v2434
    %v2931 = vpack.c.b16 %v2443, %v2435
    %v2932 = vpack.c.b16 %v2444, %v2436
    %v2933 = vpack.c.b16 %v2445, %v2437
    %v2934 = vpack.c.b16 %v2454, %v2446
    %v2935 = vpack.c.b16 %v2455, %v2447
    %v2936 = vpack.c.b16 %v2456, %v2448
    %v2937 = vpack.c.b16 %v2457, %v2449
    %v2938 = vpack.c.b16 %v2458, %v2450
    %v2939 = vpack.c.b16 %v2459, %v2451
    %v2940 = vpack.c.b16 %v2460, %v2452
    %v2941 = vpack.c.b16 %v2461, %v2453
    %v2942 = vpack.c.b16 %v2470, %v2462
    %v2943 = vpack.c.b16 %v2471, %v2463
    %v2944 = vpack.c.b16 %v2472, %v2464
    %v2945 = vpack.c.b16 %v2473, %v2465
    %v2946 = vpack.c.b16 %v2474, %v2466
    %v2947 = vpack.c.b16 %v2475, %v2467
    %v2948 = vpack.c.b16 %v2476, %v2468
    %v2949 = vpack.c.b16 %v2477, %v2469
    %v2950 = vpack.c.b16 %v2486, %v2478
    %v2951 = vpack.c.b16 %v2487, %v2479
    %v2952 = vpack.c.b16 %v2488, %v2480
    %v2953 = vpack.c.b16 %v2489, %v2481
    %v2954 = vpack.c.b16 %v2490, %v2482
    %v2955 = vpack.c.b16 %v2491, %v2483
    %v2956 = vpack.c.b16 %v2492, %v2484
    %v2957 = vpack.c.b16 %v2493, %v2485
    %v2958 = vpack.c.b16 %v2502, %v2494
    %v2959 = vpack.c.b16 %v2503, %v2495
    %v2960 = vpack.c.b16 %v2504, %v2496
    %v2961 = vpack.c.b16 %v2505, %v2497
    %v2962 = vpack.c.b16 %v2506, %v2498
    %v2963 = vpack.c.b16 %v2507, %v2499
    %v2964 = vpack.c.b16 %v2508, %v2500
    %v2965 = vpack.c.b16 %v2509, %v2501
    %v2966 = vpack.c.b16 %v2518, %v2510
    %v2967 = vpack.c.b16 %v2519, %v2511
    %v2968 = vpack.c.b16 %v2520, %v2512
    %v2969 = vpack.c.b16 %v2521, %v2513
    %v2970 = vpack.c.b16 %v2522, %v2514
    %v2971 = vpack.c.b16 %v2523, %v2515
    %v2972 = vpack.c.b16 %v2524, %v2516
    %v2973 = vpack.c.b16 %v2525, %v2517
    %v2974 = vpack.c.b16 %v2534, %v2526
    %v2975 = vpack.c.b16 %v2535, %v2527
    %v2976 = vpack.c.b16 %v2536, %v2528
    %v2977 = vpack.c.b16 %v2537, %v2529
    %v2978 = vpack.c.b16 %v2538, %v2530
    %v2979 = vpack.c.b16 %v2539, %v2531
    %v2980 = vpack.c.b16 %v2540, %v2532
    %v2981 = vpack.c.b16 %v2541, %v2533
    %v2982 = vpack.c.b16 %v2550, %v2542
    %v2983 = vpack.c.b16 %v2551, %v2543
    %v2984 = vpack.c.b16 %v2552, %v2544
    %v2985 = vpack.c.b16 %v2553, %v2545
    %v2986 = vpack.c.b16 %v2554, %v2546
    %v2987 = vpack.c.b16 %v2555, %v2547
    %v2988 = vpack.c.b16 %v2556, %v2548
    %v2989 = vpack.c.b16 %v2557, %v2549
    %v2990 = vpack.c.b16 %v2566, %v2558
    %v2991 = vpack.c.b16 %v2567, %v2559
    %v2992 = vpack.c.b16 %v2568, %v2560
    %v2993 = vpack.c.b16 %v2569, %v2561
    %v2994 = vpack.c.b16 %v2570, %v2562
    %v2995 = vpack.c.b16 %v2571, %v2563
    %v2996 = vpack.c.b16 %v2572, %v2564
    %v2997 = vpack.c.b16 %v2573, %v2565
    %v2998 = vpack.c.b16 %v2582, %v2574
    %v2999 = vpack.c.b16 %v2583, %v2575
    %v3000 = vpack.c.b16 %v2584, %v2576
    %v3001 = vpack.c.b16 %v2585, %v2577
    %v3002 = vpack.c.b16 %v2586, %v2578
    %v3003 = vpack.c.b16 %v2587, %v2579
    %v3004 = vpack.c.b16 %v2588, %v2580
    %v3005 = vpack.c.b16 %v2589, %v2581
    %v3006 = vpack.c.b16 %v2598, %v2590
    %v3007 = vpack.c.b16 %v2599, %v2591
    %v3008 = vpack.c.b16 %v2600, %v2592
    %v3009 = vpack.c.b16 %v2601, %v2593
    %v3010 = vpack.c.b16 %v2602, %v2594
    %v3011 = vpack.c.b16 %v2603, %v2595
    %v3012 = vpack.c.b16 %v2604, %v2596
    %v3013 = vpack.c.b16 %v2605, %v2597
    %v3014 = vpack.c.b16 %v2614, %v2606
    %v3015 = vpack.c.b16 %v2615, %v2607
    %v3016 = vpack.c.b16 %v2616, %v2608
    %v3017 = vpack.c.b16 %v2617, %v2609
    %v3018 = vpack.c.b16 %v2618, %v2610
    %v3019 = vpack.c.b16 %v2619, %v2611
    %v3020 = vpack.c.b16 %v2620, %v2612
    %v3021 = vpack.c.b16 %v2621, %v2613
    %v3022 = vpack.c.b16 %v2630, %v2622
    %v3023 = vpack.c.b16 %v2631, %v2623
    %v3024 = vpack.c.b16 %v2632, %v2624
    %v3025 = vpack.c.b16 %v2633, %v2625
    %v3026 = vpack.c.b16 %v2634, %v2626
    %v3027 = vpack.c.b16 %v2635, %v2627
    %v3028 = vpack.c.b16 %v2636, %v2628
    %v3029 = vpack.c.b16 %v2637, %v2629
    %v3030 = vpack.c.b16 %v2646, %v2638
    %v3031 = vpack.c.b16 %v2647, %v2639
    %v3032 = vpack.c.b16 %v2648, %v2640
    %v3033 = vpack.c.b16 %v2649, %v2641
    %v3034 = vpack.c.b16 %v2650, %v2642
    %v3035 = vpack.c.b16 %v2651, %v2643
    %v3036 = vpack.c.b16 %v2652, %v2644
    %v3037 = vpack.c.b16 %v2653, %v2645
    %v3038 = vpack.c.b16 %v2662, %v2654
    %v3039 = vpack.c.b16 %v2663, %v2655
    %v3040 = vpack.c.b16 %v2664, %v2656
    %v3041 = vpack.c.b16 %v2665, %v2657
    %v3042 = vpack.c.b16 %v2666, %v2658
    %v3043 = vpack.c.b16 %v2667, %v2659
    %v3044 = vpack.c.b16 %v2668, %v2660
    %v3045 = vpack.c.b16 %v2669, %v2661
    %v3046 = vpack.c.b16 %v2678, %v2670
    %v3047 = vpack.c.b16 %v2679, %v2671
    %v3048 = vpack.c.b16 %v2680, %v2672
    %v3049 = vpack.c.b16 %v2681, %v2673
    %v3050 = vpack.c.b16 %v2682, %v2674
    %v3051 = vpack.c.b16 %v2683, %v2675
    %v3052 = vpack.c.b16 %v2684, %v2676
    %v3053 = vpack.c.b16 %v2685, %v2677
    %v3054 = vpack.c.b16 %v2694, %v2686
    %v3055 = vpack.c.b16 %v2695, %v2687
    %v3056 = vpack.c.b16 %v2696, %v2688
    %v3057 = vpack.c.b16 %v2697, %v2689
    %v3058 = vpack.c.b16 %v2698, %v2690
    %v3059 = vpack.c.b16 %v2699, %v2691
    %v3060 = vpack.c.b16 %v2700, %v2692
    %v3061 = vpack.c.b16 %v2701, %v2693
    %v3062 = vpack.c.b16 %v2710, %v2702
    %v3063 = vpack.c.b16 %v2711, %v2703
    %v3064 = vpack.c.b16 %v2712, %v2704
    %v3065 = vpack.c.b16 %v2713, %v2705
    %v3066 = vpack.c.b16 %v2714, %v2706
    %v3067 = vpack.c.b16 %v2715, %v2707
    %v3068 = vpack.c.b16 %v2716, %v2708
    %v3069 = vpack.c.b16 %v2717, %v2709
    %v3070 = vpack.c.b16 %v2726, %v2718
    %v3071 = vpack.c.b16 %v2727, %v2719
    %v3072 = vpack.c.b16 %v2728, %v2720
    %v3073 = vpack.c.b16 %v2729, %v2721
    %v3074 = vpack.c.b16 %v2730, %v2722
    %v3075 = vpack.c.b16 %v2731, %v2723
    %v3076 = vpack.c.b16 %v2732, %v2724
    %v3077 = vpack.c.b16 %v2733, %v2725
    %v3078 = vpack.c.b16 %v2742, %v2734
    %v3079 = vpack.c.b16 %v2743, %v2735
    %v3080 = vpack.c.b16 %v2744, %v2736
    %v3081 = vpack.c.b16 %v2745, %v2737
    %v3082 = vpack.c.b16 %v2746, %v2738
    %v3083 = vpack.c.b16 %v2747, %v2739
    %v3084 = vpack.c.b16 %v2748, %v2740
    %v3085 = vpack.c.b16 %v2749, %v2741
    %v3086 = vpack.c.b16 %v2758, %v2750
    %v3087 = vpack.c.b16 %v2759, %v2751
    %v3088 = vpack.c.b16 %v2760, %v2752
    %v3089 = vpack.c.b16 %v2761, %v2753
    %v3090 = vpack.c.b16 %v2762, %v2754
    %v3091 = vpack.c.b16 %v2763, %v2755
    %v3092 = vpack.c.b16 %v2764, %v2756
    %v3093 = vpack.c.b16 %v2765, %v2757
    %v3094 = vpack.c.b16 %v2774, %v2766
    %v3095 = vpack.c.b16 %v2775, %v2767
    %v3096 = vpack.c.b16 %v2776, %v2768
    %v3097 = vpack.c.b16 %v2777, %v2769
    %v3098 = vpack.c.b16 %v2778, %v2770
    %v3099 = vpack.c.b16 %v2779, %v2771
    %v3100 = vpack.c.b16 %v2780, %v2772
    %v3101 = vpack.c.b16 %v2781, %v2773
    %v3102 = vpack.c.b16 %v2790, %v2782
    %v3103 = vpack.c.b16 %v2791, %v2783
    %v3104 = vpack.c.b16 %v2792, %v2784
    %v3105 = vpack.c.b16 %v2793, %v2785
    %v3106 = vpack.c.b16 %v2794, %v2786
    %v3107 = vpack.c.b16 %v2795, %v2787
    %v3108 = vpack.c.b16 %v2796, %v2788
    %v3109 = vpack.c.b16 %v2797, %v2789
    %v3110 = vpack.c.b16 %v2806, %v2798
    %v3111 = vpack.c.b16 %v2807, %v2799
    %v3112 = vpack.c.b16 %v2808, %v2800
    %v3113 = vpack.c.b16 %v2809, %v2801
    %v3114 = vpack.c.b16 %v2810, %v2802
    %v3115 = vpack.c.b16 %v2811, %v2803
    %v3116 = vpack.c.b16 %v2812, %v2804
    %v3117 = vpack.c.b16 %v2813, %v2805
    %v3118 = vpack.c.b16 %v2822, %v2814
    %v3119 = vpack.c.b16 %v2823, %v2815
    %v3120 = vpack.c.b16 %v2824, %v2816
    %v3121 = vpack.c.b16 %v2825, %v2817
    %v3122 = vpack.c.b16 %v2826, %v2818
    %v3123 = vpack.c.b16 %v2827, %v2819
    %v3124 = vpack.c.b16 %v2828, %v2820
    %v3125 = vpack.c.b16 %v2829, %v2821
    %v3126 = vpack.c.b16 %v2838, %v2830
    %v3127 = vpack.c.b16 %v2839, %v2831
    %v3128 = vpack.c.b16 %v2840, %v2832
    %v3129 = vpack.c.b16 %v2841, %v2833
    %v3130 = vpack.c.b16 %v2842, %v2834
    %v3131 = vpack.c.b16 %v2843, %v2835
    %v3132 = vpack.c.b16 %v2844, %v2836
    %v3133 = vpack.c.b16 %v2845, %v2837
    %v3134 = vpack.c.b16 %v2854, %v2846
    %v3135 = vpack.c.b16 %v2855, %v2847
    %v3136 = vpack.c.b16 %v2856, %v2848
    %v3137 = vpack.c.b16 %v2857, %v2849
    %v3138 = vpack.c.b16 %v2858, %v2850
    %v3139 = vpack.c.b16 %v2859, %v2851
    %v3140 = vpack.c.b16 %v2860, %v2852
    %v3141 = vpack.c.b16 %v2861, %v2853
    %v3142 = vpack.c.b16 %v2870, %v2862
    %v3143 = vpack.c.b16 %v2871, %v2863
    %v3144 = vpack.c.b16 %v2872, %v2864
    %v3145 = vpack.c.b16 %v2873, %v2865
    %v3146 = vpack.c.b16 %v2874, %v2866
    %v3147 = vpack.c.b16 %v2875, %v2867
    %v3148 = vpack.c.b16 %v2876, %v2868
    %v3149 = vpack.c.b16 %v2877, %v2869
    %v3150 = vpack.c.b16 %v2886, %v2878
    %v3151 = vpack.c.b16 %v2887, %v2879
    %v3152 = vpack.c.b16 %v2888, %v2880
    %v3153 = vpack.c.b16 %v2889, %v2881
    %v3154 = vpack.c.b16 %v2890, %v2882
    %v3155 = vpack.c.b16 %v2891, %v2883
    %v3156 = vpack.c.b16 %v2892, %v2884
    %v3157 = vpack.c.b16 %v2893, %v2885
    %v3158 = vpack.c.b16 %v2902, %v2894
    %v3159 = vpack.c.b16 %v2903, %v2895
    %v3160 = vpack.c.b16 %v2904, %v2896
    %v3161 = vpack.c.b16 %v2905, %v2897
    %v3162 = vpack.c.b16 %v2906, %v2898
    %v3163 = vpack.c.b16 %v2907, %v2899
    %v3164 = vpack.c.b16 %v2908, %v2900
    %v3165 = vpack.c.b16 %v2909, %v2901
    %3422 = vmatprep.subr.bf16.mxu0 %v2911
    %3423 = vmatpush1.bf16.msra.mxu0 %v2910
    %3424 = vmatprep.subr.bf16.mxu0 %v2919
    %3425 = vmatpush1.bf16.msra.mxu0 %v2918
    %3426 = vmatprep.subr.bf16.mxu0 %v2927
    %3427 = vmatpush1.bf16.msra.mxu0 %v2926
    %3428 = vmatprep.subr.bf16.mxu0 %v2935
    %3429 = vmatpush1.bf16.msra.mxu0 %v2934
    %3430 = vmatprep.subr.bf16.mxu0 %v2943
    %3431 = vmatpush1.bf16.msra.mxu0 %v2942
    %3432 = vmatprep.subr.bf16.mxu0 %v2951
    %3433 = vmatpush1.bf16.msra.mxu0 %v2950
    %3434 = vmatprep.subr.bf16.mxu0 %v2959
    %3435 = vmatpush1.bf16.msra.mxu0 %v2958
    %3436 = vmatprep.subr.bf16.mxu0 %v2967
    %3437 = vmatpush1.bf16.msra.mxu0 %v2966
    %3438 = vmatprep.subr.bf16.mxu0 %v2975
    %3439 = vmatpush1.bf16.msra.mxu0 %v2974
    %3440 = vmatprep.subr.bf16.mxu0 %v2983
    %3441 = vmatpush1.bf16.msra.mxu0 %v2982
    %3442 = vmatprep.subr.bf16.mxu0 %v2991
    %3443 = vmatpush1.bf16.msra.mxu0 %v2990
    %3444 = vmatprep.subr.bf16.mxu0 %v2999
    %3445 = vmatpush1.bf16.msra.mxu0 %v2998
    %3446 = vmatprep.subr.bf16.mxu0 %v3007
    %3447 = vmatpush1.bf16.msra.mxu0 %v3006
    %3448 = vmatprep.subr.bf16.mxu0 %v3015
    %3449 = vmatpush1.bf16.msra.mxu0 %v3014
    %3450 = vmatprep.subr.bf16.mxu0 %v3023
    %3451 = vmatpush1.bf16.msra.mxu0 %v3022
    %3452 = vmatprep.subr.bf16.mxu0 %v3031
    %3453 = vmatpush1.bf16.msra.mxu0 %v3030
    %3454 = vmatprep.mubr.bf16.mxu0 %v1841
    %3455 = vmatmul.mubr.bf16.gmra.mrb[0].mxu0 %v1840
    %v3456 = vpop.f32.mrb[0].mxu0
    %v3457 = vadd.f32 %v2105, %v3456
    %v3458 = vpop.f32.mrb[0].mxu0
    %v3459 = vadd.f32 %v2109, %v3458
    %v3460 = vpop.f32.mrb[0].mxu0
    %v3461 = vpop.f32.mrb[0].mxu0
    %3462 = vdwg.mxu0
    %3463 = vmatprep.subr.bf16.mxu0 %v3039
    %3464 = vmatpush1.bf16.msra.mxu0 %v3038
    %3465 = vmatprep.subr.bf16.mxu0 %v3047
    %3466 = vmatpush1.bf16.msra.mxu0 %v3046
    %3467 = vmatprep.subr.bf16.mxu0 %v3055
    %3468 = vmatpush1.bf16.msra.mxu0 %v3054
    %3469 = vmatprep.subr.bf16.mxu0 %v3063
    %3470 = vmatpush1.bf16.msra.mxu0 %v3062
    %3471 = vmatprep.subr.bf16.mxu0 %v3071
    %3472 = vmatpush1.bf16.msra.mxu0 %v3070
    %3473 = vmatprep.subr.bf16.mxu0 %v3079
    %3474 = vmatpush1.bf16.msra.mxu0 %v3078
    %3475 = vmatprep.subr.bf16.mxu0 %v3087
    %3476 = vmatpush1.bf16.msra.mxu0 %v3086
    %3477 = vmatprep.subr.bf16.mxu0 %v3095
    %3478 = vmatpush1.bf16.msra.mxu0 %v3094
    %3479 = vmatprep.subr.bf16.mxu0 %v3103
    %3480 = vmatpush1.bf16.msra.mxu0 %v3102
    %3481 = vmatprep.subr.bf16.mxu0 %v3111
    %3482 = vmatpush1.bf16.msra.mxu0 %v3110
    %3483 = vmatprep.subr.bf16.mxu0 %v3119
    %3484 = vmatpush1.bf16.msra.mxu0 %v3118
    %3485 = vmatprep.subr.bf16.mxu0 %v3127
    %3486 = vmatpush1.bf16.msra.mxu0 %v3126
    %3487 = vmatprep.subr.bf16.mxu0 %v3135
    %3488 = vmatpush1.bf16.msra.mxu0 %v3134
    %3489 = vmatprep.subr.bf16.mxu0 %v3143
    %3490 = vmatpush1.bf16.msra.mxu0 %v3142
    %3491 = vmatprep.subr.bf16.mxu0 %v3151
    %3492 = vmatpush1.bf16.msra.mxu0 %v3150
    %3493 = vmatprep.subr.bf16.mxu0 %v3159
    %3494 = vmatpush1.bf16.msra.mxu0 %v3158
    %3495 = vmatprep.mubr.bf16.mxu0 %v1843
    %3496 = vmatmul.mubr.bf16.gmra.mrb[0].mxu0 %v1842
    %v3497 = vpop.f32.mrb[0].mxu0
    %v3498 = vadd.f32 %v3457, %v3497
    %v3499 = vpop.f32.mrb[0].mxu0
    %v3500 = vadd.f32 %v3459, %v3499
    %v3501 = vpop.f32.mrb[0].mxu0
    %v3502 = vpop.f32.mrb[0].mxu0
    %3503 = vdwg.mxu0
    %3504 = vmatprep.subr.bf16.mxu0 %v2913
    %3505 = vmatpush1.bf16.msra.mxu0 %v2912
    %3506 = vmatprep.subr.bf16.mxu0 %v2921
    %3507 = vmatpush1.bf16.msra.mxu0 %v2920
    %3508 = vmatprep.subr.bf16.mxu0 %v2929
    %3509 = vmatpush1.bf16.msra.mxu0 %v2928
    %3510 = vmatprep.subr.bf16.mxu0 %v2937
    %3511 = vmatpush1.bf16.msra.mxu0 %v2936
    %3512 = vmatprep.subr.bf16.mxu0 %v2945
    %3513 = vmatpush1.bf16.msra.mxu0 %v2944
    %3514 = vmatprep.subr.bf16.mxu0 %v2953
    %3515 = vmatpush1.bf16.msra.mxu0 %v2952
    %3516 = vmatprep.subr.bf16.mxu0 %v2961
    %3517 = vmatpush1.bf16.msra.mxu0 %v2960
    %3518 = vmatprep.subr.bf16.mxu0 %v2969
    %3519 = vmatpush1.bf16.msra.mxu0 %v2968
    %3520 = vmatprep.subr.bf16.mxu0 %v2977
    %3521 = vmatpush1.bf16.msra.mxu0 %v2976
    %3522 = vmatprep.subr.bf16.mxu0 %v2985
    %3523 = vmatpush1.bf16.msra.mxu0 %v2984
    %3524 = vmatprep.subr.bf16.mxu0 %v2993
    %3525 = vmatpush1.bf16.msra.mxu0 %v2992
    %3526 = vmatprep.subr.bf16.mxu0 %v3001
    %3527 = vmatpush1.bf16.msra.mxu0 %v3000
    %3528 = vmatprep.subr.bf16.mxu0 %v3009
    %3529 = vmatpush1.bf16.msra.mxu0 %v3008
    %3530 = vmatprep.subr.bf16.mxu0 %v3017
    %3531 = vmatpush1.bf16.msra.mxu0 %v3016
    %3532 = vmatprep.subr.bf16.mxu0 %v3025
    %3533 = vmatpush1.bf16.msra.mxu0 %v3024
    %3534 = vmatprep.subr.bf16.mxu0 %v3033
    %3535 = vmatpush1.bf16.msra.mxu0 %v3032
    %3536 = vmatprep.mubr.bf16.mxu0 %v1841
    %3537 = vmatmul.mubr.bf16.gmra.mrb[0].mxu0 %v1840
    %v3538 = vpop.f32.mrb[0].mxu0
    %v3539 = vadd.f32 %v2113, %v3538
    %v3540 = vpop.f32.mrb[0].mxu0
    %v3541 = vadd.f32 %v2117, %v3540
    %v3542 = vpop.f32.mrb[0].mxu0
    %v3543 = vpop.f32.mrb[0].mxu0
    %3544 = vdwg.mxu0
    %3545 = vmatprep.subr.bf16.mxu0 %v3041
    %3546 = vmatpush1.bf16.msra.mxu0 %v3040
    %3547 = vmatprep.subr.bf16.mxu0 %v3049
    %3548 = vmatpush1.bf16.msra.mxu0 %v3048
    %3549 = vmatprep.subr.bf16.mxu0 %v3057
    %3550 = vmatpush1.bf16.msra.mxu0 %v3056
    %3551 = vmatprep.subr.bf16.mxu0 %v3065
    %3552 = vmatpush1.bf16.msra.mxu0 %v3064
    %3553 = vmatprep.subr.bf16.mxu0 %v3073
    %3554 = vmatpush1.bf16.msra.mxu0 %v3072
    %3555 = vmatprep.subr.bf16.mxu0 %v3081
    %3556 = vmatpush1.bf16.msra.mxu0 %v3080
    %3557 = vmatprep.subr.bf16.mxu0 %v3089
    %3558 = vmatpush1.bf16.msra.mxu0 %v3088
    %3559 = vmatprep.subr.bf16.mxu0 %v3097
    %3560 = vmatpush1.bf16.msra.mxu0 %v3096
    %3561 = vmatprep.subr.bf16.mxu0 %v3105
    %3562 = vmatpush1.bf16.msra.mxu0 %v3104
    %3563 = vmatprep.subr.bf16.mxu0 %v3113
    %3564 = vmatpush1.bf16.msra.mxu0 %v3112
    %3565 = vmatprep.subr.bf16.mxu0 %v3121
    %3566 = vmatpush1.bf16.msra.mxu0 %v3120
    %3567 = vmatprep.subr.bf16.mxu0 %v3129
    %3568 = vmatpush1.bf16.msra.mxu0 %v3128
    %3569 = vmatprep.subr.bf16.mxu0 %v3137
    %3570 = vmatpush1.bf16.msra.mxu0 %v3136
    %3571 = vmatprep.subr.bf16.mxu0 %v3145
    %3572 = vmatpush1.bf16.msra.mxu0 %v3144
    %3573 = vmatprep.subr.bf16.mxu0 %v3153
    %3574 = vmatpush1.bf16.msra.mxu0 %v3152
    %3575 = vmatprep.subr.bf16.mxu0 %v3161
    %3576 = vmatpush1.bf16.msra.mxu0 %v3160
    %3577 = vmatprep.mubr.bf16.mxu0 %v1843
    %3578 = vmatmul.mubr.bf16.gmra.mrb[0].mxu0 %v1842
    %v3579 = vpop.f32.mrb[0].mxu0
    %v3580 = vadd.f32 %v3539, %v3579
    %v3581 = vpop.f32.mrb[0].mxu0
    %v3582 = vadd.f32 %v3541, %v3581
    %v3583 = vpop.f32.mrb[0].mxu0
    %v3584 = vpop.f32.mrb[0].mxu0
    %3585 = vdwg.mxu0
    %3586 = vmatprep.subr.bf16.mxu0 %v2915
    %3587 = vmatpush1.bf16.msra.mxu0 %v2914
    %3588 = vmatprep.subr.bf16.mxu0 %v2923
    %3589 = vmatpush1.bf16.msra.mxu0 %v2922
    %3590 = vmatprep.subr.bf16.mxu0 %v2931
    %3591 = vmatpush1.bf16.msra.mxu0 %v2930
    %3592 = vmatprep.subr.bf16.mxu0 %v2939
    %3593 = vmatpush1.bf16.msra.mxu0 %v2938
    %3594 = vmatprep.subr.bf16.mxu0 %v2947
    %3595 = vmatpush1.bf16.msra.mxu0 %v2946
    %3596 = vmatprep.subr.bf16.mxu0 %v2955
    %3597 = vmatpush1.bf16.msra.mxu0 %v2954
    %3598 = vmatprep.subr.bf16.mxu0 %v2963
    %3599 = vmatpush1.bf16.msra.mxu0 %v2962
    %3600 = vmatprep.subr.bf16.mxu0 %v2971
    %3601 = vmatpush1.bf16.msra.mxu0 %v2970
    %3602 = vmatprep.subr.bf16.mxu0 %v2979
    %3603 = vmatpush1.bf16.msra.mxu0 %v2978
    %3604 = vmatprep.subr.bf16.mxu0 %v2987
    %3605 = vmatpush1.bf16.msra.mxu0 %v2986
    %3606 = vmatprep.subr.bf16.mxu0 %v2995
    %3607 = vmatpush1.bf16.msra.mxu0 %v2994
    %3608 = vmatprep.subr.bf16.mxu0 %v3003
    %3609 = vmatpush1.bf16.msra.mxu0 %v3002
    %3610 = vmatprep.subr.bf16.mxu0 %v3011
    %3611 = vmatpush1.bf16.msra.mxu0 %v3010
    %3612 = vmatprep.subr.bf16.mxu0 %v3019
    %3613 = vmatpush1.bf16.msra.mxu0 %v3018
    %3614 = vmatprep.subr.bf16.mxu0 %v3027
    %3615 = vmatpush1.bf16.msra.mxu0 %v3026
    %3616 = vmatprep.subr.bf16.mxu0 %v3035
    %3617 = vmatpush1.bf16.msra.mxu0 %v3034
    %3618 = vmatprep.mubr.bf16.mxu0 %v1841
    %3619 = vmatmul.mubr.bf16.gmra.mrb[0].mxu0 %v1840
    %v3620 = vpop.f32.mrb[0].mxu0
    %v3621 = vadd.f32 %v2121, %v3620
    %v3622 = vpop.f32.mrb[0].mxu0
    %v3623 = vadd.f32 %v2125, %v3622
    %v3624 = vpop.f32.mrb[0].mxu0
    %v3625 = vpop.f32.mrb[0].mxu0
    %3626 = vdwg.mxu0
    %3627 = vmatprep.subr.bf16.mxu0 %v3043
    %3628 = vmatpush1.bf16.msra.mxu0 %v3042
    %3629 = vmatprep.subr.bf16.mxu0 %v3051
    %3630 = vmatpush1.bf16.msra.mxu0 %v3050
    %3631 = vmatprep.subr.bf16.mxu0 %v3059
    %3632 = vmatpush1.bf16.msra.mxu0 %v3058
    %3633 = vmatprep.subr.bf16.mxu0 %v3067
    %3634 = vmatpush1.bf16.msra.mxu0 %v3066
    %3635 = vmatprep.subr.bf16.mxu0 %v3075
    %3636 = vmatpush1.bf16.msra.mxu0 %v3074
    %3637 = vmatprep.subr.bf16.mxu0 %v3083
    %3638 = vmatpush1.bf16.msra.mxu0 %v3082
    %3639 = vmatprep.subr.bf16.mxu0 %v3091
    %3640 = vmatpush1.bf16.msra.mxu0 %v3090
    %3641 = vmatprep.subr.bf16.mxu0 %v3099
    %3642 = vmatpush1.bf16.msra.mxu0 %v3098
    %3643 = vmatprep.subr.bf16.mxu0 %v3107
    %3644 = vmatpush1.bf16.msra.mxu0 %v3106
    %3645 = vmatprep.subr.bf16.mxu0 %v3115
    %3646 = vmatpush1.bf16.msra.mxu0 %v3114
    %3647 = vmatprep.subr.bf16.mxu0 %v3123
    %3648 = vmatpush1.bf16.msra.mxu0 %v3122
    %3649 = vmatprep.subr.bf16.mxu0 %v3131
    %3650 = vmatpush1.bf16.msra.mxu0 %v3130
    %3651 = vmatprep.subr.bf16.mxu0 %v3139
    %3652 = vmatpush1.bf16.msra.mxu0 %v3138
    %3653 = vmatprep.subr.bf16.mxu0 %v3147
    %3654 = vmatpush1.bf16.msra.mxu0 %v3146
    %3655 = vmatprep.subr.bf16.mxu0 %v3155
    %3656 = vmatpush1.bf16.msra.mxu0 %v3154
    %3657 = vmatprep.subr.bf16.mxu0 %v3163
    %3658 = vmatpush1.bf16.msra.mxu0 %v3162
    %3659 = vmatprep.mubr.bf16.mxu0 %v1843
    %3660 = vmatmul.mubr.bf16.gmra.mrb[0].mxu0 %v1842
    %v3661 = vpop.f32.mrb[0].mxu0
    %v3662 = vadd.f32 %v3621, %v3661
    %v3663 = vpop.f32.mrb[0].mxu0
    %v3664 = vadd.f32 %v3623, %v3663
    %v3665 = vpop.f32.mrb[0].mxu0
    %v3666 = vpop.f32.mrb[0].mxu0
    %3667 = vdwg.mxu0
    %3668 = vmatprep.subr.bf16.mxu0 %v2917
    %3669 = vmatpush1.bf16.msra.mxu0 %v2916
    %3670 = vmatprep.subr.bf16.mxu0 %v2925
    %3671 = vmatpush1.bf16.msra.mxu0 %v2924
    %3672 = vmatprep.subr.bf16.mxu0 %v2933
    %3673 = vmatpush1.bf16.msra.mxu0 %v2932
    %3674 = vmatprep.subr.bf16.mxu0 %v2941
    %3675 = vmatpush1.bf16.msra.mxu0 %v2940
    %3676 = vmatprep.subr.bf16.mxu0 %v2949
    %3677 = vmatpush1.bf16.msra.mxu0 %v2948
    %3678 = vmatprep.subr.bf16.mxu0 %v2957
    %3679 = vmatpush1.bf16.msra.mxu0 %v2956
    %3680 = vmatprep.subr.bf16.mxu0 %v2965
    %3681 = vmatpush1.bf16.msra.mxu0 %v2964
    %3682 = vmatprep.subr.bf16.mxu0 %v2973
    %3683 = vmatpush1.bf16.msra.mxu0 %v2972
    %3684 = vmatprep.subr.bf16.mxu0 %v2981
    %3685 = vmatpush1.bf16.msra.mxu0 %v2980
    %3686 = vmatprep.subr.bf16.mxu0 %v2989
    %3687 = vmatpush1.bf16.msra.mxu0 %v2988
    %3688 = vmatprep.subr.bf16.mxu0 %v2997
    %3689 = vmatpush1.bf16.msra.mxu0 %v2996
    %3690 = vmatprep.subr.bf16.mxu0 %v3005
    %3691 = vmatpush1.bf16.msra.mxu0 %v3004
    %3692 = vmatprep.subr.bf16.mxu0 %v3013
    %3693 = vmatpush1.bf16.msra.mxu0 %v3012
    %3694 = vmatprep.subr.bf16.mxu0 %v3021
    %3695 = vmatpush1.bf16.msra.mxu0 %v3020
    %3696 = vmatprep.subr.bf16.mxu0 %v3029
    %3697 = vmatpush1.bf16.msra.mxu0 %v3028
    %3698 = vmatprep.subr.bf16.mxu0 %v3037
    %3699 = vmatpush1.bf16.msra.mxu0 %v3036
    %3700 = vmatprep.mubr.bf16.mxu0 %v1841
    %3701 = vmatmul.mubr.bf16.gmra.mrb[0].mxu0 %v1840
    %v3702 = vpop.f32.mrb[0].mxu0
    %v3703 = vadd.f32 %v2129, %v3702
    %v3704 = vpop.f32.mrb[0].mxu0
    %v3705 = vadd.f32 %v2133, %v3704
    %v3706 = vpop.f32.mrb[0].mxu0
    %v3707 = vpop.f32.mrb[0].mxu0
    %3708 = vdwg.mxu0
    %3709 = vmatprep.subr.bf16.mxu0 %v3045
    %3710 = vmatpush1.bf16.msra.mxu0 %v3044
    %3711 = vmatprep.subr.bf16.mxu0 %v3053
    %3712 = vmatpush1.bf16.msra.mxu0 %v3052
    %3713 = vmatprep.subr.bf16.mxu0 %v3061
    %3714 = vmatpush1.bf16.msra.mxu0 %v3060
    %3715 = vmatprep.subr.bf16.mxu0 %v3069
    %3716 = vmatpush1.bf16.msra.mxu0 %v3068
    %3717 = vmatprep.subr.bf16.mxu0 %v3077
    %3718 = vmatpush1.bf16.msra.mxu0 %v3076
    %3719 = vmatprep.subr.bf16.mxu0 %v3085
    %3720 = vmatpush1.bf16.msra.mxu0 %v3084
    %3721 = vmatprep.subr.bf16.mxu0 %v3093
    %3722 = vmatpush1.bf16.msra.mxu0 %v3092
    %3723 = vmatprep.subr.bf16.mxu0 %v3101
    %3724 = vmatpush1.bf16.msra.mxu0 %v3100
    %3725 = vmatprep.subr.bf16.mxu0 %v3109
    %3726 = vmatpush1.bf16.msra.mxu0 %v3108
    %3727 = vmatprep.subr.bf16.mxu0 %v3117
    %3728 = vmatpush1.bf16.msra.mxu0 %v3116
    %3729 = vmatprep.subr.bf16.mxu0 %v3125
    %3730 = vmatpush1.bf16.msra.mxu0 %v3124
    %3731 = vmatprep.subr.bf16.mxu0 %v3133
    %3732 = vmatpush1.bf16.msra.mxu0 %v3132
    %3733 = vmatprep.subr.bf16.mxu0 %v3141
    %3734 = vmatpush1.bf16.msra.mxu0 %v3140
    %3735 = vmatprep.subr.bf16.mxu0 %v3149
    %3736 = vmatpush1.bf16.msra.mxu0 %v3148
    %3737 = vmatprep.subr.bf16.mxu0 %v3157
    %3738 = vmatpush1.bf16.msra.mxu0 %v3156
    %3739 = vmatprep.subr.bf16.mxu0 %v3165
    %3740 = vmatpush1.bf16.msra.mxu0 %v3164
    %3741 = vmatprep.mubr.bf16.mxu0 %v1843
    %3742 = vmatmul.mubr.bf16.gmra.mrb[0].mxu0 %v1842
    %v3743 = vpop.f32.mrb[0].mxu0
    %v3744 = vadd.f32 %v3703, %v3743
    %v3745 = vpop.f32.mrb[0].mxu0
    %v3746 = vadd.f32 %v3705, %v3745
    %v3747 = vpop.f32.mrb[0].mxu0
    %v3748 = vpop.f32.mrb[0].mxu0
    %3749 = vdwg.mxu0
    %v3750 = vsel %vm1124, %v3498, 0.0
    %v3751 = vrot.slane %v3750, 4
    %v3752 = vadd.f32 %v3750, %v3751
    %v3753 = vrot.slane %v3752, 2
    %v3754 = vadd.f32 %v3752, %v3753
    %v3755 = vrot.slane %v3754, 1
    %v3756 = vadd.f32 %v3754, %v3755
    %v3757 = vsel %vm1124, %v3500, 0.0
    %v3758 = vrot.slane %v3757, 4
    %v3759 = vadd.f32 %v3757, %v3758
    %v3760 = vrot.slane %v3759, 2
    %v3761 = vadd.f32 %v3759, %v3760
    %v3762 = vrot.slane %v3761, 1
    %v3763 = vadd.f32 %v3761, %v3762
    %v3764 = vsel %vm1124, %v3580, 0.0
    %v3765 = vrot.slane %v3764, 4
    %v3766 = vadd.f32 %v3764, %v3765
    %v3767 = vrot.slane %v3766, 2
    %v3768 = vadd.f32 %v3766, %v3767
    %v3769 = vrot.slane %v3768, 1
    %v3770 = vadd.f32 %v3768, %v3769
    %v3771 = vsel %vm1124, %v3582, 0.0
    %v3772 = vrot.slane %v3771, 4
    %v3773 = vadd.f32 %v3771, %v3772
    %v3774 = vrot.slane %v3773, 2
    %v3775 = vadd.f32 %v3773, %v3774
    %v3776 = vrot.slane %v3775, 1
    %v3777 = vadd.f32 %v3775, %v3776
    %v3778 = vsel %vm1124, %v3662, 0.0
    %v3779 = vrot.slane %v3778, 4
    %v3780 = vadd.f32 %v3778, %v3779
    %v3781 = vrot.slane %v3780, 2
    %v3782 = vadd.f32 %v3780, %v3781
    %v3783 = vrot.slane %v3782, 1
    %v3784 = vadd.f32 %v3782, %v3783
    %v3785 = vsel %vm1124, %v3664, 0.0
    %v3786 = vrot.slane %v3785, 4
    %v3787 = vadd.f32 %v3785, %v3786
    %v3788 = vrot.slane %v3787, 2
    %v3789 = vadd.f32 %v3787, %v3788
    %v3790 = vrot.slane %v3789, 1
    %v3791 = vadd.f32 %v3789, %v3790
    %v3792 = vsel %vm1124, %v3744, 0.0
    %v3793 = vrot.slane %v3792, 4
    %v3794 = vadd.f32 %v3792, %v3793
    %v3795 = vrot.slane %v3794, 2
    %v3796 = vadd.f32 %v3794, %v3795
    %v3797 = vrot.slane %v3796, 1
    %v3798 = vadd.f32 %v3796, %v3797
    %v3799 = vsel %vm1124, %v3746, 0.0
    %v3800 = vrot.slane %v3799, 4
    %v3801 = vadd.f32 %v3799, %v3800
    %v3802 = vrot.slane %v3801, 2
    %v3803 = vadd.f32 %v3801, %v3802
    %v3804 = vrot.slane %v3803, 1
    %v3805 = vadd.f32 %v3803, %v3804
    %v3806 = vmul.f32 %v3756, %v1139
    %v3807 = vmul.f32 %v3763, %v1139
    %v3808 = vmul.f32 %v3770, %v1139
    %v3809 = vmul.f32 %v3777, %v1139
    %v3810 = vmul.f32 %v3784, %v1139
    %v3811 = vmul.f32 %v3791, %v1139
    %v3812 = vmul.f32 %v3798, %v1139
    %v3813 = vmul.f32 %v3805, %v1139
    %v3814 = vsub.f32 %v3498, %v3806
    %v3815 = vsub.f32 %v3500, %v3807
    %v3816 = vsub.f32 %v3580, %v3808
    %v3817 = vsub.f32 %v3582, %v3809
    %v3818 = vsub.f32 %v3662, %v3810
    %v3819 = vsub.f32 %v3664, %v3811
    %v3820 = vsub.f32 %v3744, %v3812
    %v3821 = vsub.f32 %v3746, %v3813
    %v3822 = vmul.f32 %v3814, %v3814
    %v3823 = vmul.f32 %v3815, %v3815
    %v3824 = vmul.f32 %v3816, %v3816
    %v3825 = vmul.f32 %v3817, %v3817
    %v3826 = vmul.f32 %v3818, %v3818
    %v3827 = vmul.f32 %v3819, %v3819
    %v3828 = vmul.f32 %v3820, %v3820
    %v3829 = vmul.f32 %v3821, %v3821
    %v3830 = vsel %vm1124, %v3822, 0.0
    %v3831 = vrot.slane %v3830, 4
    %v3832 = vadd.f32 %v3830, %v3831
    %v3833 = vrot.slane %v3832, 2
    %v3834 = vadd.f32 %v3832, %v3833
    %v3835 = vrot.slane %v3834, 1
    %v3836 = vadd.f32 %v3834, %v3835
    %v3837 = vsel %vm1124, %v3823, 0.0
    %v3838 = vrot.slane %v3837, 4
    %v3839 = vadd.f32 %v3837, %v3838
    %v3840 = vrot.slane %v3839, 2
    %v3841 = vadd.f32 %v3839, %v3840
    %v3842 = vrot.slane %v3841, 1
    %v3843 = vadd.f32 %v3841, %v3842
    %v3844 = vsel %vm1124, %v3824, 0.0
    %v3845 = vrot.slane %v3844, 4
    %v3846 = vadd.f32 %v3844, %v3845
    %v3847 = vrot.slane %v3846, 2
    %v3848 = vadd.f32 %v3846, %v3847
    %v3849 = vrot.slane %v3848, 1
    %v3850 = vadd.f32 %v3848, %v3849
    %v3851 = vsel %vm1124, %v3825, 0.0
    %v3852 = vrot.slane %v3851, 4
    %v3853 = vadd.f32 %v3851, %v3852
    %v3854 = vrot.slane %v3853, 2
    %v3855 = vadd.f32 %v3853, %v3854
    %v3856 = vrot.slane %v3855, 1
    %v3857 = vadd.f32 %v3855, %v3856
    %v3858 = vsel %vm1124, %v3826, 0.0
    %v3859 = vrot.slane %v3858, 4
    %v3860 = vadd.f32 %v3858, %v3859
    %v3861 = vrot.slane %v3860, 2
    %v3862 = vadd.f32 %v3860, %v3861
    %v3863 = vrot.slane %v3862, 1
    %v3864 = vadd.f32 %v3862, %v3863
    %v3865 = vsel %vm1124, %v3827, 0.0
    %v3866 = vrot.slane %v3865, 4
    %v3867 = vadd.f32 %v3865, %v3866
    %v3868 = vrot.slane %v3867, 2
    %v3869 = vadd.f32 %v3867, %v3868
    %v3870 = vrot.slane %v3869, 1
    %v3871 = vadd.f32 %v3869, %v3870
    %v3872 = vsel %vm1124, %v3828, 0.0
    %v3873 = vrot.slane %v3872, 4
    %v3874 = vadd.f32 %v3872, %v3873
    %v3875 = vrot.slane %v3874, 2
    %v3876 = vadd.f32 %v3874, %v3875
    %v3877 = vrot.slane %v3876, 1
    %v3878 = vadd.f32 %v3876, %v3877
    %v3879 = vsel %vm1124, %v3829, 0.0
    %v3880 = vrot.slane %v3879, 4
    %v3881 = vadd.f32 %v3879, %v3880
    %v3882 = vrot.slane %v3881, 2
    %v3883 = vadd.f32 %v3881, %v3882
    %v3884 = vrot.slane %v3883, 1
    %v3885 = vadd.f32 %v3883, %v3884
    %v3886 = vmul.f32 %v3836, %v1139
    %v3887 = vmul.f32 %v3843, %v1139
    %v3888 = vmul.f32 %v3850, %v1139
    %v3889 = vmul.f32 %v3857, %v1139
    %v3890 = vmul.f32 %v3864, %v1139
    %v3891 = vmul.f32 %v3871, %v1139
    %v3892 = vmul.f32 %v3878, %v1139
    %v3893 = vmul.f32 %v3885, %v1139
    %v3894 = vadd.f32 %v3886, 0.8
    %v3895 = vadd.f32 %v3887, 0.8
    %v3896 = vadd.f32 %v3888, 0.8
    %v3897 = vadd.f32 %v3889, 0.8
    %v3898 = vadd.f32 %v3890, 0.8
    %v3899 = vadd.f32 %v3891, 0.8
    %v3900 = vadd.f32 %v3892, 0.8
    %v3901 = vadd.f32 %v3893, 0.8
    %v3902 = vrsqrt.pop %v3894
    %v3903 = vrsqrt.pop %v3895
    %v3904 = vrsqrt.pop %v3896
    %v3905 = vrsqrt.pop %v3897
    %v3906 = vrsqrt.pop %v3898
    %v3907 = vrsqrt.pop %v3899
    %v3908 = vrsqrt.pop %v3900
    %v3909 = vrsqrt.pop %v3901
    %v3910 = vmul.f32 %v3814, %v3902
    %v3911 = vmul.f32 %v3815, %v3903
    %v3912 = vmul.f32 %v3816, %v3904
    %v3913 = vmul.f32 %v3817, %v3905
    %v3914 = vmul.f32 %v3818, %v3906
    %v3915 = vmul.f32 %v3819, %v3907
    %v3916 = vmul.f32 %v3820, %v3908
    %v3917 = vmul.f32 %v3821, %v3909
    %v3918 = vld [vmem:[#allocation23] sm:$0xff]
    %v3920 = vlaneseq
    %v3921 = vshrl.u32 %v3920, 7
    %v3922 = vsub.s32 0, %v3921
    %v3923 = vrot.slane %v3918, %v3922
    %v3924 = vlaneseq
    %v3925 = vshrl.u32 %v3924, 7
    %v3926 = vsub.s32 1, %v3925
    %v3927 = vrot.slane %v3918, %v3926
    %v3928 = vlaneseq
    %v3929 = vshrl.u32 %v3928, 7
    %v3930 = vsub.s32 2, %v3929
    %v3931 = vrot.slane %v3918, %v3930
    %v3932 = vlaneseq
    %v3933 = vshrl.u32 %v3932, 7
    %v3934 = vsub.s32 3, %v3933
    %v3935 = vrot.slane %v3918, %v3934
    %v3936 = vlaneseq
    %v3937 = vshrl.u32 %v3936, 7
    %v3938 = vsub.s32 4, %v3937
    %v3939 = vrot.slane %v3918, %v3938
    %v3940 = vlaneseq
    %v3941 = vshrl.u32 %v3940, 7
    %v3942 = vsub.s32 5, %v3941
    %v3943 = vrot.slane %v3918, %v3942
    %v3944 = vlaneseq
    %v3945 = vshrl.u32 %v3944, 7
    %v3946 = vsub.s32 6, %v3945
    %v3947 = vrot.slane %v3918, %v3946
    %v3948 = vlaneseq
    %v3949 = vshrl.u32 %v3948, 7
    %v3950 = vsub.s32 7, %v3949
    %v3951 = vrot.slane %v3918, %v3950
    %v3960 = vmul.f32 %v3910, %v3923
    %v3961 = vmul.f32 %v3911, %v3927
    %v3962 = vmul.f32 %v3912, %v3931
    %v3963 = vmul.f32 %v3913, %v3935
    %v3964 = vmul.f32 %v3914, %v3939
    %v3965 = vmul.f32 %v3915, %v3943
    %v3966 = vmul.f32 %v3916, %v3947
    %v3967 = vmul.f32 %v3917, %v3951
    %v3968 = vld [vmem:[#allocation25] sm:$0xff]
    %v3970 = vlaneseq
    %v3971 = vshrl.u32 %v3970, 7
    %v3972 = vsub.s32 0, %v3971
    %v3973 = vrot.slane %v3968, %v3972
    %v3974 = vlaneseq
    %v3975 = vshrl.u32 %v3974, 7
    %v3976 = vsub.s32 1, %v3975
    %v3977 = vrot.slane %v3968, %v3976
    %v3978 = vlaneseq
    %v3979 = vshrl.u32 %v3978, 7
    %v3980 = vsub.s32 2, %v3979
    %v3981 = vrot.slane %v3968, %v3980
    %v3982 = vlaneseq
    %v3983 = vshrl.u32 %v3982, 7
    %v3984 = vsub.s32 3, %v3983
    %v3985 = vrot.slane %v3968, %v3984
    %v3986 = vlaneseq
    %v3987 = vshrl.u32 %v3986, 7
    %v3988 = vsub.s32 4, %v3987
    %v3989 = vrot.slane %v3968, %v3988
    %v3990 = vlaneseq
    %v3991 = vshrl.u32 %v3990, 7
    %v3992 = vsub.s32 5, %v3991
    %v3993 = vrot.slane %v3968, %v3992
    %v3994 = vlaneseq
    %v3995 = vshrl.u32 %v3994, 7
    %v3996 = vsub.s32 6, %v3995
    %v3997 = vrot.slane %v3968, %v3996
    %v3998 = vlaneseq
    %v3999 = vshrl.u32 %v3998, 7
    %v4000 = vsub.s32 7, %v3999
    %v4001 = vrot.slane %v3968, %v4000
    %v4010 = vadd.f32 %v3960, %v3973
    %v4011 = vadd.f32 %v3961, %v3977
    %v4012 = vadd.f32 %v3962, %v3981
    %v4013 = vadd.f32 %v3963, %v3985
    %v4014 = vadd.f32 %v3964, %v3989
    %v4015 = vadd.f32 %v3965, %v3993
    %v4016 = vadd.f32 %v3966, %v3997
    %v4017 = vadd.f32 %v3967, %v4001
    %vm4018 = vcmp.gt.f32.partialorder %v4010, 0.0
    %vm4019 = vcmp.gt.f32.partialorder %v4011, 0.0
    %vm4020 = vcmp.gt.f32.partialorder %v4012, 0.0
    %vm4021 = vcmp.gt.f32.partialorder %v4013, 0.0
    %vm4022 = vcmp.gt.f32.partialorder %v4014, 0.0
    %vm4023 = vcmp.gt.f32.partialorder %v4015, 0.0
    %vm4024 = vcmp.gt.f32.partialorder %v4016, 0.0
    %vm4025 = vcmp.gt.f32.partialorder %v4017, 0.0
    %v4026 = vmul.f32 %v4010, 0.2
    %v4027 = vmul.f32 %v4011, 0.2
    %v4028 = vmul.f32 %v4012, 0.2
    %v4029 = vmul.f32 %v4013, 0.2
    %v4030 = vmul.f32 %v4014, 0.2
    %v4031 = vmul.f32 %v4015, 0.2
    %v4032 = vmul.f32 %v4016, 0.2
    %v4033 = vmul.f32 %v4017, 0.2
    %v4034 = vsel %vm4018, %v4010, %v4026
    %v4035 = vsel %vm4019, %v4011, %v4027
    %v4036 = vsel %vm4020, %v4012, %v4028
    %v4037 = vsel %vm4021, %v4013, %v4029
    %v4038 = vsel %vm4022, %v4014, %v4030
    %v4039 = vsel %vm4023, %v4015, %v4031
    %v4040 = vsel %vm4024, %v4016, %v4032
    %v4041 = vsel %vm4025, %v4017, %v4033
    %v4042 = vpack.c.bf16 %v4034, %v4034
    %v4043 = vpack.c.bf16 %v4035, %v4035
    %v4044 = vpack.c.bf16 %v4036, %v4036
    %v4045 = vpack.c.bf16 %v4037, %v4037
    %v4046 = vpack.c.bf16 %v4038, %v4038
    %v4047 = vpack.c.bf16 %v4039, %v4039
    %v4048 = vpack.c.bf16 %v4040, %v4040
    %v4049 = vpack.c.bf16 %v4041, %v4041
    %v4058 = vcombine.low %v4042, %v4043
    %v4059 = vcombine.low %v4044, %v4045
    %v4060 = vcombine.low %v4046, %v4047
    %v4061 = vcombine.low %v4048, %v4049
    %v4063 = vunpack.c.l.s4 1966171168
    %v4064 = vunpack.c.0.s8 %v4063
    %v4065 = vlaneseq
    %v4066 = vshrl.u32 %v4065, 7
    %v4067 = vsub.s32 %v4064, %v4066
    %v4068 = vrot.slane %v4058, %v4067
    %v4070 = vunpack.c.l.s4 1966171168
    %v4071 = vunpack.c.0.s8 %v4070
    %v4072 = vlaneseq
    %v4073 = vshrl.u32 %v4072, 7
    %v4074 = vsub.s32 %v4071, %v4073
    %v4075 = vrot.slane %v4059, %v4074
    %v4077 = vunpack.c.l.s4 1966171168
    %v4078 = vunpack.c.0.s8 %v4077
    %v4079 = vlaneseq
    %v4080 = vshrl.u32 %v4079, 7
    %v4081 = vsub.s32 %v4078, %v4080
    %v4082 = vrot.slane %v4060, %v4081
    %v4084 = vunpack.c.l.s4 1966171168
    %v4085 = vunpack.c.0.s8 %v4084
    %v4086 = vlaneseq
    %v4087 = vshrl.u32 %v4086, 7
    %v4088 = vsub.s32 %v4085, %v4087
    %v4089 = vrot.slane %v4061, %v4088
    %v4090 = vcombine.low %v4068, %v4075
    %v4091 = vcombine.low %v4082, %v4089
    %v4093 = vunpack.c.l.s4 1966171168
    %v4094 = vunpack.c.0.s8 %v4093
    %v4095 = vlaneseq
    %v4096 = vshrl.u32 %v4095, 7
    %v4097 = vsub.s32 %v4094, %v4096
    %v4098 = vrot.slane %v4090, %v4097
    %v4100 = vunpack.c.l.s4 1966171168
    %v4101 = vunpack.c.0.s8 %v4100
    %v4102 = vlaneseq
    %v4103 = vshrl.u32 %v4102, 7
    %v4104 = vsub.s32 %v4101, %v4103
    %v4105 = vrot.slane %v4091, %v4104
    %v4106 = vcombine.low %v4098, %v4105
    %4108 = vst [vmem:[#allocation26] sm:$0xff] %v4106
    // Predicated region
    $region122: #{generator_forward.2} parent=1 // pred_check
      _
    $region123: #{generator_forward.2} parent=1 // pred_check_branch
      %4110 = sbr.rel (0) target = $region125
    $region124: #{generator_forward.2} parent=1 // pred_region
      %s4112 = ssub.s32 128, 128
      %4113 = vsyncadd [#allocation4], %s4112
      %s4115 = sshll.u32 [#allocation26], 4
      %s4116 = int_to_ptr.vmem [resolvable:$true] %s4115
      %4118 = dma.vmem_to_hbm [thread:$0]  %s4116, 128, %s15, [#allocation4]
    $region125: #{generator_forward.2} parent=1 // pred_fallthru
      _
    // Predicated region
    $region126: #{generator_forward.2} parent=1 // pred_check
      _
    $region127: #{generator_forward.2} parent=1 // pred_check_branch
      %4120 = sbr.rel (0) target = $region129
    $region128: #{generator_forward.2} parent=1 // pred_region
      %4121 = dma.done [#allocation4], 128
    $region129: #{generator_forward.2} parent=1 // pred_fallthru
      _
    %4122 = vsyncpa [#allocation3], 1
    %4123 = vsyncpa [#allocation6], 1
    %4124 = vsyncpa [#allocation9], 1
    %4125 = vsyncpa [#allocation12], 1
    %4126 = vsyncpa [#allocation15], 1
    %4127 = vsyncpa [#allocation18], 1
    %4128 = vsyncpa [#allocation21], 1
    %4129 = vsyncpa [#allocation24], 1
    %4130 = vsyncpa [#allocation4], 1

</llo_original>
